<compile_context>
chip_gen: v7x
topology: tpu7x:2x2x1
jax: 0.10.0
libtpu: 0.0.40
codegen_flags: <defaults>
</compile_context>

<pallas_src>
import jax
import jax.numpy as jnp
from jax.experimental import pallas as pl
from jax.experimental.pallas import tpu as pltpu


_PER_BUFFER_BYTES = 4 * 1024 * 1024   # neg tile per pipeline buffer (x2 double-buffered)
_MIN_PALLAS_BYTES = 1 * 1024 * 1024   # below this the launch-free XLA path wins
_VMEM_LIMIT_BYTES = 24 * 1024 * 1024  # safe on every generation incl. v7x (64 MiB/TC)


def _softplus(x):
    # Numerically stable softplus; log(1+exp(-|x|)) is used instead of log1p
    # so the exact same formula lowers cleanly inside the Mosaic kernel.
    return jnp.maximum(x, 0.0) + jnp.log(1.0 + jnp.exp(-jnp.abs(x)))


def _bce_reference(pos_scores, neg_scores):
    """Plain-XLA reference; also the small-problem fallback."""
    pos = pos_scores.astype(jnp.float32)
    neg = neg_scores.astype(jnp.float32)
    total = jnp.sum(_softplus(-pos)) + jnp.sum(_softplus(neg))
    return total / jnp.float32(pos.size + neg.size)


def _num_parts_for_device():
    """2-way 'parallel' leading grid axis only where there are 2 TensorCores."""
    try:
        kind = jax.devices()[0].device_kind.lower()
    except Exception:
        return 1
    return 2 if ("v7" in kind or "7x" in kind) else 1


def _choose_tile_b(batch, lanes_pad, itemsize, num_parts, sub):
    # Largest row-tile whose (lane-padded) VMEM footprint stays within the
    # per-buffer byte budget, capped at each part's share of the batch.
    t = _PER_BUFFER_BYTES // max(1, lanes_pad * itemsize)
    t = max(sub, (t // sub) * sub)
    per_part = -(-batch // num_parts)
    per_part = max(sub, ((per_part + sub - 1) // sub) * sub)
    return min(t, per_part)


def binary_cross_entropy_loss(pos_scores: jax.Array, neg_scores: jax.Array) -> jax.Array:
    """pos_scores: (B, 1), neg_scores: (B, num_negs) -> scalar float32 loss."""
    B, _ = pos_scores.shape
    Bn, num_negs = neg_scores.shape
    assert B == Bn
    n_elems = B * (1 + num_negs)
    itemsize = jnp.dtype(neg_scores.dtype).itemsize
    lanes_pad = -(-num_negs // 128) * 128          # VMEM lane padding of a row
    sub = 8 * max(1, 4 // itemsize)                # sublane packing unit (8 f32 / 16 bf16)
    neg_bytes = B * num_negs * itemsize

    # Tiny problems, tiny batches, or rows too wide to tile -> fused XLA path.
    if (B < 8 or neg_bytes < _MIN_PALLAS_BYTES
            or sub * lanes_pad * itemsize > _PER_BUFFER_BYTES):
        return _bce_reference(pos_scores, neg_scores)

    # Positives: only B elements -> plain XLA; keeps the kernel single-input.
    pos_sum = jnp.sum(_softplus(-pos_scores.astype(jnp.float32)))

    num_parts = _num_parts_for_device()
    tile_b = _choose_tile_b(B, lanes_pad, itemsize, num_parts, sub)
    j_steps = -(-B // (num_parts * tile_b))        # ceil(B / (num_parts * tile_b))
    last_block = -(-B // tile_b) - 1               # last in-bounds block index
    needs_mask = (num_parts * j_steps * tile_b) != B   # Python-static

    def kernel(neg_ref, out_ref):
        i = pl.program_id(0)
        j = pl.program_id(1)

        @pl.when(j == 0)
        def _():
            out_ref[...] = jnp.zeros_like(out_ref)

        neg = neg_ref[...].astype(jnp.float32)     # (tile_b, num_negs), in-register upcast
        sp = _softplus(neg)

        if needs_mask:                             # static: only emitted when B is ragged
            row0 = (i * j_steps + j) * tile_b
            rows = row0 + jax.lax.broadcasted_iota(jnp.int32, sp.shape, 0)
            sp = jnp.where(rows < B, sp, 0.0)

        # Per-step reduction only down to a (1, num_negs) vector partial
        # (cross-vreg VALU adds + one 8-way sublane fold); the cross-lane
        # reduce to a scalar happens once, in the wrapper.
        out_ref[...] += jnp.sum(sp, axis=0, keepdims=True)

    partials = pl.pallas_call(
        kernel,
        out_shape=jax.ShapeDtypeStruct((num_parts, 1, num_negs), jnp.float32),
        grid_spec=pltpu.PrefetchScalarGridSpec(
            num_scalar_prefetch=0,
            grid=(num_parts, j_steps),
            in_specs=[
                pl.BlockSpec(
                    (tile_b, num_negs),
                    # Clamp so a (fully masked) trailing step never requests a
                    # block past the array; the row mask zeroes its contribution.
                    lambda i, j: (jnp.minimum(i * j_steps + j, last_block), 0),
                ),
            ],
            out_specs=pl.BlockSpec((None, 1, num_negs), lambda i, j: (i, 0, 0)),
        ),
        compiler_params=pltpu.CompilerParams(
            dimension_semantics=("parallel", "arbitrary"),
            vmem_limit_bytes=_VMEM_LIMIT_BYTES,
        ),
    )(neg_scores)

    # Final tiny reduce + mean (precomputed 1/n, unpadded element count).
    return (pos_sum + jnp.sum(partials)) * jnp.float32(1.0 / n_elems)


if __name__ == "__main__":
    key = jax.random.PRNGKey(0)
    k1, k2, k3, k4, k5, k6 = jax.random.split(key, 6)

    # Case 1: f32; B not aligned to the tile (exercises the in-kernel row mask)
    # and num_negs not a multiple of 128. ~1.2 MiB -> Pallas path.
    B1, N1 = 1037, 300
    pos1 = jax.random.normal(k1, (B1, 1), dtype=jnp.float32)
    neg1 = jax.random.normal(k2, (B1, N1), dtype=jnp.float32) * 2.0
    loss1 = jax.block_until_ready(binary_cross_entropy_loss(pos1, neg1))
    ref1 = jax.block_until_ready(_bce_reference(pos1, neg1))
    assert jnp.allclose(loss1, ref1, rtol=2e-5, atol=1e-6), (loss1, ref1)

    # Case 2: bf16 inputs (upcast in-register), lane-dense num_negs, aligned B.
    B2, N2 = 2048, 384
    pos2 = jax.random.normal(k3, (B2, 1), dtype=jnp.bfloat16)
    neg2 = jax.random.normal(k4, (B2, N2), dtype=jnp.bfloat16)
    loss2 = jax.block_until_ready(binary_cross_entropy_loss(pos2, neg2))
    ref2 = jax.block_until_ready(_bce_reference(pos2, neg2))
    assert jnp.allclose(loss2, ref2, rtol=1e-4, atol=1e-5), (loss2, ref2)

    # Case 3: tiny problem -> bytes-based XLA fallback path.
    B3, N3 = 16, 8
    pos3 = jax.random.normal(k5, (B3, 1), dtype=jnp.float32)
    neg3 = jax.random.normal(k6, (B3, N3), dtype=jnp.float32)
    loss3 = jax.block_until_ready(binary_cross_entropy_loss(pos3, neg3))
    ref3 = jax.block_until_ready(_bce_reference(pos3, neg3))
    assert jnp.allclose(loss3, ref3, rtol=1e-5, atol=1e-6), (loss3, ref3)

    print("KERNEL_OK")
</pallas_src>

<mosaic_0001>
module attributes {stable_mosaic.version = 11 : i64} {
  func.func @kernel(%arg0: i32, %arg1: i32, %arg2: memref<1040x300xf32, #tpu.memory_space<vmem>>, %arg3: memref<1x1x300xf32, #tpu.memory_space<vmem>>) attributes {dimension_semantics = [#tpu.dimension_semantics<parallel>, #tpu.dimension_semantics<arbitrary>], iteration_bounds = array<i64: 1, 1>, scalar_prefetch = 0 : i64, scratch_operands = 0 : i64, tpu.core_type = #tpu.core_type<tc>, window_params = [{transform_indices = @transform_0, window_bounds = array<i64: 1040, 300>}, {transform_indices = @transform_1, window_bounds = array<i64: 1, 1, 300>}]} {
    %c0_i32 = arith.constant 0 : i32
    %0 = arith.cmpi eq, %arg1, %c0_i32 : i32
    %1 = arith.extui %0 : i1 to i32
    %c0_i32_0 = arith.constant 0 : i32
    %2 = arith.cmpi ne, %1, %c0_i32_0 : i32
    scf.if %2 {
      %cst_12 = arith.constant 0.000000e+00 : f32
      %32 = vector.broadcast %cst_12 : f32 to vector<1x300xf32>
      %c0_13 = arith.constant 0 : index
      %c0_14 = arith.constant 0 : index
      %c0_15 = arith.constant 0 : index
      %33 = vector.load %arg3[%c0_13, %c0_14, %c0_15] : memref<1x1x300xf32, #tpu.memory_space<vmem>>, vector<1x1x300xf32>
      %34 = vector.shape_cast %33 : vector<1x1x300xf32> to vector<1x300xf32>
      %35 = vector.shape_cast %32 : vector<1x300xf32> to vector<1x1x300xf32>
      tpu.vector_store %arg3[%c0_13, %c0_14, %c0_15], %35 {strides = array<i32>} : memref<1x1x300xf32, #tpu.memory_space<vmem>>, vector<1x1x300xf32>,
    } else {
    }
    %c0 = arith.constant 0 : index
    %c0_1 = arith.constant 0 : index
    %3 = vector.load %arg2[%c0, %c0_1] : memref<1040x300xf32, #tpu.memory_space<vmem>>, vector<1040x300xf32>
    %cst = arith.constant 0.000000e+00 : f32
    %4 = vector.broadcast %cst : f32 to vector<1040x300xf32>
    %5 = arith.maximumf %3, %4 : vector<1040x300xf32>
    %6 = math.absf %3 : vector<1040x300xf32>
    %cst_2 = arith.constant 0.000000e+00 : f32
    %7 = vector.broadcast %cst_2 : f32 to vector<1040x300xf32>
    %8 = arith.subf %7, %6 : vector<1040x300xf32>
    %9 = math.exp %8 : vector<1040x300xf32>
    %cst_3 = arith.constant 1.000000e+00 : f32
    %10 = vector.broadcast %cst_3 : f32 to vector<1040x300xf32>
    %11 = arith.addf %10, %9 : vector<1040x300xf32>
    %12 = math.log %11 : vector<1040x300xf32>
    %13 = arith.addf %5, %12 : vector<1040x300xf32>
    %c1_i32 = arith.constant 1 : i32
    %14 = arith.muli %arg0, %c1_i32 : i32
    %15 = arith.addi %14, %arg1 : i32
    %c1040_i32 = arith.constant 1040 : i32
    %16 = arith.muli %15, %c1040_i32 : i32
    %17 = tpu.iota {dimensions = array<i32: 0>} : vector<1040x300xi32>
    %18 = vector.broadcast %16 : i32 to vector<1040x300xi32>
    %19 = arith.addi %18, %17 : vector<1040x300xi32>
    %c1037_i32 = arith.constant 1037 : i32
    %20 = vector.broadcast %c1037_i32 : i32 to vector<1040x300xi32>
    %21 = arith.cmpi slt, %19, %20 : vector<1040x300xi32>
    %cst_4 = arith.constant 0.000000e+00 : f32
    %22 = vector.broadcast %cst_4 : f32 to vector<1040x300xf32>
    %23 = arith.select %21, %13, %22 : vector<1040x300xi1>, vector<1040x300xf32>
    %c0_5 = arith.constant 0 : index
    %c0_6 = arith.constant 0 : index
    %c0_7 = arith.constant 0 : index
    %24 = vector.load %arg3[%c0_5, %c0_6, %c0_7] : memref<1x1x300xf32, #tpu.memory_space<vmem>>, vector<1x1x300xf32>
    %25 = vector.shape_cast %24 : vector<1x1x300xf32> to vector<1x300xf32>
    %cst_8 = arith.constant dense<0.000000e+00> : vector<300xf32>
    %26 = vector.multi_reduction <add>, %23, %cst_8 [0] : vector<1040x300xf32> to vector<300xf32>
    %27 = vector.shape_cast %26 : vector<300xf32> to vector<1x300xf32>
    %28 = arith.addf %25, %27 : vector<1x300xf32>
    %c0_9 = arith.constant 0 : index
    %c0_10 = arith.constant 0 : index
    %c0_11 = arith.constant 0 : index
    %29 = vector.load %arg3[%c0_9, %c0_10, %c0_11] : memref<1x1x300xf32, #tpu.memory_space<vmem>>, vector<1x1x300xf32>
    %30 = vector.shape_cast %29 : vector<1x1x300xf32> to vector<1x300xf32>
    %31 = vector.shape_cast %28 : vector<1x300xf32> to vector<1x1x300xf32>
    tpu.vector_store %arg3[%c0_9, %c0_10, %c0_11], %31 {strides = array<i32>} : memref<1x1x300xf32, #tpu.memory_space<vmem>>, vector<1x1x300xf32>,
    return
  }
  func.func @transform_0(%arg0: i32, %arg1: i32) -> (i32, i32) {
    %c1_i32 = arith.constant 1 : i32
    %0 = arith.muli %arg0, %c1_i32 : i32
    %1 = arith.addi %0, %arg1 : i32
    %c0_i32 = arith.constant 0 : i32
    %2 = arith.minsi %1, %c0_i32 : i32
    %c0_i32_0 = arith.constant 0 : i32
    %c0_i32_1 = arith.constant 0 : i32
    return %2, %c0_i32_0 : i32, i32
  }
  func.func @transform_1(%arg0: i32, %arg1: i32) -> (i32, i32, i32) {
    %c0_i32 = arith.constant 0 : i32
    %c0_i32_0 = arith.constant 0 : i32
    %c0_i32_1 = arith.constant 0 : i32
    return %arg0, %c0_i32, %c0_i32_0 : i32, i32, i32
  }
}

</mosaic_0001>

<llo_original>
// kernel: tpu_custom_call.1
$region0: #{tpu_custom_call.1}
  #allocation0 [shape = 'u32[]', space=smem, size = 0x4, offset = 0x4, fixed_abs, tag = 'smem constant byte address 0x4 - core index']
  #allocation1 [shape = 'u32[144,128]{1,0:T(1,128)}', space=vmem, size = 0x12000, scoped, tag = 'internal scratch']
  %s0 = inlined_call_operand.vmem [shape: f32[1037,300], index: 0, kind: input, shape index: {}]
  %s1 = inlined_call_operand.hbm [shape: f32[1,1,300], index: 1, kind: output, shape index: {}]
  %s2 = sld [smem:[#allocation0]]
  $region18: #{tpu_custom_call.1} parent=0
    _
  %s4 = ssub.s32 1, %s2
  %s5 = scalar_select 0, %s4, %s2
  $region1: #{tpu_custom_call.1} parent=0
    #allocation2 [shape = 'u8[1536]{0}', space=vmem, size = 0x800, scoped, tag = 'output window, operand 0, single buffered']
    #allocation3 [shape = 's32[1]{0}', space=sflag, size = 0x4, scoped, tag = 'scoped memory for tpu_custom_call.1']
    %6 = vsyncpa [#allocation3], 0
    // Predicated region
    $region2: #{tpu_custom_call.1} parent=1 // pred_check
      _
    $region3: #{tpu_custom_call.1} parent=1 // pred_check_branch
      %8 = sbr.rel (0) target = $region5
    $region4: #{tpu_custom_call.1} parent=1 // pred_region
      %s9 = sadd.s32 0, 0
      %p10 = scmp.lt.s32.totalorder %s9, 0
      %s11 = scalar_select %p10, %s9, 0
      %s12 = smul.u32 130, %s11
      %p13 = scmp.lt.s32.totalorder %s12, 129
      %s14 = scalar_select %p13, %s12, 129
      %s15 = smul.addr %s14, 3
      %s16 = smul.addr %s15, 8
      %s17 = scalar_lea.vmem %s0, %s16
      %s18 = sadd.s32 0, 0
      %p19 = scmp.lt.s32.totalorder %s18, 0
      %s20 = scalar_select %p19, %s18, 0
      %s21 = smul.u32 130, %s20
    $region5: #{tpu_custom_call.1} parent=1 // pred_fallthru
      _
    %s22 = sadd.s32 0, 0
    %p23 = scmp.lt.s32.totalorder %s22, 0
    %s24 = scalar_select %p23, %s22, 0
    %s25 = smul.u32 130, %s24
    %p26 = scmp.lt.s32.totalorder %s25, 129
    %s27 = scalar_select %p26, %s25, 129
    %s28 = smul.addr %s27, 3
    %s29 = smul.addr %s28, 8
    %s30 = scalar_lea.vmem %s0, %s29
    %s31 = sadd.s32 0, 0
    %p32 = scmp.lt.s32.totalorder %s31, 0
    %s33 = scalar_select %p32, %s31, 0
    %s34 = smul.u32 130, %s33
    %p35 = scmp.lt.s32.totalorder %s34, 129
    %s36 = scalar_select %p35, %s34, 129
    %s37 = smul.addr %s36, 3
    %s38 = smul.addr %s37, 8
    %s39 = scalar_lea.vmem %s0, %s38
    %s40 = sadd.s32 0, 0
    %p41 = scmp.lt.s32.totalorder %s40, 0
    %s42 = scalar_select %p41, %s40, 0
    %s43 = smul.u32 130, %s42
    %p44 = scmp.eq.s32.totalorder 0, 0
    // Predicated region
    $region6: #{tpu_custom_call.1} parent=1 // pred_check
      %p45 = pneg %p44
    $region7: #{tpu_custom_call.1} parent=1 // pred_check_branch
      %47 = sbr.rel (%p45) target = $region9
    $region8: #{tpu_custom_call.1} parent=1 // pred_region
      %v48 = vlaneseq
      %vm49 = vcmp.ge.s32.totalorder %v48, 0
      %vm50 = vcmp.lt.s32.totalorder %v48, 300
      %vm51 = vmand %vm49, %vm50
      %52 = vst.msk [vmem:[#allocation2] sm:$0x7] %vm51, 0.0
    $region9: #{tpu_custom_call.1} parent=1 // pred_fallthru
      _
    %v53 = vld [vmem:[%s39] sm:$0xff]
    %v54 = vld [vmem:[%s39 + $0x8] sm:$0xff]
    %v55 = vld [vmem:[%s39 + $0x10] sm:$0xff]
    %v56 = vld [vmem:[%s39 + $0x18] sm:$0xff]
    %v57 = vld [vmem:[%s39 + $0x20] sm:$0xff]
    %v58 = vld [vmem:[%s39 + $0x28] sm:$0xff]
    %v59 = vld [vmem:[%s39 + $0x30] sm:$0xff]
    %v60 = vld [vmem:[%s39 + $0x38] sm:$0xff]
    %v61 = vld [vmem:[%s39 + $0x40] sm:$0xff]
    %v62 = vld [vmem:[%s39 + $0x48] sm:$0xff]
    %v63 = vld [vmem:[%s39 + $0x50] sm:$0xff]
    %v64 = vld [vmem:[%s39 + $0x58] sm:$0xff]
    %v65 = vld [vmem:[%s39 + $0x60] sm:$0xff]
    %v66 = vld [vmem:[%s39 + $0x68] sm:$0xff]
    %v67 = vld [vmem:[%s39 + $0x70] sm:$0xff]
    %v68 = vld [vmem:[%s39 + $0x78] sm:$0xff]
    %v69 = vld [vmem:[%s39 + $0x80] sm:$0xff]
    %v70 = vld [vmem:[%s39 + $0x88] sm:$0xff]
    %v71 = vld [vmem:[%s39 + $0x90] sm:$0xff]
    %v72 = vld [vmem:[%s39 + $0x98] sm:$0xff]
    %v73 = vld [vmem:[%s39 + $0xa0] sm:$0xff]
    %v74 = vld [vmem:[%s39 + $0xa8] sm:$0xff]
    %v75 = vld [vmem:[%s39 + $0xb0] sm:$0xff]
    %v76 = vld [vmem:[%s39 + $0xb8] sm:$0xff]
    %v77 = vld [vmem:[%s39 + $0xc0] sm:$0xff]
    %v78 = vld [vmem:[%s39 + $0xc8] sm:$0xff]
    %v79 = vld [vmem:[%s39 + $0xd0] sm:$0xff]
    %v80 = vld [vmem:[%s39 + $0xd8] sm:$0xff]
    %v81 = vld [vmem:[%s39 + $0xe0] sm:$0xff]
    %v82 = vld [vmem:[%s39 + $0xe8] sm:$0xff]
    %v83 = vld [vmem:[%s39 + $0xf0] sm:$0xff]
    %v84 = vld [vmem:[%s39 + $0xf8] sm:$0xff]
    %v85 = vld [vmem:[%s39 + $0x100] sm:$0xff]
    %v86 = vld [vmem:[%s39 + $0x108] sm:$0xff]
    %v87 = vld [vmem:[%s39 + $0x110] sm:$0xff]
    %v88 = vld [vmem:[%s39 + $0x118] sm:$0xff]
    %v89 = vld [vmem:[%s39 + $0x120] sm:$0xff]
    %v90 = vld [vmem:[%s39 + $0x128] sm:$0xff]
    %v91 = vld [vmem:[%s39 + $0x130] sm:$0xff]
    %v92 = vld [vmem:[%s39 + $0x138] sm:$0xff]
    %v93 = vld [vmem:[%s39 + $0x140] sm:$0xff]
    %v94 = vld [vmem:[%s39 + $0x148] sm:$0xff]
    %v95 = vld [vmem:[%s39 + $0x150] sm:$0xff]
    %v96 = vld [vmem:[%s39 + $0x158] sm:$0xff]
    %v97 = vld [vmem:[%s39 + $0x160] sm:$0xff]
    %v98 = vld [vmem:[%s39 + $0x168] sm:$0xff]
    %v99 = vld [vmem:[%s39 + $0x170] sm:$0xff]
    %v100 = vld [vmem:[%s39 + $0x178] sm:$0xff]
    %v101 = vld [vmem:[%s39 + $0x180] sm:$0xff]
    %v102 = vld [vmem:[%s39 + $0x188] sm:$0xff]
    %v103 = vld [vmem:[%s39 + $0x190] sm:$0xff]
    %v104 = vld [vmem:[%s39 + $0x198] sm:$0xff]
    %v105 = vld [vmem:[%s39 + $0x1a0] sm:$0xff]
    %v106 = vld [vmem:[%s39 + $0x1a8] sm:$0xff]
    %v107 = vld [vmem:[%s39 + $0x1b0] sm:$0xff]
    %v108 = vld [vmem:[%s39 + $0x1b8] sm:$0xff]
    %v109 = vld [vmem:[%s39 + $0x1c0] sm:$0xff]
    %v110 = vld [vmem:[%s39 + $0x1c8] sm:$0xff]
    %v111 = vld [vmem:[%s39 + $0x1d0] sm:$0xff]
    %v112 = vld [vmem:[%s39 + $0x1d8] sm:$0xff]
    %v113 = vld [vmem:[%s39 + $0x1e0] sm:$0xff]
    %v114 = vld [vmem:[%s39 + $0x1e8] sm:$0xff]
    %v115 = vld [vmem:[%s39 + $0x1f0] sm:$0xff]
    %v116 = vld [vmem:[%s39 + $0x1f8] sm:$0xff]
    %v117 = vld [vmem:[%s39 + $0x200] sm:$0xff]
    %v118 = vld [vmem:[%s39 + $0x208] sm:$0xff]
    %v119 = vld [vmem:[%s39 + $0x210] sm:$0xff]
    %v120 = vld [vmem:[%s39 + $0x218] sm:$0xff]
    %v121 = vld [vmem:[%s39 + $0x220] sm:$0xff]
    %v122 = vld [vmem:[%s39 + $0x228] sm:$0xff]
    %v123 = vld [vmem:[%s39 + $0x230] sm:$0xff]
    %v124 = vld [vmem:[%s39 + $0x238] sm:$0xff]
    %v125 = vld [vmem:[%s39 + $0x240] sm:$0xff]
    %v126 = vld [vmem:[%s39 + $0x248] sm:$0xff]
    %v127 = vld [vmem:[%s39 + $0x250] sm:$0xff]
    %v128 = vld [vmem:[%s39 + $0x258] sm:$0xff]
    %v129 = vld [vmem:[%s39 + $0x260] sm:$0xff]
    %v130 = vld [vmem:[%s39 + $0x268] sm:$0xff]
    %v131 = vld [vmem:[%s39 + $0x270] sm:$0xff]
    %v132 = vld [vmem:[%s39 + $0x278] sm:$0xff]
    %v133 = vld [vmem:[%s39 + $0x280] sm:$0xff]
    %v134 = vld [vmem:[%s39 + $0x288] sm:$0xff]
    %v135 = vld [vmem:[%s39 + $0x290] sm:$0xff]
    %v136 = vld [vmem:[%s39 + $0x298] sm:$0xff]
    %v137 = vld [vmem:[%s39 + $0x2a0] sm:$0xff]
    %v138 = vld [vmem:[%s39 + $0x2a8] sm:$0xff]
    %v139 = vld [vmem:[%s39 + $0x2b0] sm:$0xff]
    %v140 = vld [vmem:[%s39 + $0x2b8] sm:$0xff]
    %v141 = vld [vmem:[%s39 + $0x2c0] sm:$0xff]
    %v142 = vld [vmem:[%s39 + $0x2c8] sm:$0xff]
    %v143 = vld [vmem:[%s39 + $0x2d0] sm:$0xff]
    %v144 = vld [vmem:[%s39 + $0x2d8] sm:$0xff]
    %v145 = vld [vmem:[%s39 + $0x2e0] sm:$0xff]
    %v146 = vld [vmem:[%s39 + $0x2e8] sm:$0xff]
    %v147 = vld [vmem:[%s39 + $0x2f0] sm:$0xff]
    %v148 = vld [vmem:[%s39 + $0x2f8] sm:$0xff]
    %v149 = vld [vmem:[%s39 + $0x300] sm:$0xff]
    %v150 = vld [vmem:[%s39 + $0x308] sm:$0xff]
    %v151 = vld [vmem:[%s39 + $0x310] sm:$0xff]
    %v152 = vld [vmem:[%s39 + $0x318] sm:$0xff]
    %v153 = vld [vmem:[%s39 + $0x320] sm:$0xff]
    %v154 = vld [vmem:[%s39 + $0x328] sm:$0xff]
    %v155 = vld [vmem:[%s39 + $0x330] sm:$0xff]
    %v156 = vld [vmem:[%s39 + $0x338] sm:$0xff]
    %v157 = vld [vmem:[%s39 + $0x340] sm:$0xff]
    %v158 = vld [vmem:[%s39 + $0x348] sm:$0xff]
    %v159 = vld [vmem:[%s39 + $0x350] sm:$0xff]
    %v160 = vld [vmem:[%s39 + $0x358] sm:$0xff]
    %v161 = vld [vmem:[%s39 + $0x360] sm:$0xff]
    %v162 = vld [vmem:[%s39 + $0x368] sm:$0xff]
    %v163 = vld [vmem:[%s39 + $0x370] sm:$0xff]
    %v164 = vld [vmem:[%s39 + $0x378] sm:$0xff]
    %v165 = vld [vmem:[%s39 + $0x380] sm:$0xff]
    %v166 = vld [vmem:[%s39 + $0x388] sm:$0xff]
    %v167 = vld [vmem:[%s39 + $0x390] sm:$0xff]
    %v168 = vld [vmem:[%s39 + $0x398] sm:$0xff]
    %v169 = vld [vmem:[%s39 + $0x3a0] sm:$0xff]
    %v170 = vld [vmem:[%s39 + $0x3a8] sm:$0xff]
    %v171 = vld [vmem:[%s39 + $0x3b0] sm:$0xff]
    %v172 = vld [vmem:[%s39 + $0x3b8] sm:$0xff]
    %v173 = vld [vmem:[%s39 + $0x3c0] sm:$0xff]
    %v174 = vld [vmem:[%s39 + $0x3c8] sm:$0xff]
    %v175 = vld [vmem:[%s39 + $0x3d0] sm:$0xff]
    %v176 = vld [vmem:[%s39 + $0x3d8] sm:$0xff]
    %v177 = vld [vmem:[%s39 + $0x3e0] sm:$0xff]
    %v178 = vld [vmem:[%s39 + $0x3e8] sm:$0xff]
    %v179 = vld [vmem:[%s39 + $0x3f0] sm:$0xff]
    %v180 = vld [vmem:[%s39 + $0x3f8] sm:$0xff]
    %v181 = vld [vmem:[%s39 + $0x400] sm:$0xff]
    %v182 = vld [vmem:[%s39 + $0x408] sm:$0xff]
    %v183 = vld [vmem:[%s39 + $0x410] sm:$0xff]
    %v184 = vld [vmem:[%s39 + $0x418] sm:$0xff]
    %v185 = vld [vmem:[%s39 + $0x420] sm:$0xff]
    %v186 = vld [vmem:[%s39 + $0x428] sm:$0xff]
    %v187 = vld [vmem:[%s39 + $0x430] sm:$0xff]
    %v188 = vld [vmem:[%s39 + $0x438] sm:$0xff]
    %v189 = vld [vmem:[%s39 + $0x440] sm:$0xff]
    %v190 = vld [vmem:[%s39 + $0x448] sm:$0xff]
    %v191 = vld [vmem:[%s39 + $0x450] sm:$0xff]
    %v192 = vld [vmem:[%s39 + $0x458] sm:$0xff]
    %v193 = vld [vmem:[%s39 + $0x460] sm:$0xff]
    %v194 = vld [vmem:[%s39 + $0x468] sm:$0xff]
    %v195 = vld [vmem:[%s39 + $0x470] sm:$0xff]
    %v196 = vld [vmem:[%s39 + $0x478] sm:$0xff]
    %v197 = vld [vmem:[%s39 + $0x480] sm:$0xff]
    %v198 = vld [vmem:[%s39 + $0x488] sm:$0xff]
    %v199 = vld [vmem:[%s39 + $0x490] sm:$0xff]
    %v200 = vld [vmem:[%s39 + $0x498] sm:$0xff]
    %v201 = vld [vmem:[%s39 + $0x4a0] sm:$0xff]
    %v202 = vld [vmem:[%s39 + $0x4a8] sm:$0xff]
    %v203 = vld [vmem:[%s39 + $0x4b0] sm:$0xff]
    %v204 = vld [vmem:[%s39 + $0x4b8] sm:$0xff]
    %v205 = vld [vmem:[%s39 + $0x4c0] sm:$0xff]
    %v206 = vld [vmem:[%s39 + $0x4c8] sm:$0xff]
    %v207 = vld [vmem:[%s39 + $0x4d0] sm:$0xff]
    %v208 = vld [vmem:[%s39 + $0x4d8] sm:$0xff]
    %v209 = vld [vmem:[%s39 + $0x4e0] sm:$0xff]
    %v210 = vld [vmem:[%s39 + $0x4e8] sm:$0xff]
    %v211 = vld [vmem:[%s39 + $0x4f0] sm:$0xff]
    %v212 = vld [vmem:[%s39 + $0x4f8] sm:$0xff]
    %v213 = vld [vmem:[%s39 + $0x500] sm:$0xff]
    %v214 = vld [vmem:[%s39 + $0x508] sm:$0xff]
    %v215 = vld [vmem:[%s39 + $0x510] sm:$0xff]
    %v216 = vld [vmem:[%s39 + $0x518] sm:$0xff]
    %v217 = vld [vmem:[%s39 + $0x520] sm:$0xff]
    %v218 = vld [vmem:[%s39 + $0x528] sm:$0xff]
    %v219 = vld [vmem:[%s39 + $0x530] sm:$0xff]
    %v220 = vld [vmem:[%s39 + $0x538] sm:$0xff]
    %v221 = vld [vmem:[%s39 + $0x540] sm:$0xff]
    %v222 = vld [vmem:[%s39 + $0x548] sm:$0xff]
    %v223 = vld [vmem:[%s39 + $0x550] sm:$0xff]
    %v224 = vld [vmem:[%s39 + $0x558] sm:$0xff]
    %v225 = vld [vmem:[%s39 + $0x560] sm:$0xff]
    %v226 = vld [vmem:[%s39 + $0x568] sm:$0xff]
    %v227 = vld [vmem:[%s39 + $0x570] sm:$0xff]
    %v228 = vld [vmem:[%s39 + $0x578] sm:$0xff]
    %v229 = vld [vmem:[%s39 + $0x580] sm:$0xff]
    %v230 = vld [vmem:[%s39 + $0x588] sm:$0xff]
    %v231 = vld [vmem:[%s39 + $0x590] sm:$0xff]
    %v232 = vld [vmem:[%s39 + $0x598] sm:$0xff]
    %v233 = vld [vmem:[%s39 + $0x5a0] sm:$0xff]
    %v234 = vld [vmem:[%s39 + $0x5a8] sm:$0xff]
    %v235 = vld [vmem:[%s39 + $0x5b0] sm:$0xff]
    %v236 = vld [vmem:[%s39 + $0x5b8] sm:$0xff]
    %v237 = vld [vmem:[%s39 + $0x5c0] sm:$0xff]
    %v238 = vld [vmem:[%s39 + $0x5c8] sm:$0xff]
    %v239 = vld [vmem:[%s39 + $0x5d0] sm:$0xff]
    %v240 = vld [vmem:[%s39 + $0x5d8] sm:$0xff]
    %v241 = vld [vmem:[%s39 + $0x5e0] sm:$0xff]
    %v242 = vld [vmem:[%s39 + $0x5e8] sm:$0xff]
    %v243 = vld [vmem:[%s39 + $0x5f0] sm:$0xff]
    %v244 = vld [vmem:[%s39 + $0x5f8] sm:$0xff]
    %v245 = vld [vmem:[%s39 + $0x600] sm:$0xff]
    %v246 = vld [vmem:[%s39 + $0x608] sm:$0xff]
    %v247 = vld [vmem:[%s39 + $0x610] sm:$0xff]
    %v248 = vld [vmem:[%s39 + $0x618] sm:$0xff]
    %v249 = vld [vmem:[%s39 + $0x620] sm:$0xff]
    %v250 = vld [vmem:[%s39 + $0x628] sm:$0xff]
    %v251 = vld [vmem:[%s39 + $0x630] sm:$0xff]
    %v252 = vld [vmem:[%s39 + $0x638] sm:$0xff]
    %v253 = vld [vmem:[%s39 + $0x640] sm:$0xff]
    %v254 = vld [vmem:[%s39 + $0x648] sm:$0xff]
    %v255 = vld [vmem:[%s39 + $0x650] sm:$0xff]
    %v256 = vld [vmem:[%s39 + $0x658] sm:$0xff]
    %v257 = vld [vmem:[%s39 + $0x660] sm:$0xff]
    %v258 = vld [vmem:[%s39 + $0x668] sm:$0xff]
    %v259 = vld [vmem:[%s39 + $0x670] sm:$0xff]
    %v260 = vld [vmem:[%s39 + $0x678] sm:$0xff]
    %v261 = vld [vmem:[%s39 + $0x680] sm:$0xff]
    %v262 = vld [vmem:[%s39 + $0x688] sm:$0xff]
    %v263 = vld [vmem:[%s39 + $0x690] sm:$0xff]
    %v264 = vld [vmem:[%s39 + $0x698] sm:$0xff]
    %v265 = vld [vmem:[%s39 + $0x6a0] sm:$0xff]
    %v266 = vld [vmem:[%s39 + $0x6a8] sm:$0xff]
    %v267 = vld [vmem:[%s39 + $0x6b0] sm:$0xff]
    %v268 = vld [vmem:[%s39 + $0x6b8] sm:$0xff]
    %v269 = vld [vmem:[%s39 + $0x6c0] sm:$0xff]
    %v270 = vld [vmem:[%s39 + $0x6c8] sm:$0xff]
    %v271 = vld [vmem:[%s39 + $0x6d0] sm:$0xff]
    %v272 = vld [vmem:[%s39 + $0x6d8] sm:$0xff]
    %v273 = vld [vmem:[%s39 + $0x6e0] sm:$0xff]
    %v274 = vld [vmem:[%s39 + $0x6e8] sm:$0xff]
    %v275 = vld [vmem:[%s39 + $0x6f0] sm:$0xff]
    %v276 = vld [vmem:[%s39 + $0x6f8] sm:$0xff]
    %v277 = vld [vmem:[%s39 + $0x700] sm:$0xff]
    %v278 = vld [vmem:[%s39 + $0x708] sm:$0xff]
    %v279 = vld [vmem:[%s39 + $0x710] sm:$0xff]
    %v280 = vld [vmem:[%s39 + $0x718] sm:$0xff]
    %v281 = vld [vmem:[%s39 + $0x720] sm:$0xff]
    %v282 = vld [vmem:[%s39 + $0x728] sm:$0xff]
    %v283 = vld [vmem:[%s39 + $0x730] sm:$0xff]
    %v284 = vld [vmem:[%s39 + $0x738] sm:$0xff]
    %v285 = vld [vmem:[%s39 + $0x740] sm:$0xff]
    %v286 = vld [vmem:[%s39 + $0x748] sm:$0xff]
    %v287 = vld [vmem:[%s39 + $0x750] sm:$0xff]
    %v288 = vld [vmem:[%s39 + $0x758] sm:$0xff]
    %v289 = vld [vmem:[%s39 + $0x760] sm:$0xff]
    %v290 = vld [vmem:[%s39 + $0x768] sm:$0xff]
    %v291 = vld [vmem:[%s39 + $0x770] sm:$0xff]
    %v292 = vld [vmem:[%s39 + $0x778] sm:$0xff]
    %v293 = vld [vmem:[%s39 + $0x780] sm:$0xff]
    %v294 = vld [vmem:[%s39 + $0x788] sm:$0xff]
    %v295 = vld [vmem:[%s39 + $0x790] sm:$0xff]
    %v296 = vld [vmem:[%s39 + $0x798] sm:$0xff]
    %v297 = vld [vmem:[%s39 + $0x7a0] sm:$0xff]
    %v298 = vld [vmem:[%s39 + $0x7a8] sm:$0xff]
    %v299 = vld [vmem:[%s39 + $0x7b0] sm:$0xff]
    %v300 = vld [vmem:[%s39 + $0x7b8] sm:$0xff]
    %v301 = vld [vmem:[%s39 + $0x7c0] sm:$0xff]
    %v302 = vld [vmem:[%s39 + $0x7c8] sm:$0xff]
    %v303 = vld [vmem:[%s39 + $0x7d0] sm:$0xff]
    %v304 = vld [vmem:[%s39 + $0x7d8] sm:$0xff]
    %v305 = vld [vmem:[%s39 + $0x7e0] sm:$0xff]
    %v306 = vld [vmem:[%s39 + $0x7e8] sm:$0xff]
    %v307 = vld [vmem:[%s39 + $0x7f0] sm:$0xff]
    %v308 = vld [vmem:[%s39 + $0x7f8] sm:$0xff]
    %v309 = vld [vmem:[%s39 + $0x800] sm:$0xff]
    %v310 = vld [vmem:[%s39 + $0x808] sm:$0xff]
    %v311 = vld [vmem:[%s39 + $0x810] sm:$0xff]
    %v312 = vld [vmem:[%s39 + $0x818] sm:$0xff]
    %v313 = vld [vmem:[%s39 + $0x820] sm:$0xff]
    %v314 = vld [vmem:[%s39 + $0x828] sm:$0xff]
    %v315 = vld [vmem:[%s39 + $0x830] sm:$0xff]
    %v316 = vld [vmem:[%s39 + $0x838] sm:$0xff]
    %v317 = vld [vmem:[%s39 + $0x840] sm:$0xff]
    %v318 = vld [vmem:[%s39 + $0x848] sm:$0xff]
    %v319 = vld [vmem:[%s39 + $0x850] sm:$0xff]
    %v320 = vld [vmem:[%s39 + $0x858] sm:$0xff]
    %v321 = vld [vmem:[%s39 + $0x860] sm:$0xff]
    %v322 = vld [vmem:[%s39 + $0x868] sm:$0xff]
    %v323 = vld [vmem:[%s39 + $0x870] sm:$0xff]
    %v324 = vld [vmem:[%s39 + $0x878] sm:$0xff]
    %v325 = vld [vmem:[%s39 + $0x880] sm:$0xff]
    %v326 = vld [vmem:[%s39 + $0x888] sm:$0xff]
    %v327 = vld [vmem:[%s39 + $0x890] sm:$0xff]
    %v328 = vld [vmem:[%s39 + $0x898] sm:$0xff]
    %v329 = vld [vmem:[%s39 + $0x8a0] sm:$0xff]
    %v330 = vld [vmem:[%s39 + $0x8a8] sm:$0xff]
    %v331 = vld [vmem:[%s39 + $0x8b0] sm:$0xff]
    %v332 = vld [vmem:[%s39 + $0x8b8] sm:$0xff]
    %v333 = vld [vmem:[%s39 + $0x8c0] sm:$0xff]
    %v334 = vld [vmem:[%s39 + $0x8c8] sm:$0xff]
    %v335 = vld [vmem:[%s39 + $0x8d0] sm:$0xff]
    %v336 = vld [vmem:[%s39 + $0x8d8] sm:$0xff]
    %v337 = vld [vmem:[%s39 + $0x8e0] sm:$0xff]
    %v338 = vld [vmem:[%s39 + $0x8e8] sm:$0xff]
    %v339 = vld [vmem:[%s39 + $0x8f0] sm:$0xff]
    %v340 = vld [vmem:[%s39 + $0x8f8] sm:$0xff]
    %v341 = vld [vmem:[%s39 + $0x900] sm:$0xff]
    %v342 = vld [vmem:[%s39 + $0x908] sm:$0xff]
    %v343 = vld [vmem:[%s39 + $0x910] sm:$0xff]
    %v344 = vld [vmem:[%s39 + $0x918] sm:$0xff]
    %v345 = vld [vmem:[%s39 + $0x920] sm:$0xff]
    %v346 = vld [vmem:[%s39 + $0x928] sm:$0xff]
    %v347 = vld [vmem:[%s39 + $0x930] sm:$0xff]
    %v348 = vld [vmem:[%s39 + $0x938] sm:$0xff]
    %v349 = vld [vmem:[%s39 + $0x940] sm:$0xff]
    %v350 = vld [vmem:[%s39 + $0x948] sm:$0xff]
    %v351 = vld [vmem:[%s39 + $0x950] sm:$0xff]
    %v352 = vld [vmem:[%s39 + $0x958] sm:$0xff]
    %v353 = vld [vmem:[%s39 + $0x960] sm:$0xff]
    %v354 = vld [vmem:[%s39 + $0x968] sm:$0xff]
    %v355 = vld [vmem:[%s39 + $0x970] sm:$0xff]
    %v356 = vld [vmem:[%s39 + $0x978] sm:$0xff]
    %v357 = vld [vmem:[%s39 + $0x980] sm:$0xff]
    %v358 = vld [vmem:[%s39 + $0x988] sm:$0xff]
    %v359 = vld [vmem:[%s39 + $0x990] sm:$0xff]
    %v360 = vld [vmem:[%s39 + $0x998] sm:$0xff]
    %v361 = vld [vmem:[%s39 + $0x9a0] sm:$0xff]
    %v362 = vld [vmem:[%s39 + $0x9a8] sm:$0xff]
    %v363 = vld [vmem:[%s39 + $0x9b0] sm:$0xff]
    %v364 = vld [vmem:[%s39 + $0x9b8] sm:$0xff]
    %v365 = vld [vmem:[%s39 + $0x9c0] sm:$0xff]
    %v366 = vld [vmem:[%s39 + $0x9c8] sm:$0xff]
    %v367 = vld [vmem:[%s39 + $0x9d0] sm:$0xff]
    %v368 = vld [vmem:[%s39 + $0x9d8] sm:$0xff]
    %v369 = vld [vmem:[%s39 + $0x9e0] sm:$0xff]
    %v370 = vld [vmem:[%s39 + $0x9e8] sm:$0xff]
    %v371 = vld [vmem:[%s39 + $0x9f0] sm:$0xff]
    %v372 = vld [vmem:[%s39 + $0x9f8] sm:$0xff]
    %v373 = vld [vmem:[%s39 + $0xa00] sm:$0xff]
    %v374 = vld [vmem:[%s39 + $0xa08] sm:$0xff]
    %v375 = vld [vmem:[%s39 + $0xa10] sm:$0xff]
    %v376 = vld [vmem:[%s39 + $0xa18] sm:$0xff]
    %v377 = vld [vmem:[%s39 + $0xa20] sm:$0xff]
    %v378 = vld [vmem:[%s39 + $0xa28] sm:$0xff]
    %v379 = vld [vmem:[%s39 + $0xa30] sm:$0xff]
    %v380 = vld [vmem:[%s39 + $0xa38] sm:$0xff]
    %v381 = vld [vmem:[%s39 + $0xa40] sm:$0xff]
    %v382 = vld [vmem:[%s39 + $0xa48] sm:$0xff]
    %v383 = vld [vmem:[%s39 + $0xa50] sm:$0xff]
    %v384 = vld [vmem:[%s39 + $0xa58] sm:$0xff]
    %v385 = vld [vmem:[%s39 + $0xa60] sm:$0xff]
    %v386 = vld [vmem:[%s39 + $0xa68] sm:$0xff]
    %v387 = vld [vmem:[%s39 + $0xa70] sm:$0xff]
    %v388 = vld [vmem:[%s39 + $0xa78] sm:$0xff]
    %v389 = vld [vmem:[%s39 + $0xa80] sm:$0xff]
    %v390 = vld [vmem:[%s39 + $0xa88] sm:$0xff]
    %v391 = vld [vmem:[%s39 + $0xa90] sm:$0xff]
    %v392 = vld [vmem:[%s39 + $0xa98] sm:$0xff]
    %v393 = vld [vmem:[%s39 + $0xaa0] sm:$0xff]
    %v394 = vld [vmem:[%s39 + $0xaa8] sm:$0xff]
    %v395 = vld [vmem:[%s39 + $0xab0] sm:$0xff]
    %v396 = vld [vmem:[%s39 + $0xab8] sm:$0xff]
    %v397 = vld [vmem:[%s39 + $0xac0] sm:$0xff]
    %v398 = vld [vmem:[%s39 + $0xac8] sm:$0xff]
    %v399 = vld [vmem:[%s39 + $0xad0] sm:$0xff]
    %v400 = vld [vmem:[%s39 + $0xad8] sm:$0xff]
    %v401 = vld [vmem:[%s39 + $0xae0] sm:$0xff]
    %v402 = vld [vmem:[%s39 + $0xae8] sm:$0xff]
    %v403 = vld [vmem:[%s39 + $0xaf0] sm:$0xff]
    %v404 = vld [vmem:[%s39 + $0xaf8] sm:$0xff]
    %v405 = vld [vmem:[%s39 + $0xb00] sm:$0xff]
    %v406 = vld [vmem:[%s39 + $0xb08] sm:$0xff]
    %v407 = vld [vmem:[%s39 + $0xb10] sm:$0xff]
    %v408 = vld [vmem:[%s39 + $0xb18] sm:$0xff]
    %v409 = vld [vmem:[%s39 + $0xb20] sm:$0xff]
    %v410 = vld [vmem:[%s39 + $0xb28] sm:$0xff]
    %v411 = vld [vmem:[%s39 + $0xb30] sm:$0xff]
    %v412 = vld [vmem:[%s39 + $0xb38] sm:$0xff]
    %v413 = vld [vmem:[%s39 + $0xb40] sm:$0xff]
    %v414 = vld [vmem:[%s39 + $0xb48] sm:$0xff]
    %v415 = vld [vmem:[%s39 + $0xb50] sm:$0xff]
    %v416 = vld [vmem:[%s39 + $0xb58] sm:$0xff]
    %v417 = vld [vmem:[%s39 + $0xb60] sm:$0xff]
    %v418 = vld [vmem:[%s39 + $0xb68] sm:$0xff]
    %v419 = vld [vmem:[%s39 + $0xb70] sm:$0xff]
    %v420 = vld [vmem:[%s39 + $0xb78] sm:$0xff]
    %v421 = vld [vmem:[%s39 + $0xb80] sm:$0xff]
    %v422 = vld [vmem:[%s39 + $0xb88] sm:$0xff]
    %v423 = vld [vmem:[%s39 + $0xb90] sm:$0xff]
    %v424 = vld [vmem:[%s39 + $0xb98] sm:$0xff]
    %v425 = vld [vmem:[%s39 + $0xba0] sm:$0xff]
    %v426 = vld [vmem:[%s39 + $0xba8] sm:$0xff]
    %v427 = vld [vmem:[%s39 + $0xbb0] sm:$0xff]
    %v428 = vld [vmem:[%s39 + $0xbb8] sm:$0xff]
    %v429 = vld [vmem:[%s39 + $0xbc0] sm:$0xff]
    %v430 = vld [vmem:[%s39 + $0xbc8] sm:$0xff]
    %v431 = vld [vmem:[%s39 + $0xbd0] sm:$0xff]
    %v432 = vld [vmem:[%s39 + $0xbd8] sm:$0xff]
    %v433 = vld [vmem:[%s39 + $0xbe0] sm:$0xff]
    %v434 = vld [vmem:[%s39 + $0xbe8] sm:$0xff]
    %v435 = vld [vmem:[%s39 + $0xbf0] sm:$0xff]
    %v436 = vld [vmem:[%s39 + $0xbf8] sm:$0xff]
    %v437 = vld [vmem:[%s39 + $0xc00] sm:$0xff]
    %v438 = vld [vmem:[%s39 + $0xc08] sm:$0xff]
    %v439 = vld [vmem:[%s39 + $0xc10] sm:$0xff]
    %v440 = vld [vmem:[%s39 + $0xc18] sm:$0xff]
    %v441 = vld [vmem:[%s39 + $0xc20] sm:$0xff]
    %v442 = vld [vmem:[%s39 + $0xc28] sm:$0xff]
    %v443 = vmax.f32 %v53, 0.0
    %v444 = vmax.f32 %v54, 0.0
    %v445 = vmax.f32 %v55, 0.0
    %v446 = vmax.f32 %v56, 0.0
    %v447 = vmax.f32 %v57, 0.0
    %v448 = vmax.f32 %v58, 0.0
    %v449 = vmax.f32 %v59, 0.0
    %v450 = vmax.f32 %v60, 0.0
    %v451 = vmax.f32 %v61, 0.0
    %v452 = vmax.f32 %v62, 0.0
    %v453 = vmax.f32 %v63, 0.0
    %v454 = vmax.f32 %v64, 0.0
    %v455 = vmax.f32 %v65, 0.0
    %v456 = vmax.f32 %v66, 0.0
    %v457 = vmax.f32 %v67, 0.0
    %v458 = vmax.f32 %v68, 0.0
    %v459 = vmax.f32 %v69, 0.0
    %v460 = vmax.f32 %v70, 0.0
    %v461 = vmax.f32 %v71, 0.0
    %v462 = vmax.f32 %v72, 0.0
    %v463 = vmax.f32 %v73, 0.0
    %v464 = vmax.f32 %v74, 0.0
    %v465 = vmax.f32 %v75, 0.0
    %v466 = vmax.f32 %v76, 0.0
    %v467 = vmax.f32 %v77, 0.0
    %v468 = vmax.f32 %v78, 0.0
    %v469 = vmax.f32 %v79, 0.0
    %v470 = vmax.f32 %v80, 0.0
    %v471 = vmax.f32 %v81, 0.0
    %v472 = vmax.f32 %v82, 0.0
    %v473 = vmax.f32 %v83, 0.0
    %v474 = vmax.f32 %v84, 0.0
    %v475 = vmax.f32 %v85, 0.0
    %v476 = vmax.f32 %v86, 0.0
    %v477 = vmax.f32 %v87, 0.0
    %v478 = vmax.f32 %v88, 0.0
    %v479 = vmax.f32 %v89, 0.0
    %v480 = vmax.f32 %v90, 0.0
    %v481 = vmax.f32 %v91, 0.0
    %v482 = vmax.f32 %v92, 0.0
    %v483 = vmax.f32 %v93, 0.0
    %v484 = vmax.f32 %v94, 0.0
    %v485 = vmax.f32 %v95, 0.0
    %v486 = vmax.f32 %v96, 0.0
    %v487 = vmax.f32 %v97, 0.0
    %v488 = vmax.f32 %v98, 0.0
    %v489 = vmax.f32 %v99, 0.0
    %v490 = vmax.f32 %v100, 0.0
    %v491 = vmax.f32 %v101, 0.0
    %v492 = vmax.f32 %v102, 0.0
    %v493 = vmax.f32 %v103, 0.0
    %v494 = vmax.f32 %v104, 0.0
    %v495 = vmax.f32 %v105, 0.0
    %v496 = vmax.f32 %v106, 0.0
    %v497 = vmax.f32 %v107, 0.0
    %v498 = vmax.f32 %v108, 0.0
    %v499 = vmax.f32 %v109, 0.0
    %v500 = vmax.f32 %v110, 0.0
    %v501 = vmax.f32 %v111, 0.0
    %v502 = vmax.f32 %v112, 0.0
    %v503 = vmax.f32 %v113, 0.0
    %v504 = vmax.f32 %v114, 0.0
    %v505 = vmax.f32 %v115, 0.0
    %v506 = vmax.f32 %v116, 0.0
    %v507 = vmax.f32 %v117, 0.0
    %v508 = vmax.f32 %v118, 0.0
    %v509 = vmax.f32 %v119, 0.0
    %v510 = vmax.f32 %v120, 0.0
    %v511 = vmax.f32 %v121, 0.0
    %v512 = vmax.f32 %v122, 0.0
    %v513 = vmax.f32 %v123, 0.0
    %v514 = vmax.f32 %v124, 0.0
    %v515 = vmax.f32 %v125, 0.0
    %v516 = vmax.f32 %v126, 0.0
    %v517 = vmax.f32 %v127, 0.0
    %v518 = vmax.f32 %v128, 0.0
    %v519 = vmax.f32 %v129, 0.0
    %v520 = vmax.f32 %v130, 0.0
    %v521 = vmax.f32 %v131, 0.0
    %v522 = vmax.f32 %v132, 0.0
    %v523 = vmax.f32 %v133, 0.0
    %v524 = vmax.f32 %v134, 0.0
    %v525 = vmax.f32 %v135, 0.0
    %v526 = vmax.f32 %v136, 0.0
    %v527 = vmax.f32 %v137, 0.0
    %v528 = vmax.f32 %v138, 0.0
    %v529 = vmax.f32 %v139, 0.0
    %v530 = vmax.f32 %v140, 0.0
    %v531 = vmax.f32 %v141, 0.0
    %v532 = vmax.f32 %v142, 0.0
    %v533 = vmax.f32 %v143, 0.0
    %v534 = vmax.f32 %v144, 0.0
    %v535 = vmax.f32 %v145, 0.0
    %v536 = vmax.f32 %v146, 0.0
    %v537 = vmax.f32 %v147, 0.0
    %v538 = vmax.f32 %v148, 0.0
    %v539 = vmax.f32 %v149, 0.0
    %v540 = vmax.f32 %v150, 0.0
    %v541 = vmax.f32 %v151, 0.0
    %v542 = vmax.f32 %v152, 0.0
    %v543 = vmax.f32 %v153, 0.0
    %v544 = vmax.f32 %v154, 0.0
    %v545 = vmax.f32 %v155, 0.0
    %v546 = vmax.f32 %v156, 0.0
    %v547 = vmax.f32 %v157, 0.0
    %v548 = vmax.f32 %v158, 0.0
    %v549 = vmax.f32 %v159, 0.0
    %v550 = vmax.f32 %v160, 0.0
    %v551 = vmax.f32 %v161, 0.0
    %v552 = vmax.f32 %v162, 0.0
    %v553 = vmax.f32 %v163, 0.0
    %v554 = vmax.f32 %v164, 0.0
    %v555 = vmax.f32 %v165, 0.0
    %v556 = vmax.f32 %v166, 0.0
    %v557 = vmax.f32 %v167, 0.0
    %v558 = vmax.f32 %v168, 0.0
    %v559 = vmax.f32 %v169, 0.0
    %v560 = vmax.f32 %v170, 0.0
    %v561 = vmax.f32 %v171, 0.0
    %v562 = vmax.f32 %v172, 0.0
    %v563 = vmax.f32 %v173, 0.0
    %v564 = vmax.f32 %v174, 0.0
    %v565 = vmax.f32 %v175, 0.0
    %v566 = vmax.f32 %v176, 0.0
    %v567 = vmax.f32 %v177, 0.0
    %v568 = vmax.f32 %v178, 0.0
    %v569 = vmax.f32 %v179, 0.0
    %v570 = vmax.f32 %v180, 0.0
    %v571 = vmax.f32 %v181, 0.0
    %v572 = vmax.f32 %v182, 0.0
    %v573 = vmax.f32 %v183, 0.0
    %v574 = vmax.f32 %v184, 0.0
    %v575 = vmax.f32 %v185, 0.0
    %v576 = vmax.f32 %v186, 0.0
    %v577 = vmax.f32 %v187, 0.0
    %v578 = vmax.f32 %v188, 0.0
    %v579 = vmax.f32 %v189, 0.0
    %v580 = vmax.f32 %v190, 0.0
    %v581 = vmax.f32 %v191, 0.0
    %v582 = vmax.f32 %v192, 0.0
    %v583 = vmax.f32 %v193, 0.0
    %v584 = vmax.f32 %v194, 0.0
    %v585 = vmax.f32 %v195, 0.0
    %v586 = vmax.f32 %v196, 0.0
    %v587 = vmax.f32 %v197, 0.0
    %v588 = vmax.f32 %v198, 0.0
    %v589 = vmax.f32 %v199, 0.0
    %v590 = vmax.f32 %v200, 0.0
    %v591 = vmax.f32 %v201, 0.0
    %v592 = vmax.f32 %v202, 0.0
    %v593 = vmax.f32 %v203, 0.0
    %v594 = vmax.f32 %v204, 0.0
    %v595 = vmax.f32 %v205, 0.0
    %v596 = vmax.f32 %v206, 0.0
    %v597 = vmax.f32 %v207, 0.0
    %v598 = vmax.f32 %v208, 0.0
    %v599 = vmax.f32 %v209, 0.0
    %v600 = vmax.f32 %v210, 0.0
    %v601 = vmax.f32 %v211, 0.0
    %v602 = vmax.f32 %v212, 0.0
    %v603 = vmax.f32 %v213, 0.0
    %v604 = vmax.f32 %v214, 0.0
    %v605 = vmax.f32 %v215, 0.0
    %v606 = vmax.f32 %v216, 0.0
    %v607 = vmax.f32 %v217, 0.0
    %v608 = vmax.f32 %v218, 0.0
    %v609 = vmax.f32 %v219, 0.0
    %v610 = vmax.f32 %v220, 0.0
    %v611 = vmax.f32 %v221, 0.0
    %v612 = vmax.f32 %v222, 0.0
    %v613 = vmax.f32 %v223, 0.0
    %v614 = vmax.f32 %v224, 0.0
    %v615 = vmax.f32 %v225, 0.0
    %v616 = vmax.f32 %v226, 0.0
    %v617 = vmax.f32 %v227, 0.0
    %v618 = vmax.f32 %v228, 0.0
    %v619 = vmax.f32 %v229, 0.0
    %v620 = vmax.f32 %v230, 0.0
    %v621 = vmax.f32 %v231, 0.0
    %v622 = vmax.f32 %v232, 0.0
    %v623 = vmax.f32 %v233, 0.0
    %v624 = vmax.f32 %v234, 0.0
    %v625 = vmax.f32 %v235, 0.0
    %v626 = vmax.f32 %v236, 0.0
    %v627 = vmax.f32 %v237, 0.0
    %v628 = vmax.f32 %v238, 0.0
    %v629 = vmax.f32 %v239, 0.0
    %v630 = vmax.f32 %v240, 0.0
    %v631 = vmax.f32 %v241, 0.0
    %v632 = vmax.f32 %v242, 0.0
    %v633 = vmax.f32 %v243, 0.0
    %v634 = vmax.f32 %v244, 0.0
    %v635 = vmax.f32 %v245, 0.0
    %v636 = vmax.f32 %v246, 0.0
    %v637 = vmax.f32 %v247, 0.0
    %v638 = vmax.f32 %v248, 0.0
    %v639 = vmax.f32 %v249, 0.0
    %v640 = vmax.f32 %v250, 0.0
    %v641 = vmax.f32 %v251, 0.0
    %v642 = vmax.f32 %v252, 0.0
    %v643 = vmax.f32 %v253, 0.0
    %v644 = vmax.f32 %v254, 0.0
    %v645 = vmax.f32 %v255, 0.0
    %v646 = vmax.f32 %v256, 0.0
    %v647 = vmax.f32 %v257, 0.0
    %v648 = vmax.f32 %v258, 0.0
    %v649 = vmax.f32 %v259, 0.0
    %v650 = vmax.f32 %v260, 0.0
    %v651 = vmax.f32 %v261, 0.0
    %v652 = vmax.f32 %v262, 0.0
    %v653 = vmax.f32 %v263, 0.0
    %v654 = vmax.f32 %v264, 0.0
    %v655 = vmax.f32 %v265, 0.0
    %v656 = vmax.f32 %v266, 0.0
    %v657 = vmax.f32 %v267, 0.0
    %v658 = vmax.f32 %v268, 0.0
    %v659 = vmax.f32 %v269, 0.0
    %v660 = vmax.f32 %v270, 0.0
    %v661 = vmax.f32 %v271, 0.0
    %v662 = vmax.f32 %v272, 0.0
    %v663 = vmax.f32 %v273, 0.0
    %v664 = vmax.f32 %v274, 0.0
    %v665 = vmax.f32 %v275, 0.0
    %v666 = vmax.f32 %v276, 0.0
    %v667 = vmax.f32 %v277, 0.0
    %v668 = vmax.f32 %v278, 0.0
    %v669 = vmax.f32 %v279, 0.0
    %v670 = vmax.f32 %v280, 0.0
    %v671 = vmax.f32 %v281, 0.0
    %v672 = vmax.f32 %v282, 0.0
    %v673 = vmax.f32 %v283, 0.0
    %v674 = vmax.f32 %v284, 0.0
    %v675 = vmax.f32 %v285, 0.0
    %v676 = vmax.f32 %v286, 0.0
    %v677 = vmax.f32 %v287, 0.0
    %v678 = vmax.f32 %v288, 0.0
    %v679 = vmax.f32 %v289, 0.0
    %v680 = vmax.f32 %v290, 0.0
    %v681 = vmax.f32 %v291, 0.0
    %v682 = vmax.f32 %v292, 0.0
    %v683 = vmax.f32 %v293, 0.0
    %v684 = vmax.f32 %v294, 0.0
    %v685 = vmax.f32 %v295, 0.0
    %v686 = vmax.f32 %v296, 0.0
    %v687 = vmax.f32 %v297, 0.0
    %v688 = vmax.f32 %v298, 0.0
    %v689 = vmax.f32 %v299, 0.0
    %v690 = vmax.f32 %v300, 0.0
    %v691 = vmax.f32 %v301, 0.0
    %v692 = vmax.f32 %v302, 0.0
    %v693 = vmax.f32 %v303, 0.0
    %v694 = vmax.f32 %v304, 0.0
    %v695 = vmax.f32 %v305, 0.0
    %v696 = vmax.f32 %v306, 0.0
    %v697 = vmax.f32 %v307, 0.0
    %v698 = vmax.f32 %v308, 0.0
    %v699 = vmax.f32 %v309, 0.0
    %v700 = vmax.f32 %v310, 0.0
    %v701 = vmax.f32 %v311, 0.0
    %v702 = vmax.f32 %v312, 0.0
    %v703 = vmax.f32 %v313, 0.0
    %v704 = vmax.f32 %v314, 0.0
    %v705 = vmax.f32 %v315, 0.0
    %v706 = vmax.f32 %v316, 0.0
    %v707 = vmax.f32 %v317, 0.0
    %v708 = vmax.f32 %v318, 0.0
    %v709 = vmax.f32 %v319, 0.0
    %v710 = vmax.f32 %v320, 0.0
    %v711 = vmax.f32 %v321, 0.0
    %v712 = vmax.f32 %v322, 0.0
    %v713 = vmax.f32 %v323, 0.0
    %v714 = vmax.f32 %v324, 0.0
    %v715 = vmax.f32 %v325, 0.0
    %v716 = vmax.f32 %v326, 0.0
    %v717 = vmax.f32 %v327, 0.0
    %v718 = vmax.f32 %v328, 0.0
    %v719 = vmax.f32 %v329, 0.0
    %v720 = vmax.f32 %v330, 0.0
    %v721 = vmax.f32 %v331, 0.0
    %v722 = vmax.f32 %v332, 0.0
    %v723 = vmax.f32 %v333, 0.0
    %v724 = vmax.f32 %v334, 0.0
    %v725 = vmax.f32 %v335, 0.0
    %v726 = vmax.f32 %v336, 0.0
    %v727 = vmax.f32 %v337, 0.0
    %v728 = vmax.f32 %v338, 0.0
    %v729 = vmax.f32 %v339, 0.0
    %v730 = vmax.f32 %v340, 0.0
    %v731 = vmax.f32 %v341, 0.0
    %v732 = vmax.f32 %v342, 0.0
    %v733 = vmax.f32 %v343, 0.0
    %v734 = vmax.f32 %v344, 0.0
    %v735 = vmax.f32 %v345, 0.0
    %v736 = vmax.f32 %v346, 0.0
    %v737 = vmax.f32 %v347, 0.0
    %v738 = vmax.f32 %v348, 0.0
    %v739 = vmax.f32 %v349, 0.0
    %v740 = vmax.f32 %v350, 0.0
    %v741 = vmax.f32 %v351, 0.0
    %v742 = vmax.f32 %v352, 0.0
    %v743 = vmax.f32 %v353, 0.0
    %v744 = vmax.f32 %v354, 0.0
    %v745 = vmax.f32 %v355, 0.0
    %v746 = vmax.f32 %v356, 0.0
    %v747 = vmax.f32 %v357, 0.0
    %v748 = vmax.f32 %v358, 0.0
    %v749 = vmax.f32 %v359, 0.0
    %v750 = vmax.f32 %v360, 0.0
    %v751 = vmax.f32 %v361, 0.0
    %v752 = vmax.f32 %v362, 0.0
    %v753 = vmax.f32 %v363, 0.0
    %v754 = vmax.f32 %v364, 0.0
    %v755 = vmax.f32 %v365, 0.0
    %v756 = vmax.f32 %v366, 0.0
    %v757 = vmax.f32 %v367, 0.0
    %v758 = vmax.f32 %v368, 0.0
    %v759 = vmax.f32 %v369, 0.0
    %v760 = vmax.f32 %v370, 0.0
    %v761 = vmax.f32 %v371, 0.0
    %v762 = vmax.f32 %v372, 0.0
    %v763 = vmax.f32 %v373, 0.0
    %v764 = vmax.f32 %v374, 0.0
    %v765 = vmax.f32 %v375, 0.0
    %v766 = vmax.f32 %v376, 0.0
    %v767 = vmax.f32 %v377, 0.0
    %v768 = vmax.f32 %v378, 0.0
    %v769 = vmax.f32 %v379, 0.0
    %v770 = vmax.f32 %v380, 0.0
    %v771 = vmax.f32 %v381, 0.0
    %v772 = vmax.f32 %v382, 0.0
    %v773 = vmax.f32 %v383, 0.0
    %v774 = vmax.f32 %v384, 0.0
    %v775 = vmax.f32 %v385, 0.0
    %v776 = vmax.f32 %v386, 0.0
    %v777 = vmax.f32 %v387, 0.0
    %v778 = vmax.f32 %v388, 0.0
    %v779 = vmax.f32 %v389, 0.0
    %v780 = vmax.f32 %v390, 0.0
    %v781 = vmax.f32 %v391, 0.0
    %v782 = vmax.f32 %v392, 0.0
    %v783 = vmax.f32 %v393, 0.0
    %v784 = vmax.f32 %v394, 0.0
    %v785 = vmax.f32 %v395, 0.0
    %v786 = vmax.f32 %v396, 0.0
    %v787 = vmax.f32 %v397, 0.0
    %v788 = vmax.f32 %v398, 0.0
    %v789 = vmax.f32 %v399, 0.0
    %v790 = vmax.f32 %v400, 0.0
    %v791 = vmax.f32 %v401, 0.0
    %v792 = vmax.f32 %v402, 0.0
    %v793 = vmax.f32 %v403, 0.0
    %v794 = vmax.f32 %v404, 0.0
    %v795 = vmax.f32 %v405, 0.0
    %v796 = vmax.f32 %v406, 0.0
    %v797 = vmax.f32 %v407, 0.0
    %v798 = vmax.f32 %v408, 0.0
    %v799 = vmax.f32 %v409, 0.0
    %v800 = vmax.f32 %v410, 0.0
    %v801 = vmax.f32 %v411, 0.0
    %v802 = vmax.f32 %v412, 0.0
    %v803 = vmax.f32 %v413, 0.0
    %v804 = vmax.f32 %v414, 0.0
    %v805 = vmax.f32 %v415, 0.0
    %v806 = vmax.f32 %v416, 0.0
    %v807 = vmax.f32 %v417, 0.0
    %v808 = vmax.f32 %v418, 0.0
    %v809 = vmax.f32 %v419, 0.0
    %v810 = vmax.f32 %v420, 0.0
    %v811 = vmax.f32 %v421, 0.0
    %v812 = vmax.f32 %v422, 0.0
    %v813 = vmax.f32 %v423, 0.0
    %v814 = vmax.f32 %v424, 0.0
    %v815 = vmax.f32 %v425, 0.0
    %v816 = vmax.f32 %v426, 0.0
    %v817 = vmax.f32 %v427, 0.0
    %v818 = vmax.f32 %v428, 0.0
    %v819 = vmax.f32 %v429, 0.0
    %v820 = vmax.f32 %v430, 0.0
    %v821 = vmax.f32 %v431, 0.0
    %v822 = vmax.f32 %v432, 0.0
    %v823 = vmax.f32 %v433, 0.0
    %v824 = vmax.f32 %v434, 0.0
    %v825 = vmax.f32 %v435, 0.0
    %v826 = vmax.f32 %v436, 0.0
    %v827 = vmax.f32 %v437, 0.0
    %v828 = vmax.f32 %v438, 0.0
    %v829 = vmax.f32 %v439, 0.0
    %v830 = vmax.f32 %v440, 0.0
    %v831 = vmax.f32 %v441, 0.0
    %v832 = vmax.f32 %v442, 0.0
    %v833 = vand.u32 2147483647, %v53
    %v834 = vand.u32 2147483647, %v54
    %v835 = vand.u32 2147483647, %v55
    %v836 = vand.u32 2147483647, %v56
    %v837 = vand.u32 2147483647, %v57
    %v838 = vand.u32 2147483647, %v58
    %v839 = vand.u32 2147483647, %v59
    %v840 = vand.u32 2147483647, %v60
    %v841 = vand.u32 2147483647, %v61
    %v842 = vand.u32 2147483647, %v62
    %v843 = vand.u32 2147483647, %v63
    %v844 = vand.u32 2147483647, %v64
    %v845 = vand.u32 2147483647, %v65
    %v846 = vand.u32 2147483647, %v66
    %v847 = vand.u32 2147483647, %v67
    %v848 = vand.u32 2147483647, %v68
    %v849 = vand.u32 2147483647, %v69
    %v850 = vand.u32 2147483647, %v70
    %v851 = vand.u32 2147483647, %v71
    %v852 = vand.u32 2147483647, %v72
    %v853 = vand.u32 2147483647, %v73
    %v854 = vand.u32 2147483647, %v74
    %v855 = vand.u32 2147483647, %v75
    %v856 = vand.u32 2147483647, %v76
    %v857 = vand.u32 2147483647, %v77
    %v858 = vand.u32 2147483647, %v78
    %v859 = vand.u32 2147483647, %v79
    %v860 = vand.u32 2147483647, %v80
    %v861 = vand.u32 2147483647, %v81
    %v862 = vand.u32 2147483647, %v82
    %v863 = vand.u32 2147483647, %v83
    %v864 = vand.u32 2147483647, %v84
    %v865 = vand.u32 2147483647, %v85
    %v866 = vand.u32 2147483647, %v86
    %v867 = vand.u32 2147483647, %v87
    %v868 = vand.u32 2147483647, %v88
    %v869 = vand.u32 2147483647, %v89
    %v870 = vand.u32 2147483647, %v90
    %v871 = vand.u32 2147483647, %v91
    %v872 = vand.u32 2147483647, %v92
    %v873 = vand.u32 2147483647, %v93
    %v874 = vand.u32 2147483647, %v94
    %v875 = vand.u32 2147483647, %v95
    %v876 = vand.u32 2147483647, %v96
    %v877 = vand.u32 2147483647, %v97
    %v878 = vand.u32 2147483647, %v98
    %v879 = vand.u32 2147483647, %v99
    %v880 = vand.u32 2147483647, %v100
    %v881 = vand.u32 2147483647, %v101
    %v882 = vand.u32 2147483647, %v102
    %v883 = vand.u32 2147483647, %v103
    %v884 = vand.u32 2147483647, %v104
    %v885 = vand.u32 2147483647, %v105
    %v886 = vand.u32 2147483647, %v106
    %v887 = vand.u32 2147483647, %v107
    %v888 = vand.u32 2147483647, %v108
    %v889 = vand.u32 2147483647, %v109
    %v890 = vand.u32 2147483647, %v110
    %v891 = vand.u32 2147483647, %v111
    %v892 = vand.u32 2147483647, %v112
    %v893 = vand.u32 2147483647, %v113
    %v894 = vand.u32 2147483647, %v114
    %v895 = vand.u32 2147483647, %v115
    %v896 = vand.u32 2147483647, %v116
    %v897 = vand.u32 2147483647, %v117
    %v898 = vand.u32 2147483647, %v118
    %v899 = vand.u32 2147483647, %v119
    %v900 = vand.u32 2147483647, %v120
    %v901 = vand.u32 2147483647, %v121
    %v902 = vand.u32 2147483647, %v122
    %v903 = vand.u32 2147483647, %v123
    %v904 = vand.u32 2147483647, %v124
    %v905 = vand.u32 2147483647, %v125
    %v906 = vand.u32 2147483647, %v126
    %v907 = vand.u32 2147483647, %v127
    %v908 = vand.u32 2147483647, %v128
    %v909 = vand.u32 2147483647, %v129
    %v910 = vand.u32 2147483647, %v130
    %v911 = vand.u32 2147483647, %v131
    %v912 = vand.u32 2147483647, %v132
    %v913 = vand.u32 2147483647, %v133
    %v914 = vand.u32 2147483647, %v134
    %v915 = vand.u32 2147483647, %v135
    %v916 = vand.u32 2147483647, %v136
    %v917 = vand.u32 2147483647, %v137
    %v918 = vand.u32 2147483647, %v138
    %v919 = vand.u32 2147483647, %v139
    %v920 = vand.u32 2147483647, %v140
    %v921 = vand.u32 2147483647, %v141
    %v922 = vand.u32 2147483647, %v142
    %v923 = vand.u32 2147483647, %v143
    %v924 = vand.u32 2147483647, %v144
    %v925 = vand.u32 2147483647, %v145
    %v926 = vand.u32 2147483647, %v146
    %v927 = vand.u32 2147483647, %v147
    %v928 = vand.u32 2147483647, %v148
    %v929 = vand.u32 2147483647, %v149
    %v930 = vand.u32 2147483647, %v150
    %v931 = vand.u32 2147483647, %v151
    %v932 = vand.u32 2147483647, %v152
    %v933 = vand.u32 2147483647, %v153
    %v934 = vand.u32 2147483647, %v154
    %v935 = vand.u32 2147483647, %v155
    %v936 = vand.u32 2147483647, %v156
    %v937 = vand.u32 2147483647, %v157
    %v938 = vand.u32 2147483647, %v158
    %v939 = vand.u32 2147483647, %v159
    %v940 = vand.u32 2147483647, %v160
    %v941 = vand.u32 2147483647, %v161
    %v942 = vand.u32 2147483647, %v162
    %v943 = vand.u32 2147483647, %v163
    %v944 = vand.u32 2147483647, %v164
    %v945 = vand.u32 2147483647, %v165
    %v946 = vand.u32 2147483647, %v166
    %v947 = vand.u32 2147483647, %v167
    %v948 = vand.u32 2147483647, %v168
    %v949 = vand.u32 2147483647, %v169
    %v950 = vand.u32 2147483647, %v170
    %v951 = vand.u32 2147483647, %v171
    %v952 = vand.u32 2147483647, %v172
    %v953 = vand.u32 2147483647, %v173
    %v954 = vand.u32 2147483647, %v174
    %v955 = vand.u32 2147483647, %v175
    %v956 = vand.u32 2147483647, %v176
    %v957 = vand.u32 2147483647, %v177
    %v958 = vand.u32 2147483647, %v178
    %v959 = vand.u32 2147483647, %v179
    %v960 = vand.u32 2147483647, %v180
    %v961 = vand.u32 2147483647, %v181
    %v962 = vand.u32 2147483647, %v182
    %v963 = vand.u32 2147483647, %v183
    %v964 = vand.u32 2147483647, %v184
    %v965 = vand.u32 2147483647, %v185
    %v966 = vand.u32 2147483647, %v186
    %v967 = vand.u32 2147483647, %v187
    %v968 = vand.u32 2147483647, %v188
    %v969 = vand.u32 2147483647, %v189
    %v970 = vand.u32 2147483647, %v190
    %v971 = vand.u32 2147483647, %v191
    %v972 = vand.u32 2147483647, %v192
    %v973 = vand.u32 2147483647, %v193
    %v974 = vand.u32 2147483647, %v194
    %v975 = vand.u32 2147483647, %v195
    %v976 = vand.u32 2147483647, %v196
    %v977 = vand.u32 2147483647, %v197
    %v978 = vand.u32 2147483647, %v198
    %v979 = vand.u32 2147483647, %v199
    %v980 = vand.u32 2147483647, %v200
    %v981 = vand.u32 2147483647, %v201
    %v982 = vand.u32 2147483647, %v202
    %v983 = vand.u32 2147483647, %v203
    %v984 = vand.u32 2147483647, %v204
    %v985 = vand.u32 2147483647, %v205
    %v986 = vand.u32 2147483647, %v206
    %v987 = vand.u32 2147483647, %v207
    %v988 = vand.u32 2147483647, %v208
    %v989 = vand.u32 2147483647, %v209
    %v990 = vand.u32 2147483647, %v210
    %v991 = vand.u32 2147483647, %v211
    %v992 = vand.u32 2147483647, %v212
    %v993 = vand.u32 2147483647, %v213
    %v994 = vand.u32 2147483647, %v214
    %v995 = vand.u32 2147483647, %v215
    %v996 = vand.u32 2147483647, %v216
    %v997 = vand.u32 2147483647, %v217
    %v998 = vand.u32 2147483647, %v218
    %v999 = vand.u32 2147483647, %v219
    %v1000 = vand.u32 2147483647, %v220
    %v1001 = vand.u32 2147483647, %v221
    %v1002 = vand.u32 2147483647, %v222
    %v1003 = vand.u32 2147483647, %v223
    %v1004 = vand.u32 2147483647, %v224
    %v1005 = vand.u32 2147483647, %v225
    %v1006 = vand.u32 2147483647, %v226
    %v1007 = vand.u32 2147483647, %v227
    %v1008 = vand.u32 2147483647, %v228
    %v1009 = vand.u32 2147483647, %v229
    %v1010 = vand.u32 2147483647, %v230
    %v1011 = vand.u32 2147483647, %v231
    %v1012 = vand.u32 2147483647, %v232
    %v1013 = vand.u32 2147483647, %v233
    %v1014 = vand.u32 2147483647, %v234
    %v1015 = vand.u32 2147483647, %v235
    %v1016 = vand.u32 2147483647, %v236
    %v1017 = vand.u32 2147483647, %v237
    %v1018 = vand.u32 2147483647, %v238
    %v1019 = vand.u32 2147483647, %v239
    %v1020 = vand.u32 2147483647, %v240
    %v1021 = vand.u32 2147483647, %v241
    %v1022 = vand.u32 2147483647, %v242
    %v1023 = vand.u32 2147483647, %v243
    %v1024 = vand.u32 2147483647, %v244
    %v1025 = vand.u32 2147483647, %v245
    %v1026 = vand.u32 2147483647, %v246
    %v1027 = vand.u32 2147483647, %v247
    %v1028 = vand.u32 2147483647, %v248
    %v1029 = vand.u32 2147483647, %v249
    %v1030 = vand.u32 2147483647, %v250
    %v1031 = vand.u32 2147483647, %v251
    %v1032 = vand.u32 2147483647, %v252
    %v1033 = vand.u32 2147483647, %v253
    %v1034 = vand.u32 2147483647, %v254
    %v1035 = vand.u32 2147483647, %v255
    %v1036 = vand.u32 2147483647, %v256
    %v1037 = vand.u32 2147483647, %v257
    %v1038 = vand.u32 2147483647, %v258
    %v1039 = vand.u32 2147483647, %v259
    %v1040 = vand.u32 2147483647, %v260
    %v1041 = vand.u32 2147483647, %v261
    %v1042 = vand.u32 2147483647, %v262
    %v1043 = vand.u32 2147483647, %v263
    %v1044 = vand.u32 2147483647, %v264
    %v1045 = vand.u32 2147483647, %v265
    %v1046 = vand.u32 2147483647, %v266
    %v1047 = vand.u32 2147483647, %v267
    %v1048 = vand.u32 2147483647, %v268
    %v1049 = vand.u32 2147483647, %v269
    %v1050 = vand.u32 2147483647, %v270
    %v1051 = vand.u32 2147483647, %v271
    %v1052 = vand.u32 2147483647, %v272
    %v1053 = vand.u32 2147483647, %v273
    %v1054 = vand.u32 2147483647, %v274
    %v1055 = vand.u32 2147483647, %v275
    %v1056 = vand.u32 2147483647, %v276
    %v1057 = vand.u32 2147483647, %v277
    %v1058 = vand.u32 2147483647, %v278
    %v1059 = vand.u32 2147483647, %v279
    %v1060 = vand.u32 2147483647, %v280
    %v1061 = vand.u32 2147483647, %v281
    %v1062 = vand.u32 2147483647, %v282
    %v1063 = vand.u32 2147483647, %v283
    %v1064 = vand.u32 2147483647, %v284
    %v1065 = vand.u32 2147483647, %v285
    %v1066 = vand.u32 2147483647, %v286
    %v1067 = vand.u32 2147483647, %v287
    %v1068 = vand.u32 2147483647, %v288
    %v1069 = vand.u32 2147483647, %v289
    %v1070 = vand.u32 2147483647, %v290
    %v1071 = vand.u32 2147483647, %v291
    %v1072 = vand.u32 2147483647, %v292
    %v1073 = vand.u32 2147483647, %v293
    %v1074 = vand.u32 2147483647, %v294
    %v1075 = vand.u32 2147483647, %v295
    %v1076 = vand.u32 2147483647, %v296
    %v1077 = vand.u32 2147483647, %v297
    %v1078 = vand.u32 2147483647, %v298
    %v1079 = vand.u32 2147483647, %v299
    %v1080 = vand.u32 2147483647, %v300
    %v1081 = vand.u32 2147483647, %v301
    %v1082 = vand.u32 2147483647, %v302
    %v1083 = vand.u32 2147483647, %v303
    %v1084 = vand.u32 2147483647, %v304
    %v1085 = vand.u32 2147483647, %v305
    %v1086 = vand.u32 2147483647, %v306
    %v1087 = vand.u32 2147483647, %v307
    %v1088 = vand.u32 2147483647, %v308
    %v1089 = vand.u32 2147483647, %v309
    %v1090 = vand.u32 2147483647, %v310
    %v1091 = vand.u32 2147483647, %v311
    %v1092 = vand.u32 2147483647, %v312
    %v1093 = vand.u32 2147483647, %v313
    %v1094 = vand.u32 2147483647, %v314
    %v1095 = vand.u32 2147483647, %v315
    %v1096 = vand.u32 2147483647, %v316
    %v1097 = vand.u32 2147483647, %v317
    %v1098 = vand.u32 2147483647, %v318
    %v1099 = vand.u32 2147483647, %v319
    %v1100 = vand.u32 2147483647, %v320
    %v1101 = vand.u32 2147483647, %v321
    %v1102 = vand.u32 2147483647, %v322
    %v1103 = vand.u32 2147483647, %v323
    %v1104 = vand.u32 2147483647, %v324
    %v1105 = vand.u32 2147483647, %v325
    %v1106 = vand.u32 2147483647, %v326
    %v1107 = vand.u32 2147483647, %v327
    %v1108 = vand.u32 2147483647, %v328
    %v1109 = vand.u32 2147483647, %v329
    %v1110 = vand.u32 2147483647, %v330
    %v1111 = vand.u32 2147483647, %v331
    %v1112 = vand.u32 2147483647, %v332
    %v1113 = vand.u32 2147483647, %v333
    %v1114 = vand.u32 2147483647, %v334
    %v1115 = vand.u32 2147483647, %v335
    %v1116 = vand.u32 2147483647, %v336
    %v1117 = vand.u32 2147483647, %v337
    %v1118 = vand.u32 2147483647, %v338
    %v1119 = vand.u32 2147483647, %v339
    %v1120 = vand.u32 2147483647, %v340
    %v1121 = vand.u32 2147483647, %v341
    %v1122 = vand.u32 2147483647, %v342
    %v1123 = vand.u32 2147483647, %v343
    %v1124 = vand.u32 2147483647, %v344
    %v1125 = vand.u32 2147483647, %v345
    %v1126 = vand.u32 2147483647, %v346
    %v1127 = vand.u32 2147483647, %v347
    %v1128 = vand.u32 2147483647, %v348
    %v1129 = vand.u32 2147483647, %v349
    %v1130 = vand.u32 2147483647, %v350
    %v1131 = vand.u32 2147483647, %v351
    %v1132 = vand.u32 2147483647, %v352
    %v1133 = vand.u32 2147483647, %v353
    %v1134 = vand.u32 2147483647, %v354
    %v1135 = vand.u32 2147483647, %v355
    %v1136 = vand.u32 2147483647, %v356
    %v1137 = vand.u32 2147483647, %v357
    %v1138 = vand.u32 2147483647, %v358
    %v1139 = vand.u32 2147483647, %v359
    %v1140 = vand.u32 2147483647, %v360
    %v1141 = vand.u32 2147483647, %v361
    %v1142 = vand.u32 2147483647, %v362
    %v1143 = vand.u32 2147483647, %v363
    %v1144 = vand.u32 2147483647, %v364
    %v1145 = vand.u32 2147483647, %v365
    %v1146 = vand.u32 2147483647, %v366
    %v1147 = vand.u32 2147483647, %v367
    %v1148 = vand.u32 2147483647, %v368
    %v1149 = vand.u32 2147483647, %v369
    %v1150 = vand.u32 2147483647, %v370
    %v1151 = vand.u32 2147483647, %v371
    %v1152 = vand.u32 2147483647, %v372
    %v1153 = vand.u32 2147483647, %v373
    %v1154 = vand.u32 2147483647, %v374
    %v1155 = vand.u32 2147483647, %v375
    %v1156 = vand.u32 2147483647, %v376
    %v1157 = vand.u32 2147483647, %v377
    %v1158 = vand.u32 2147483647, %v378
    %v1159 = vand.u32 2147483647, %v379
    %v1160 = vand.u32 2147483647, %v380
    %v1161 = vand.u32 2147483647, %v381
    %v1162 = vand.u32 2147483647, %v382
    %v1163 = vand.u32 2147483647, %v383
    %v1164 = vand.u32 2147483647, %v384
    %v1165 = vand.u32 2147483647, %v385
    %v1166 = vand.u32 2147483647, %v386
    %v1167 = vand.u32 2147483647, %v387
    %v1168 = vand.u32 2147483647, %v388
    %v1169 = vand.u32 2147483647, %v389
    %v1170 = vand.u32 2147483647, %v390
    %v1171 = vand.u32 2147483647, %v391
    %v1172 = vand.u32 2147483647, %v392
    %v1173 = vand.u32 2147483647, %v393
    %v1174 = vand.u32 2147483647, %v394
    %v1175 = vand.u32 2147483647, %v395
    %v1176 = vand.u32 2147483647, %v396
    %v1177 = vand.u32 2147483647, %v397
    %v1178 = vand.u32 2147483647, %v398
    %v1179 = vand.u32 2147483647, %v399
    %v1180 = vand.u32 2147483647, %v400
    %v1181 = vand.u32 2147483647, %v401
    %v1182 = vand.u32 2147483647, %v402
    %v1183 = vand.u32 2147483647, %v403
    %v1184 = vand.u32 2147483647, %v404
    %v1185 = vand.u32 2147483647, %v405
    %v1186 = vand.u32 2147483647, %v406
    %v1187 = vand.u32 2147483647, %v407
    %v1188 = vand.u32 2147483647, %v408
    %v1189 = vand.u32 2147483647, %v409
    %v1190 = vand.u32 2147483647, %v410
    %v1191 = vand.u32 2147483647, %v411
    %v1192 = vand.u32 2147483647, %v412
    %v1193 = vand.u32 2147483647, %v413
    %v1194 = vand.u32 2147483647, %v414
    %v1195 = vand.u32 2147483647, %v415
    %v1196 = vand.u32 2147483647, %v416
    %v1197 = vand.u32 2147483647, %v417
    %v1198 = vand.u32 2147483647, %v418
    %v1199 = vand.u32 2147483647, %v419
    %v1200 = vand.u32 2147483647, %v420
    %v1201 = vand.u32 2147483647, %v421
    %v1202 = vand.u32 2147483647, %v422
    %v1203 = vand.u32 2147483647, %v423
    %v1204 = vand.u32 2147483647, %v424
    %v1205 = vand.u32 2147483647, %v425
    %v1206 = vand.u32 2147483647, %v426
    %v1207 = vand.u32 2147483647, %v427
    %v1208 = vand.u32 2147483647, %v428
    %v1209 = vand.u32 2147483647, %v429
    %v1210 = vand.u32 2147483647, %v430
    %v1211 = vand.u32 2147483647, %v431
    %v1212 = vand.u32 2147483647, %v432
    %v1213 = vand.u32 2147483647, %v433
    %v1214 = vand.u32 2147483647, %v434
    %v1215 = vand.u32 2147483647, %v435
    %v1216 = vand.u32 2147483647, %v436
    %v1217 = vand.u32 2147483647, %v437
    %v1218 = vand.u32 2147483647, %v438
    %v1219 = vand.u32 2147483647, %v439
    %v1220 = vand.u32 2147483647, %v440
    %v1221 = vand.u32 2147483647, %v441
    %v1222 = vand.u32 2147483647, %v442
    %v1223 = vsub.f32 0.0, %v833
    %v1224 = vsub.f32 0.0, %v834
    %v1225 = vsub.f32 0.0, %v835
    %v1226 = vsub.f32 0.0, %v836
    %v1227 = vsub.f32 0.0, %v837
    %v1228 = vsub.f32 0.0, %v838
    %v1229 = vsub.f32 0.0, %v839
    %v1230 = vsub.f32 0.0, %v840
    %v1231 = vsub.f32 0.0, %v841
    %v1232 = vsub.f32 0.0, %v842
    %v1233 = vsub.f32 0.0, %v843
    %v1234 = vsub.f32 0.0, %v844
    %v1235 = vsub.f32 0.0, %v845
    %v1236 = vsub.f32 0.0, %v846
    %v1237 = vsub.f32 0.0, %v847
    %v1238 = vsub.f32 0.0, %v848
    %v1239 = vsub.f32 0.0, %v849
    %v1240 = vsub.f32 0.0, %v850
    %v1241 = vsub.f32 0.0, %v851
    %v1242 = vsub.f32 0.0, %v852
    %v1243 = vsub.f32 0.0, %v853
    %v1244 = vsub.f32 0.0, %v854
    %v1245 = vsub.f32 0.0, %v855
    %v1246 = vsub.f32 0.0, %v856
    %v1247 = vsub.f32 0.0, %v857
    %v1248 = vsub.f32 0.0, %v858
    %v1249 = vsub.f32 0.0, %v859
    %v1250 = vsub.f32 0.0, %v860
    %v1251 = vsub.f32 0.0, %v861
    %v1252 = vsub.f32 0.0, %v862
    %v1253 = vsub.f32 0.0, %v863
    %v1254 = vsub.f32 0.0, %v864
    %v1255 = vsub.f32 0.0, %v865
    %v1256 = vsub.f32 0.0, %v866
    %v1257 = vsub.f32 0.0, %v867
    %v1258 = vsub.f32 0.0, %v868
    %v1259 = vsub.f32 0.0, %v869
    %v1260 = vsub.f32 0.0, %v870
    %v1261 = vsub.f32 0.0, %v871
    %v1262 = vsub.f32 0.0, %v872
    %v1263 = vsub.f32 0.0, %v873
    %v1264 = vsub.f32 0.0, %v874
    %v1265 = vsub.f32 0.0, %v875
    %v1266 = vsub.f32 0.0, %v876
    %v1267 = vsub.f32 0.0, %v877
    %v1268 = vsub.f32 0.0, %v878
    %v1269 = vsub.f32 0.0, %v879
    %v1270 = vsub.f32 0.0, %v880
    %v1271 = vsub.f32 0.0, %v881
    %v1272 = vsub.f32 0.0, %v882
    %v1273 = vsub.f32 0.0, %v883
    %v1274 = vsub.f32 0.0, %v884
    %v1275 = vsub.f32 0.0, %v885
    %v1276 = vsub.f32 0.0, %v886
    %v1277 = vsub.f32 0.0, %v887
    %v1278 = vsub.f32 0.0, %v888
    %v1279 = vsub.f32 0.0, %v889
    %v1280 = vsub.f32 0.0, %v890
    %v1281 = vsub.f32 0.0, %v891
    %v1282 = vsub.f32 0.0, %v892
    %v1283 = vsub.f32 0.0, %v893
    %v1284 = vsub.f32 0.0, %v894
    %v1285 = vsub.f32 0.0, %v895
    %v1286 = vsub.f32 0.0, %v896
    %v1287 = vsub.f32 0.0, %v897
    %v1288 = vsub.f32 0.0, %v898
    %v1289 = vsub.f32 0.0, %v899
    %v1290 = vsub.f32 0.0, %v900
    %v1291 = vsub.f32 0.0, %v901
    %v1292 = vsub.f32 0.0, %v902
    %v1293 = vsub.f32 0.0, %v903
    %v1294 = vsub.f32 0.0, %v904
    %v1295 = vsub.f32 0.0, %v905
    %v1296 = vsub.f32 0.0, %v906
    %v1297 = vsub.f32 0.0, %v907
    %v1298 = vsub.f32 0.0, %v908
    %v1299 = vsub.f32 0.0, %v909
    %v1300 = vsub.f32 0.0, %v910
    %v1301 = vsub.f32 0.0, %v911
    %v1302 = vsub.f32 0.0, %v912
    %v1303 = vsub.f32 0.0, %v913
    %v1304 = vsub.f32 0.0, %v914
    %v1305 = vsub.f32 0.0, %v915
    %v1306 = vsub.f32 0.0, %v916
    %v1307 = vsub.f32 0.0, %v917
    %v1308 = vsub.f32 0.0, %v918
    %v1309 = vsub.f32 0.0, %v919
    %v1310 = vsub.f32 0.0, %v920
    %v1311 = vsub.f32 0.0, %v921
    %v1312 = vsub.f32 0.0, %v922
    %v1313 = vsub.f32 0.0, %v923
    %v1314 = vsub.f32 0.0, %v924
    %v1315 = vsub.f32 0.0, %v925
    %v1316 = vsub.f32 0.0, %v926
    %v1317 = vsub.f32 0.0, %v927
    %v1318 = vsub.f32 0.0, %v928
    %v1319 = vsub.f32 0.0, %v929
    %v1320 = vsub.f32 0.0, %v930
    %v1321 = vsub.f32 0.0, %v931
    %v1322 = vsub.f32 0.0, %v932
    %v1323 = vsub.f32 0.0, %v933
    %v1324 = vsub.f32 0.0, %v934
    %v1325 = vsub.f32 0.0, %v935
    %v1326 = vsub.f32 0.0, %v936
    %v1327 = vsub.f32 0.0, %v937
    %v1328 = vsub.f32 0.0, %v938
    %v1329 = vsub.f32 0.0, %v939
    %v1330 = vsub.f32 0.0, %v940
    %v1331 = vsub.f32 0.0, %v941
    %v1332 = vsub.f32 0.0, %v942
    %v1333 = vsub.f32 0.0, %v943
    %v1334 = vsub.f32 0.0, %v944
    %v1335 = vsub.f32 0.0, %v945
    %v1336 = vsub.f32 0.0, %v946
    %v1337 = vsub.f32 0.0, %v947
    %v1338 = vsub.f32 0.0, %v948
    %v1339 = vsub.f32 0.0, %v949
    %v1340 = vsub.f32 0.0, %v950
    %v1341 = vsub.f32 0.0, %v951
    %v1342 = vsub.f32 0.0, %v952
    %v1343 = vsub.f32 0.0, %v953
    %v1344 = vsub.f32 0.0, %v954
    %v1345 = vsub.f32 0.0, %v955
    %v1346 = vsub.f32 0.0, %v956
    %v1347 = vsub.f32 0.0, %v957
    %v1348 = vsub.f32 0.0, %v958
    %v1349 = vsub.f32 0.0, %v959
    %v1350 = vsub.f32 0.0, %v960
    %v1351 = vsub.f32 0.0, %v961
    %v1352 = vsub.f32 0.0, %v962
    %v1353 = vsub.f32 0.0, %v963
    %v1354 = vsub.f32 0.0, %v964
    %v1355 = vsub.f32 0.0, %v965
    %v1356 = vsub.f32 0.0, %v966
    %v1357 = vsub.f32 0.0, %v967
    %v1358 = vsub.f32 0.0, %v968
    %v1359 = vsub.f32 0.0, %v969
    %v1360 = vsub.f32 0.0, %v970
    %v1361 = vsub.f32 0.0, %v971
    %v1362 = vsub.f32 0.0, %v972
    %v1363 = vsub.f32 0.0, %v973
    %v1364 = vsub.f32 0.0, %v974
    %v1365 = vsub.f32 0.0, %v975
    %v1366 = vsub.f32 0.0, %v976
    %v1367 = vsub.f32 0.0, %v977
    %v1368 = vsub.f32 0.0, %v978
    %v1369 = vsub.f32 0.0, %v979
    %v1370 = vsub.f32 0.0, %v980
    %v1371 = vsub.f32 0.0, %v981
    %v1372 = vsub.f32 0.0, %v982
    %v1373 = vsub.f32 0.0, %v983
    %v1374 = vsub.f32 0.0, %v984
    %v1375 = vsub.f32 0.0, %v985
    %v1376 = vsub.f32 0.0, %v986
    %v1377 = vsub.f32 0.0, %v987
    %v1378 = vsub.f32 0.0, %v988
    %v1379 = vsub.f32 0.0, %v989
    %v1380 = vsub.f32 0.0, %v990
    %v1381 = vsub.f32 0.0, %v991
    %v1382 = vsub.f32 0.0, %v992
    %v1383 = vsub.f32 0.0, %v993
    %v1384 = vsub.f32 0.0, %v994
    %v1385 = vsub.f32 0.0, %v995
    %v1386 = vsub.f32 0.0, %v996
    %v1387 = vsub.f32 0.0, %v997
    %v1388 = vsub.f32 0.0, %v998
    %v1389 = vsub.f32 0.0, %v999
    %v1390 = vsub.f32 0.0, %v1000
    %v1391 = vsub.f32 0.0, %v1001
    %v1392 = vsub.f32 0.0, %v1002
    %v1393 = vsub.f32 0.0, %v1003
    %v1394 = vsub.f32 0.0, %v1004
    %v1395 = vsub.f32 0.0, %v1005
    %v1396 = vsub.f32 0.0, %v1006
    %v1397 = vsub.f32 0.0, %v1007
    %v1398 = vsub.f32 0.0, %v1008
    %v1399 = vsub.f32 0.0, %v1009
    %v1400 = vsub.f32 0.0, %v1010
    %v1401 = vsub.f32 0.0, %v1011
    %v1402 = vsub.f32 0.0, %v1012
    %v1403 = vsub.f32 0.0, %v1013
    %v1404 = vsub.f32 0.0, %v1014
    %v1405 = vsub.f32 0.0, %v1015
    %v1406 = vsub.f32 0.0, %v1016
    %v1407 = vsub.f32 0.0, %v1017
    %v1408 = vsub.f32 0.0, %v1018
    %v1409 = vsub.f32 0.0, %v1019
    %v1410 = vsub.f32 0.0, %v1020
    %v1411 = vsub.f32 0.0, %v1021
    %v1412 = vsub.f32 0.0, %v1022
    %v1413 = vsub.f32 0.0, %v1023
    %v1414 = vsub.f32 0.0, %v1024
    %v1415 = vsub.f32 0.0, %v1025
    %v1416 = vsub.f32 0.0, %v1026
    %v1417 = vsub.f32 0.0, %v1027
    %v1418 = vsub.f32 0.0, %v1028
    %v1419 = vsub.f32 0.0, %v1029
    %v1420 = vsub.f32 0.0, %v1030
    %v1421 = vsub.f32 0.0, %v1031
    %v1422 = vsub.f32 0.0, %v1032
    %v1423 = vsub.f32 0.0, %v1033
    %v1424 = vsub.f32 0.0, %v1034
    %v1425 = vsub.f32 0.0, %v1035
    %v1426 = vsub.f32 0.0, %v1036
    %v1427 = vsub.f32 0.0, %v1037
    %v1428 = vsub.f32 0.0, %v1038
    %v1429 = vsub.f32 0.0, %v1039
    %v1430 = vsub.f32 0.0, %v1040
    %v1431 = vsub.f32 0.0, %v1041
    %v1432 = vsub.f32 0.0, %v1042
    %v1433 = vsub.f32 0.0, %v1043
    %v1434 = vsub.f32 0.0, %v1044
    %v1435 = vsub.f32 0.0, %v1045
    %v1436 = vsub.f32 0.0, %v1046
    %v1437 = vsub.f32 0.0, %v1047
    %v1438 = vsub.f32 0.0, %v1048
    %v1439 = vsub.f32 0.0, %v1049
    %v1440 = vsub.f32 0.0, %v1050
    %v1441 = vsub.f32 0.0, %v1051
    %v1442 = vsub.f32 0.0, %v1052
    %v1443 = vsub.f32 0.0, %v1053
    %v1444 = vsub.f32 0.0, %v1054
    %v1445 = vsub.f32 0.0, %v1055
    %v1446 = vsub.f32 0.0, %v1056
    %v1447 = vsub.f32 0.0, %v1057
    %v1448 = vsub.f32 0.0, %v1058
    %v1449 = vsub.f32 0.0, %v1059
    %v1450 = vsub.f32 0.0, %v1060
    %v1451 = vsub.f32 0.0, %v1061
    %v1452 = vsub.f32 0.0, %v1062
    %v1453 = vsub.f32 0.0, %v1063
    %v1454 = vsub.f32 0.0, %v1064
    %v1455 = vsub.f32 0.0, %v1065
    %v1456 = vsub.f32 0.0, %v1066
    %v1457 = vsub.f32 0.0, %v1067
    %v1458 = vsub.f32 0.0, %v1068
    %v1459 = vsub.f32 0.0, %v1069
    %v1460 = vsub.f32 0.0, %v1070
    %v1461 = vsub.f32 0.0, %v1071
    %v1462 = vsub.f32 0.0, %v1072
    %v1463 = vsub.f32 0.0, %v1073
    %v1464 = vsub.f32 0.0, %v1074
    %v1465 = vsub.f32 0.0, %v1075
    %v1466 = vsub.f32 0.0, %v1076
    %v1467 = vsub.f32 0.0, %v1077
    %v1468 = vsub.f32 0.0, %v1078
    %v1469 = vsub.f32 0.0, %v1079
    %v1470 = vsub.f32 0.0, %v1080
    %v1471 = vsub.f32 0.0, %v1081
    %v1472 = vsub.f32 0.0, %v1082
    %v1473 = vsub.f32 0.0, %v1083
    %v1474 = vsub.f32 0.0, %v1084
    %v1475 = vsub.f32 0.0, %v1085
    %v1476 = vsub.f32 0.0, %v1086
    %v1477 = vsub.f32 0.0, %v1087
    %v1478 = vsub.f32 0.0, %v1088
    %v1479 = vsub.f32 0.0, %v1089
    %v1480 = vsub.f32 0.0, %v1090
    %v1481 = vsub.f32 0.0, %v1091
    %v1482 = vsub.f32 0.0, %v1092
    %v1483 = vsub.f32 0.0, %v1093
    %v1484 = vsub.f32 0.0, %v1094
    %v1485 = vsub.f32 0.0, %v1095
    %v1486 = vsub.f32 0.0, %v1096
    %v1487 = vsub.f32 0.0, %v1097
    %v1488 = vsub.f32 0.0, %v1098
    %v1489 = vsub.f32 0.0, %v1099
    %v1490 = vsub.f32 0.0, %v1100
    %v1491 = vsub.f32 0.0, %v1101
    %v1492 = vsub.f32 0.0, %v1102
    %v1493 = vsub.f32 0.0, %v1103
    %v1494 = vsub.f32 0.0, %v1104
    %v1495 = vsub.f32 0.0, %v1105
    %v1496 = vsub.f32 0.0, %v1106
    %v1497 = vsub.f32 0.0, %v1107
    %v1498 = vsub.f32 0.0, %v1108
    %v1499 = vsub.f32 0.0, %v1109
    %v1500 = vsub.f32 0.0, %v1110
    %v1501 = vsub.f32 0.0, %v1111
    %v1502 = vsub.f32 0.0, %v1112
    %v1503 = vsub.f32 0.0, %v1113
    %v1504 = vsub.f32 0.0, %v1114
    %v1505 = vsub.f32 0.0, %v1115
    %v1506 = vsub.f32 0.0, %v1116
    %v1507 = vsub.f32 0.0, %v1117
    %v1508 = vsub.f32 0.0, %v1118
    %v1509 = vsub.f32 0.0, %v1119
    %v1510 = vsub.f32 0.0, %v1120
    %v1511 = vsub.f32 0.0, %v1121
    %v1512 = vsub.f32 0.0, %v1122
    %v1513 = vsub.f32 0.0, %v1123
    %v1514 = vsub.f32 0.0, %v1124
    %v1515 = vsub.f32 0.0, %v1125
    %v1516 = vsub.f32 0.0, %v1126
    %v1517 = vsub.f32 0.0, %v1127
    %v1518 = vsub.f32 0.0, %v1128
    %v1519 = vsub.f32 0.0, %v1129
    %v1520 = vsub.f32 0.0, %v1130
    %v1521 = vsub.f32 0.0, %v1131
    %v1522 = vsub.f32 0.0, %v1132
    %v1523 = vsub.f32 0.0, %v1133
    %v1524 = vsub.f32 0.0, %v1134
    %v1525 = vsub.f32 0.0, %v1135
    %v1526 = vsub.f32 0.0, %v1136
    %v1527 = vsub.f32 0.0, %v1137
    %v1528 = vsub.f32 0.0, %v1138
    %v1529 = vsub.f32 0.0, %v1139
    %v1530 = vsub.f32 0.0, %v1140
    %v1531 = vsub.f32 0.0, %v1141
    %v1532 = vsub.f32 0.0, %v1142
    %v1533 = vsub.f32 0.0, %v1143
    %v1534 = vsub.f32 0.0, %v1144
    %v1535 = vsub.f32 0.0, %v1145
    %v1536 = vsub.f32 0.0, %v1146
    %v1537 = vsub.f32 0.0, %v1147
    %v1538 = vsub.f32 0.0, %v1148
    %v1539 = vsub.f32 0.0, %v1149
    %v1540 = vsub.f32 0.0, %v1150
    %v1541 = vsub.f32 0.0, %v1151
    %v1542 = vsub.f32 0.0, %v1152
    %v1543 = vsub.f32 0.0, %v1153
    %v1544 = vsub.f32 0.0, %v1154
    %v1545 = vsub.f32 0.0, %v1155
    %v1546 = vsub.f32 0.0, %v1156
    %v1547 = vsub.f32 0.0, %v1157
    %v1548 = vsub.f32 0.0, %v1158
    %v1549 = vsub.f32 0.0, %v1159
    %v1550 = vsub.f32 0.0, %v1160
    %v1551 = vsub.f32 0.0, %v1161
    %v1552 = vsub.f32 0.0, %v1162
    %v1553 = vsub.f32 0.0, %v1163
    %v1554 = vsub.f32 0.0, %v1164
    %v1555 = vsub.f32 0.0, %v1165
    %v1556 = vsub.f32 0.0, %v1166
    %v1557 = vsub.f32 0.0, %v1167
    %v1558 = vsub.f32 0.0, %v1168
    %v1559 = vsub.f32 0.0, %v1169
    %v1560 = vsub.f32 0.0, %v1170
    %v1561 = vsub.f32 0.0, %v1171
    %v1562 = vsub.f32 0.0, %v1172
    %v1563 = vsub.f32 0.0, %v1173
    %v1564 = vsub.f32 0.0, %v1174
    %v1565 = vsub.f32 0.0, %v1175
    %v1566 = vsub.f32 0.0, %v1176
    %v1567 = vsub.f32 0.0, %v1177
    %v1568 = vsub.f32 0.0, %v1178
    %v1569 = vsub.f32 0.0, %v1179
    %v1570 = vsub.f32 0.0, %v1180
    %v1571 = vsub.f32 0.0, %v1181
    %v1572 = vsub.f32 0.0, %v1182
    %v1573 = vsub.f32 0.0, %v1183
    %v1574 = vsub.f32 0.0, %v1184
    %v1575 = vsub.f32 0.0, %v1185
    %v1576 = vsub.f32 0.0, %v1186
    %v1577 = vsub.f32 0.0, %v1187
    %v1578 = vsub.f32 0.0, %v1188
    %v1579 = vsub.f32 0.0, %v1189
    %v1580 = vsub.f32 0.0, %v1190
    %v1581 = vsub.f32 0.0, %v1191
    %v1582 = vsub.f32 0.0, %v1192
    %v1583 = vsub.f32 0.0, %v1193
    %v1584 = vsub.f32 0.0, %v1194
    %v1585 = vsub.f32 0.0, %v1195
    %v1586 = vsub.f32 0.0, %v1196
    %v1587 = vsub.f32 0.0, %v1197
    %v1588 = vsub.f32 0.0, %v1198
    %v1589 = vsub.f32 0.0, %v1199
    %v1590 = vsub.f32 0.0, %v1200
    %v1591 = vsub.f32 0.0, %v1201
    %v1592 = vsub.f32 0.0, %v1202
    %v1593 = vsub.f32 0.0, %v1203
    %v1594 = vsub.f32 0.0, %v1204
    %v1595 = vsub.f32 0.0, %v1205
    %v1596 = vsub.f32 0.0, %v1206
    %v1597 = vsub.f32 0.0, %v1207
    %v1598 = vsub.f32 0.0, %v1208
    %v1599 = vsub.f32 0.0, %v1209
    %v1600 = vsub.f32 0.0, %v1210
    %v1601 = vsub.f32 0.0, %v1211
    %v1602 = vsub.f32 0.0, %v1212
    %v1603 = vsub.f32 0.0, %v1213
    %v1604 = vsub.f32 0.0, %v1214
    %v1605 = vsub.f32 0.0, %v1215
    %v1606 = vsub.f32 0.0, %v1216
    %v1607 = vsub.f32 0.0, %v1217
    %v1608 = vsub.f32 0.0, %v1218
    %v1609 = vsub.f32 0.0, %v1219
    %v1610 = vsub.f32 0.0, %v1220
    %v1611 = vsub.f32 0.0, %v1221
    %v1612 = vsub.f32 0.0, %v1222
    %v1613 = vmul.f32 %v1223, 1.442695
    %v1614 = vpow.pop %v1613
    %v1615 = vmul.f32 %v1224, 1.442695
    %v1616 = vpow.pop %v1615
    %v1617 = vmul.f32 %v1225, 1.442695
    %v1618 = vpow.pop %v1617
    %v1619 = vmul.f32 %v1226, 1.442695
    %v1620 = vpow.pop %v1619
    %v1621 = vmul.f32 %v1227, 1.442695
    %v1622 = vpow.pop %v1621
    %v1623 = vmul.f32 %v1228, 1.442695
    %v1624 = vpow.pop %v1623
    %v1625 = vmul.f32 %v1229, 1.442695
    %v1626 = vpow.pop %v1625
    %v1627 = vmul.f32 %v1230, 1.442695
    %v1628 = vpow.pop %v1627
    %v1629 = vmul.f32 %v1231, 1.442695
    %v1630 = vpow.pop %v1629
    %v1631 = vmul.f32 %v1232, 1.442695
    %v1632 = vpow.pop %v1631
    %v1633 = vmul.f32 %v1233, 1.442695
    %v1634 = vpow.pop %v1633
    %v1635 = vmul.f32 %v1234, 1.442695
    %v1636 = vpow.pop %v1635
    %v1637 = vmul.f32 %v1235, 1.442695
    %v1638 = vpow.pop %v1637
    %v1639 = vmul.f32 %v1236, 1.442695
    %v1640 = vpow.pop %v1639
    %v1641 = vmul.f32 %v1237, 1.442695
    %v1642 = vpow.pop %v1641
    %v1643 = vmul.f32 %v1238, 1.442695
    %v1644 = vpow.pop %v1643
    %v1645 = vmul.f32 %v1239, 1.442695
    %v1646 = vpow.pop %v1645
    %v1647 = vmul.f32 %v1240, 1.442695
    %v1648 = vpow.pop %v1647
    %v1649 = vmul.f32 %v1241, 1.442695
    %v1650 = vpow.pop %v1649
    %v1651 = vmul.f32 %v1242, 1.442695
    %v1652 = vpow.pop %v1651
    %v1653 = vmul.f32 %v1243, 1.442695
    %v1654 = vpow.pop %v1653
    %v1655 = vmul.f32 %v1244, 1.442695
    %v1656 = vpow.pop %v1655
    %v1657 = vmul.f32 %v1245, 1.442695
    %v1658 = vpow.pop %v1657
    %v1659 = vmul.f32 %v1246, 1.442695
    %v1660 = vpow.pop %v1659
    %v1661 = vmul.f32 %v1247, 1.442695
    %v1662 = vpow.pop %v1661
    %v1663 = vmul.f32 %v1248, 1.442695
    %v1664 = vpow.pop %v1663
    %v1665 = vmul.f32 %v1249, 1.442695
    %v1666 = vpow.pop %v1665
    %v1667 = vmul.f32 %v1250, 1.442695
    %v1668 = vpow.pop %v1667
    %v1669 = vmul.f32 %v1251, 1.442695
    %v1670 = vpow.pop %v1669
    %v1671 = vmul.f32 %v1252, 1.442695
    %v1672 = vpow.pop %v1671
    %v1673 = vmul.f32 %v1253, 1.442695
    %v1674 = vpow.pop %v1673
    %v1675 = vmul.f32 %v1254, 1.442695
    %v1676 = vpow.pop %v1675
    %v1677 = vmul.f32 %v1255, 1.442695
    %v1678 = vpow.pop %v1677
    %v1679 = vmul.f32 %v1256, 1.442695
    %v1680 = vpow.pop %v1679
    %v1681 = vmul.f32 %v1257, 1.442695
    %v1682 = vpow.pop %v1681
    %v1683 = vmul.f32 %v1258, 1.442695
    %v1684 = vpow.pop %v1683
    %v1685 = vmul.f32 %v1259, 1.442695
    %v1686 = vpow.pop %v1685
    %v1687 = vmul.f32 %v1260, 1.442695
    %v1688 = vpow.pop %v1687
    %v1689 = vmul.f32 %v1261, 1.442695
    %v1690 = vpow.pop %v1689
    %v1691 = vmul.f32 %v1262, 1.442695
    %v1692 = vpow.pop %v1691
    %v1693 = vmul.f32 %v1263, 1.442695
    %v1694 = vpow.pop %v1693
    %v1695 = vmul.f32 %v1264, 1.442695
    %v1696 = vpow.pop %v1695
    %v1697 = vmul.f32 %v1265, 1.442695
    %v1698 = vpow.pop %v1697
    %v1699 = vmul.f32 %v1266, 1.442695
    %v1700 = vpow.pop %v1699
    %v1701 = vmul.f32 %v1267, 1.442695
    %v1702 = vpow.pop %v1701
    %v1703 = vmul.f32 %v1268, 1.442695
    %v1704 = vpow.pop %v1703
    %v1705 = vmul.f32 %v1269, 1.442695
    %v1706 = vpow.pop %v1705
    %v1707 = vmul.f32 %v1270, 1.442695
    %v1708 = vpow.pop %v1707
    %v1709 = vmul.f32 %v1271, 1.442695
    %v1710 = vpow.pop %v1709
    %v1711 = vmul.f32 %v1272, 1.442695
    %v1712 = vpow.pop %v1711
    %v1713 = vmul.f32 %v1273, 1.442695
    %v1714 = vpow.pop %v1713
    %v1715 = vmul.f32 %v1274, 1.442695
    %v1716 = vpow.pop %v1715
    %v1717 = vmul.f32 %v1275, 1.442695
    %v1718 = vpow.pop %v1717
    %v1719 = vmul.f32 %v1276, 1.442695
    %v1720 = vpow.pop %v1719
    %v1721 = vmul.f32 %v1277, 1.442695
    %v1722 = vpow.pop %v1721
    %v1723 = vmul.f32 %v1278, 1.442695
    %v1724 = vpow.pop %v1723
    %v1725 = vmul.f32 %v1279, 1.442695
    %v1726 = vpow.pop %v1725
    %v1727 = vmul.f32 %v1280, 1.442695
    %v1728 = vpow.pop %v1727
    %v1729 = vmul.f32 %v1281, 1.442695
    %v1730 = vpow.pop %v1729
    %v1731 = vmul.f32 %v1282, 1.442695
    %v1732 = vpow.pop %v1731
    %v1733 = vmul.f32 %v1283, 1.442695
    %v1734 = vpow.pop %v1733
    %v1735 = vmul.f32 %v1284, 1.442695
    %v1736 = vpow.pop %v1735
    %v1737 = vmul.f32 %v1285, 1.442695
    %v1738 = vpow.pop %v1737
    %v1739 = vmul.f32 %v1286, 1.442695
    %v1740 = vpow.pop %v1739
    %v1741 = vmul.f32 %v1287, 1.442695
    %v1742 = vpow.pop %v1741
    %v1743 = vmul.f32 %v1288, 1.442695
    %v1744 = vpow.pop %v1743
    %v1745 = vmul.f32 %v1289, 1.442695
    %v1746 = vpow.pop %v1745
    %v1747 = vmul.f32 %v1290, 1.442695
    %v1748 = vpow.pop %v1747
    %v1749 = vmul.f32 %v1291, 1.442695
    %v1750 = vpow.pop %v1749
    %v1751 = vmul.f32 %v1292, 1.442695
    %v1752 = vpow.pop %v1751
    %v1753 = vmul.f32 %v1293, 1.442695
    %v1754 = vpow.pop %v1753
    %v1755 = vmul.f32 %v1294, 1.442695
    %v1756 = vpow.pop %v1755
    %v1757 = vmul.f32 %v1295, 1.442695
    %v1758 = vpow.pop %v1757
    %v1759 = vmul.f32 %v1296, 1.442695
    %v1760 = vpow.pop %v1759
    %v1761 = vmul.f32 %v1297, 1.442695
    %v1762 = vpow.pop %v1761
    %v1763 = vmul.f32 %v1298, 1.442695
    %v1764 = vpow.pop %v1763
    %v1765 = vmul.f32 %v1299, 1.442695
    %v1766 = vpow.pop %v1765
    %v1767 = vmul.f32 %v1300, 1.442695
    %v1768 = vpow.pop %v1767
    %v1769 = vmul.f32 %v1301, 1.442695
    %v1770 = vpow.pop %v1769
    %v1771 = vmul.f32 %v1302, 1.442695
    %v1772 = vpow.pop %v1771
    %v1773 = vmul.f32 %v1303, 1.442695
    %v1774 = vpow.pop %v1773
    %v1775 = vmul.f32 %v1304, 1.442695
    %v1776 = vpow.pop %v1775
    %v1777 = vmul.f32 %v1305, 1.442695
    %v1778 = vpow.pop %v1777
    %v1779 = vmul.f32 %v1306, 1.442695
    %v1780 = vpow.pop %v1779
    %v1781 = vmul.f32 %v1307, 1.442695
    %v1782 = vpow.pop %v1781
    %v1783 = vmul.f32 %v1308, 1.442695
    %v1784 = vpow.pop %v1783
    %v1785 = vmul.f32 %v1309, 1.442695
    %v1786 = vpow.pop %v1785
    %v1787 = vmul.f32 %v1310, 1.442695
    %v1788 = vpow.pop %v1787
    %v1789 = vmul.f32 %v1311, 1.442695
    %v1790 = vpow.pop %v1789
    %v1791 = vmul.f32 %v1312, 1.442695
    %v1792 = vpow.pop %v1791
    %v1793 = vmul.f32 %v1313, 1.442695
    %v1794 = vpow.pop %v1793
    %v1795 = vmul.f32 %v1314, 1.442695
    %v1796 = vpow.pop %v1795
    %v1797 = vmul.f32 %v1315, 1.442695
    %v1798 = vpow.pop %v1797
    %v1799 = vmul.f32 %v1316, 1.442695
    %v1800 = vpow.pop %v1799
    %v1801 = vmul.f32 %v1317, 1.442695
    %v1802 = vpow.pop %v1801
    %v1803 = vmul.f32 %v1318, 1.442695
    %v1804 = vpow.pop %v1803
    %v1805 = vmul.f32 %v1319, 1.442695
    %v1806 = vpow.pop %v1805
    %v1807 = vmul.f32 %v1320, 1.442695
    %v1808 = vpow.pop %v1807
    %v1809 = vmul.f32 %v1321, 1.442695
    %v1810 = vpow.pop %v1809
    %v1811 = vmul.f32 %v1322, 1.442695
    %v1812 = vpow.pop %v1811
    %v1813 = vmul.f32 %v1323, 1.442695
    %v1814 = vpow.pop %v1813
    %v1815 = vmul.f32 %v1324, 1.442695
    %v1816 = vpow.pop %v1815
    %v1817 = vmul.f32 %v1325, 1.442695
    %v1818 = vpow.pop %v1817
    %v1819 = vmul.f32 %v1326, 1.442695
    %v1820 = vpow.pop %v1819
    %v1821 = vmul.f32 %v1327, 1.442695
    %v1822 = vpow.pop %v1821
    %v1823 = vmul.f32 %v1328, 1.442695
    %v1824 = vpow.pop %v1823
    %v1825 = vmul.f32 %v1329, 1.442695
    %v1826 = vpow.pop %v1825
    %v1827 = vmul.f32 %v1330, 1.442695
    %v1828 = vpow.pop %v1827
    %v1829 = vmul.f32 %v1331, 1.442695
    %v1830 = vpow.pop %v1829
    %v1831 = vmul.f32 %v1332, 1.442695
    %v1832 = vpow.pop %v1831
    %v1833 = vmul.f32 %v1333, 1.442695
    %v1834 = vpow.pop %v1833
    %v1835 = vmul.f32 %v1334, 1.442695
    %v1836 = vpow.pop %v1835
    %v1837 = vmul.f32 %v1335, 1.442695
    %v1838 = vpow.pop %v1837
    %v1839 = vmul.f32 %v1336, 1.442695
    %v1840 = vpow.pop %v1839
    %v1841 = vmul.f32 %v1337, 1.442695
    %v1842 = vpow.pop %v1841
    %v1843 = vmul.f32 %v1338, 1.442695
    %v1844 = vpow.pop %v1843
    %v1845 = vmul.f32 %v1339, 1.442695
    %v1846 = vpow.pop %v1845
    %v1847 = vmul.f32 %v1340, 1.442695
    %v1848 = vpow.pop %v1847
    %v1849 = vmul.f32 %v1341, 1.442695
    %v1850 = vpow.pop %v1849
    %v1851 = vmul.f32 %v1342, 1.442695
    %v1852 = vpow.pop %v1851
    %v1853 = vmul.f32 %v1343, 1.442695
    %v1854 = vpow.pop %v1853
    %v1855 = vmul.f32 %v1344, 1.442695
    %v1856 = vpow.pop %v1855
    %v1857 = vmul.f32 %v1345, 1.442695
    %v1858 = vpow.pop %v1857
    %v1859 = vmul.f32 %v1346, 1.442695
    %v1860 = vpow.pop %v1859
    %v1861 = vmul.f32 %v1347, 1.442695
    %v1862 = vpow.pop %v1861
    %v1863 = vmul.f32 %v1348, 1.442695
    %v1864 = vpow.pop %v1863
    %v1865 = vmul.f32 %v1349, 1.442695
    %v1866 = vpow.pop %v1865
    %v1867 = vmul.f32 %v1350, 1.442695
    %v1868 = vpow.pop %v1867
    %v1869 = vmul.f32 %v1351, 1.442695
    %v1870 = vpow.pop %v1869
    %v1871 = vmul.f32 %v1352, 1.442695
    %v1872 = vpow.pop %v1871
    %v1873 = vmul.f32 %v1353, 1.442695
    %v1874 = vpow.pop %v1873
    %v1875 = vmul.f32 %v1354, 1.442695
    %v1876 = vpow.pop %v1875
    %v1877 = vmul.f32 %v1355, 1.442695
    %v1878 = vpow.pop %v1877
    %v1879 = vmul.f32 %v1356, 1.442695
    %v1880 = vpow.pop %v1879
    %v1881 = vmul.f32 %v1357, 1.442695
    %v1882 = vpow.pop %v1881
    %v1883 = vmul.f32 %v1358, 1.442695
    %v1884 = vpow.pop %v1883
    %v1885 = vmul.f32 %v1359, 1.442695
    %v1886 = vpow.pop %v1885
    %v1887 = vmul.f32 %v1360, 1.442695
    %v1888 = vpow.pop %v1887
    %v1889 = vmul.f32 %v1361, 1.442695
    %v1890 = vpow.pop %v1889
    %v1891 = vmul.f32 %v1362, 1.442695
    %v1892 = vpow.pop %v1891
    %v1893 = vmul.f32 %v1363, 1.442695
    %v1894 = vpow.pop %v1893
    %v1895 = vmul.f32 %v1364, 1.442695
    %v1896 = vpow.pop %v1895
    %v1897 = vmul.f32 %v1365, 1.442695
    %v1898 = vpow.pop %v1897
    %v1899 = vmul.f32 %v1366, 1.442695
    %v1900 = vpow.pop %v1899
    %v1901 = vmul.f32 %v1367, 1.442695
    %v1902 = vpow.pop %v1901
    %v1903 = vmul.f32 %v1368, 1.442695
    %v1904 = vpow.pop %v1903
    %v1905 = vmul.f32 %v1369, 1.442695
    %v1906 = vpow.pop %v1905
    %v1907 = vmul.f32 %v1370, 1.442695
    %v1908 = vpow.pop %v1907
    %v1909 = vmul.f32 %v1371, 1.442695
    %v1910 = vpow.pop %v1909
    %v1911 = vmul.f32 %v1372, 1.442695
    %v1912 = vpow.pop %v1911
    %v1913 = vmul.f32 %v1373, 1.442695
    %v1914 = vpow.pop %v1913
    %v1915 = vmul.f32 %v1374, 1.442695
    %v1916 = vpow.pop %v1915
    %v1917 = vmul.f32 %v1375, 1.442695
    %v1918 = vpow.pop %v1917
    %v1919 = vmul.f32 %v1376, 1.442695
    %v1920 = vpow.pop %v1919
    %v1921 = vmul.f32 %v1377, 1.442695
    %v1922 = vpow.pop %v1921
    %v1923 = vmul.f32 %v1378, 1.442695
    %v1924 = vpow.pop %v1923
    %v1925 = vmul.f32 %v1379, 1.442695
    %v1926 = vpow.pop %v1925
    %v1927 = vmul.f32 %v1380, 1.442695
    %v1928 = vpow.pop %v1927
    %v1929 = vmul.f32 %v1381, 1.442695
    %v1930 = vpow.pop %v1929
    %v1931 = vmul.f32 %v1382, 1.442695
    %v1932 = vpow.pop %v1931
    %v1933 = vmul.f32 %v1383, 1.442695
    %v1934 = vpow.pop %v1933
    %v1935 = vmul.f32 %v1384, 1.442695
    %v1936 = vpow.pop %v1935
    %v1937 = vmul.f32 %v1385, 1.442695
    %v1938 = vpow.pop %v1937
    %v1939 = vmul.f32 %v1386, 1.442695
    %v1940 = vpow.pop %v1939
    %v1941 = vmul.f32 %v1387, 1.442695
    %v1942 = vpow.pop %v1941
    %v1943 = vmul.f32 %v1388, 1.442695
    %v1944 = vpow.pop %v1943
    %v1945 = vmul.f32 %v1389, 1.442695
    %v1946 = vpow.pop %v1945
    %v1947 = vmul.f32 %v1390, 1.442695
    %v1948 = vpow.pop %v1947
    %v1949 = vmul.f32 %v1391, 1.442695
    %v1950 = vpow.pop %v1949
    %v1951 = vmul.f32 %v1392, 1.442695
    %v1952 = vpow.pop %v1951
    %v1953 = vmul.f32 %v1393, 1.442695
    %v1954 = vpow.pop %v1953
    %v1955 = vmul.f32 %v1394, 1.442695
    %v1956 = vpow.pop %v1955
    %v1957 = vmul.f32 %v1395, 1.442695
    %v1958 = vpow.pop %v1957
    %v1959 = vmul.f32 %v1396, 1.442695
    %v1960 = vpow.pop %v1959
    %v1961 = vmul.f32 %v1397, 1.442695
    %v1962 = vpow.pop %v1961
    %v1963 = vmul.f32 %v1398, 1.442695
    %v1964 = vpow.pop %v1963
    %v1965 = vmul.f32 %v1399, 1.442695
    %v1966 = vpow.pop %v1965
    %v1967 = vmul.f32 %v1400, 1.442695
    %v1968 = vpow.pop %v1967
    %v1969 = vmul.f32 %v1401, 1.442695
    %v1970 = vpow.pop %v1969
    %v1971 = vmul.f32 %v1402, 1.442695
    %v1972 = vpow.pop %v1971
    %v1973 = vmul.f32 %v1403, 1.442695
    %v1974 = vpow.pop %v1973
    %v1975 = vmul.f32 %v1404, 1.442695
    %v1976 = vpow.pop %v1975
    %v1977 = vmul.f32 %v1405, 1.442695
    %v1978 = vpow.pop %v1977
    %v1979 = vmul.f32 %v1406, 1.442695
    %v1980 = vpow.pop %v1979
    %v1981 = vmul.f32 %v1407, 1.442695
    %v1982 = vpow.pop %v1981
    %v1983 = vmul.f32 %v1408, 1.442695
    %v1984 = vpow.pop %v1983
    %v1985 = vmul.f32 %v1409, 1.442695
    %v1986 = vpow.pop %v1985
    %v1987 = vmul.f32 %v1410, 1.442695
    %v1988 = vpow.pop %v1987
    %v1989 = vmul.f32 %v1411, 1.442695
    %v1990 = vpow.pop %v1989
    %v1991 = vmul.f32 %v1412, 1.442695
    %v1992 = vpow.pop %v1991
    %v1993 = vmul.f32 %v1413, 1.442695
    %v1994 = vpow.pop %v1993
    %v1995 = vmul.f32 %v1414, 1.442695
    %v1996 = vpow.pop %v1995
    %v1997 = vmul.f32 %v1415, 1.442695
    %v1998 = vpow.pop %v1997
    %v1999 = vmul.f32 %v1416, 1.442695
    %v2000 = vpow.pop %v1999
    %v2001 = vmul.f32 %v1417, 1.442695
    %v2002 = vpow.pop %v2001
    %v2003 = vmul.f32 %v1418, 1.442695
    %v2004 = vpow.pop %v2003
    %v2005 = vmul.f32 %v1419, 1.442695
    %v2006 = vpow.pop %v2005
    %v2007 = vmul.f32 %v1420, 1.442695
    %v2008 = vpow.pop %v2007
    %v2009 = vmul.f32 %v1421, 1.442695
    %v2010 = vpow.pop %v2009
    %v2011 = vmul.f32 %v1422, 1.442695
    %v2012 = vpow.pop %v2011
    %v2013 = vmul.f32 %v1423, 1.442695
    %v2014 = vpow.pop %v2013
    %v2015 = vmul.f32 %v1424, 1.442695
    %v2016 = vpow.pop %v2015
    %v2017 = vmul.f32 %v1425, 1.442695
    %v2018 = vpow.pop %v2017
    %v2019 = vmul.f32 %v1426, 1.442695
    %v2020 = vpow.pop %v2019
    %v2021 = vmul.f32 %v1427, 1.442695
    %v2022 = vpow.pop %v2021
    %v2023 = vmul.f32 %v1428, 1.442695
    %v2024 = vpow.pop %v2023
    %v2025 = vmul.f32 %v1429, 1.442695
    %v2026 = vpow.pop %v2025
    %v2027 = vmul.f32 %v1430, 1.442695
    %v2028 = vpow.pop %v2027
    %v2029 = vmul.f32 %v1431, 1.442695
    %v2030 = vpow.pop %v2029
    %v2031 = vmul.f32 %v1432, 1.442695
    %v2032 = vpow.pop %v2031
    %v2033 = vmul.f32 %v1433, 1.442695
    %v2034 = vpow.pop %v2033
    %v2035 = vmul.f32 %v1434, 1.442695
    %v2036 = vpow.pop %v2035
    %v2037 = vmul.f32 %v1435, 1.442695
    %v2038 = vpow.pop %v2037
    %v2039 = vmul.f32 %v1436, 1.442695
    %v2040 = vpow.pop %v2039
    %v2041 = vmul.f32 %v1437, 1.442695
    %v2042 = vpow.pop %v2041
    %v2043 = vmul.f32 %v1438, 1.442695
    %v2044 = vpow.pop %v2043
    %v2045 = vmul.f32 %v1439, 1.442695
    %v2046 = vpow.pop %v2045
    %v2047 = vmul.f32 %v1440, 1.442695
    %v2048 = vpow.pop %v2047
    %v2049 = vmul.f32 %v1441, 1.442695
    %v2050 = vpow.pop %v2049
    %v2051 = vmul.f32 %v1442, 1.442695
    %v2052 = vpow.pop %v2051
    %v2053 = vmul.f32 %v1443, 1.442695
    %v2054 = vpow.pop %v2053
    %v2055 = vmul.f32 %v1444, 1.442695
    %v2056 = vpow.pop %v2055
    %v2057 = vmul.f32 %v1445, 1.442695
    %v2058 = vpow.pop %v2057
    %v2059 = vmul.f32 %v1446, 1.442695
    %v2060 = vpow.pop %v2059
    %v2061 = vmul.f32 %v1447, 1.442695
    %v2062 = vpow.pop %v2061
    %v2063 = vmul.f32 %v1448, 1.442695
    %v2064 = vpow.pop %v2063
    %v2065 = vmul.f32 %v1449, 1.442695
    %v2066 = vpow.pop %v2065
    %v2067 = vmul.f32 %v1450, 1.442695
    %v2068 = vpow.pop %v2067
    %v2069 = vmul.f32 %v1451, 1.442695
    %v2070 = vpow.pop %v2069
    %v2071 = vmul.f32 %v1452, 1.442695
    %v2072 = vpow.pop %v2071
    %v2073 = vmul.f32 %v1453, 1.442695
    %v2074 = vpow.pop %v2073
    %v2075 = vmul.f32 %v1454, 1.442695
    %v2076 = vpow.pop %v2075
    %v2077 = vmul.f32 %v1455, 1.442695
    %v2078 = vpow.pop %v2077
    %v2079 = vmul.f32 %v1456, 1.442695
    %v2080 = vpow.pop %v2079
    %v2081 = vmul.f32 %v1457, 1.442695
    %v2082 = vpow.pop %v2081
    %v2083 = vmul.f32 %v1458, 1.442695
    %v2084 = vpow.pop %v2083
    %v2085 = vmul.f32 %v1459, 1.442695
    %v2086 = vpow.pop %v2085
    %v2087 = vmul.f32 %v1460, 1.442695
    %v2088 = vpow.pop %v2087
    %v2089 = vmul.f32 %v1461, 1.442695
    %v2090 = vpow.pop %v2089
    %v2091 = vmul.f32 %v1462, 1.442695
    %v2092 = vpow.pop %v2091
    %v2093 = vmul.f32 %v1463, 1.442695
    %v2094 = vpow.pop %v2093
    %v2095 = vmul.f32 %v1464, 1.442695
    %v2096 = vpow.pop %v2095
    %v2097 = vmul.f32 %v1465, 1.442695
    %v2098 = vpow.pop %v2097
    %v2099 = vmul.f32 %v1466, 1.442695
    %v2100 = vpow.pop %v2099
    %v2101 = vmul.f32 %v1467, 1.442695
    %v2102 = vpow.pop %v2101
    %v2103 = vmul.f32 %v1468, 1.442695
    %v2104 = vpow.pop %v2103
    %v2105 = vmul.f32 %v1469, 1.442695
    %v2106 = vpow.pop %v2105
    %v2107 = vmul.f32 %v1470, 1.442695
    %v2108 = vpow.pop %v2107
    %v2109 = vmul.f32 %v1471, 1.442695
    %v2110 = vpow.pop %v2109
    %v2111 = vmul.f32 %v1472, 1.442695
    %v2112 = vpow.pop %v2111
    %v2113 = vmul.f32 %v1473, 1.442695
    %v2114 = vpow.pop %v2113
    %v2115 = vmul.f32 %v1474, 1.442695
    %v2116 = vpow.pop %v2115
    %v2117 = vmul.f32 %v1475, 1.442695
    %v2118 = vpow.pop %v2117
    %v2119 = vmul.f32 %v1476, 1.442695
    %v2120 = vpow.pop %v2119
    %v2121 = vmul.f32 %v1477, 1.442695
    %v2122 = vpow.pop %v2121
    %v2123 = vmul.f32 %v1478, 1.442695
    %v2124 = vpow.pop %v2123
    %v2125 = vmul.f32 %v1479, 1.442695
    %v2126 = vpow.pop %v2125
    %v2127 = vmul.f32 %v1480, 1.442695
    %v2128 = vpow.pop %v2127
    %v2129 = vmul.f32 %v1481, 1.442695
    %v2130 = vpow.pop %v2129
    %v2131 = vmul.f32 %v1482, 1.442695
    %v2132 = vpow.pop %v2131
    %v2133 = vmul.f32 %v1483, 1.442695
    %v2134 = vpow.pop %v2133
    %v2135 = vmul.f32 %v1484, 1.442695
    %v2136 = vpow.pop %v2135
    %v2137 = vmul.f32 %v1485, 1.442695
    %v2138 = vpow.pop %v2137
    %v2139 = vmul.f32 %v1486, 1.442695
    %v2140 = vpow.pop %v2139
    %v2141 = vmul.f32 %v1487, 1.442695
    %v2142 = vpow.pop %v2141
    %v2143 = vmul.f32 %v1488, 1.442695
    %v2144 = vpow.pop %v2143
    %v2145 = vmul.f32 %v1489, 1.442695
    %v2146 = vpow.pop %v2145
    %v2147 = vmul.f32 %v1490, 1.442695
    %v2148 = vpow.pop %v2147
    %v2149 = vmul.f32 %v1491, 1.442695
    %v2150 = vpow.pop %v2149
    %v2151 = vmul.f32 %v1492, 1.442695
    %v2152 = vpow.pop %v2151
    %v2153 = vmul.f32 %v1493, 1.442695
    %v2154 = vpow.pop %v2153
    %v2155 = vmul.f32 %v1494, 1.442695
    %v2156 = vpow.pop %v2155
    %v2157 = vmul.f32 %v1495, 1.442695
    %v2158 = vpow.pop %v2157
    %v2159 = vmul.f32 %v1496, 1.442695
    %v2160 = vpow.pop %v2159
    %v2161 = vmul.f32 %v1497, 1.442695
    %v2162 = vpow.pop %v2161
    %v2163 = vmul.f32 %v1498, 1.442695
    %v2164 = vpow.pop %v2163
    %v2165 = vmul.f32 %v1499, 1.442695
    %v2166 = vpow.pop %v2165
    %v2167 = vmul.f32 %v1500, 1.442695
    %v2168 = vpow.pop %v2167
    %v2169 = vmul.f32 %v1501, 1.442695
    %v2170 = vpow.pop %v2169
    %v2171 = vmul.f32 %v1502, 1.442695
    %v2172 = vpow.pop %v2171
    %v2173 = vmul.f32 %v1503, 1.442695
    %v2174 = vpow.pop %v2173
    %v2175 = vmul.f32 %v1504, 1.442695
    %v2176 = vpow.pop %v2175
    %v2177 = vmul.f32 %v1505, 1.442695
    %v2178 = vpow.pop %v2177
    %v2179 = vmul.f32 %v1506, 1.442695
    %v2180 = vpow.pop %v2179
    %v2181 = vmul.f32 %v1507, 1.442695
    %v2182 = vpow.pop %v2181
    %v2183 = vmul.f32 %v1508, 1.442695
    %v2184 = vpow.pop %v2183
    %v2185 = vmul.f32 %v1509, 1.442695
    %v2186 = vpow.pop %v2185
    %v2187 = vmul.f32 %v1510, 1.442695
    %v2188 = vpow.pop %v2187
    %v2189 = vmul.f32 %v1511, 1.442695
    %v2190 = vpow.pop %v2189
    %v2191 = vmul.f32 %v1512, 1.442695
    %v2192 = vpow.pop %v2191
    %v2193 = vmul.f32 %v1513, 1.442695
    %v2194 = vpow.pop %v2193
    %v2195 = vmul.f32 %v1514, 1.442695
    %v2196 = vpow.pop %v2195
    %v2197 = vmul.f32 %v1515, 1.442695
    %v2198 = vpow.pop %v2197
    %v2199 = vmul.f32 %v1516, 1.442695
    %v2200 = vpow.pop %v2199
    %v2201 = vmul.f32 %v1517, 1.442695
    %v2202 = vpow.pop %v2201
    %v2203 = vmul.f32 %v1518, 1.442695
    %v2204 = vpow.pop %v2203
    %v2205 = vmul.f32 %v1519, 1.442695
    %v2206 = vpow.pop %v2205
    %v2207 = vmul.f32 %v1520, 1.442695
    %v2208 = vpow.pop %v2207
    %v2209 = vmul.f32 %v1521, 1.442695
    %v2210 = vpow.pop %v2209
    %v2211 = vmul.f32 %v1522, 1.442695
    %v2212 = vpow.pop %v2211
    %v2213 = vmul.f32 %v1523, 1.442695
    %v2214 = vpow.pop %v2213
    %v2215 = vmul.f32 %v1524, 1.442695
    %v2216 = vpow.pop %v2215
    %v2217 = vmul.f32 %v1525, 1.442695
    %v2218 = vpow.pop %v2217
    %v2219 = vmul.f32 %v1526, 1.442695
    %v2220 = vpow.pop %v2219
    %v2221 = vmul.f32 %v1527, 1.442695
    %v2222 = vpow.pop %v2221
    %v2223 = vmul.f32 %v1528, 1.442695
    %v2224 = vpow.pop %v2223
    %v2225 = vmul.f32 %v1529, 1.442695
    %v2226 = vpow.pop %v2225
    %v2227 = vmul.f32 %v1530, 1.442695
    %v2228 = vpow.pop %v2227
    %v2229 = vmul.f32 %v1531, 1.442695
    %v2230 = vpow.pop %v2229
    %v2231 = vmul.f32 %v1532, 1.442695
    %v2232 = vpow.pop %v2231
    %v2233 = vmul.f32 %v1533, 1.442695
    %v2234 = vpow.pop %v2233
    %v2235 = vmul.f32 %v1534, 1.442695
    %v2236 = vpow.pop %v2235
    %v2237 = vmul.f32 %v1535, 1.442695
    %v2238 = vpow.pop %v2237
    %v2239 = vmul.f32 %v1536, 1.442695
    %v2240 = vpow.pop %v2239
    %v2241 = vmul.f32 %v1537, 1.442695
    %v2242 = vpow.pop %v2241
    %v2243 = vmul.f32 %v1538, 1.442695
    %v2244 = vpow.pop %v2243
    %v2245 = vmul.f32 %v1539, 1.442695
    %v2246 = vpow.pop %v2245
    %v2247 = vmul.f32 %v1540, 1.442695
    %v2248 = vpow.pop %v2247
    %v2249 = vmul.f32 %v1541, 1.442695
    %v2250 = vpow.pop %v2249
    %v2251 = vmul.f32 %v1542, 1.442695
    %v2252 = vpow.pop %v2251
    %v2253 = vmul.f32 %v1543, 1.442695
    %v2254 = vpow.pop %v2253
    %v2255 = vmul.f32 %v1544, 1.442695
    %v2256 = vpow.pop %v2255
    %v2257 = vmul.f32 %v1545, 1.442695
    %v2258 = vpow.pop %v2257
    %v2259 = vmul.f32 %v1546, 1.442695
    %v2260 = vpow.pop %v2259
    %v2261 = vmul.f32 %v1547, 1.442695
    %v2262 = vpow.pop %v2261
    %v2263 = vmul.f32 %v1548, 1.442695
    %v2264 = vpow.pop %v2263
    %v2265 = vmul.f32 %v1549, 1.442695
    %v2266 = vpow.pop %v2265
    %v2267 = vmul.f32 %v1550, 1.442695
    %v2268 = vpow.pop %v2267
    %v2269 = vmul.f32 %v1551, 1.442695
    %v2270 = vpow.pop %v2269
    %v2271 = vmul.f32 %v1552, 1.442695
    %v2272 = vpow.pop %v2271
    %v2273 = vmul.f32 %v1553, 1.442695
    %v2274 = vpow.pop %v2273
    %v2275 = vmul.f32 %v1554, 1.442695
    %v2276 = vpow.pop %v2275
    %v2277 = vmul.f32 %v1555, 1.442695
    %v2278 = vpow.pop %v2277
    %v2279 = vmul.f32 %v1556, 1.442695
    %v2280 = vpow.pop %v2279
    %v2281 = vmul.f32 %v1557, 1.442695
    %v2282 = vpow.pop %v2281
    %v2283 = vmul.f32 %v1558, 1.442695
    %v2284 = vpow.pop %v2283
    %v2285 = vmul.f32 %v1559, 1.442695
    %v2286 = vpow.pop %v2285
    %v2287 = vmul.f32 %v1560, 1.442695
    %v2288 = vpow.pop %v2287
    %v2289 = vmul.f32 %v1561, 1.442695
    %v2290 = vpow.pop %v2289
    %v2291 = vmul.f32 %v1562, 1.442695
    %v2292 = vpow.pop %v2291
    %v2293 = vmul.f32 %v1563, 1.442695
    %v2294 = vpow.pop %v2293
    %v2295 = vmul.f32 %v1564, 1.442695
    %v2296 = vpow.pop %v2295
    %v2297 = vmul.f32 %v1565, 1.442695
    %v2298 = vpow.pop %v2297
    %v2299 = vmul.f32 %v1566, 1.442695
    %v2300 = vpow.pop %v2299
    %v2301 = vmul.f32 %v1567, 1.442695
    %v2302 = vpow.pop %v2301
    %v2303 = vmul.f32 %v1568, 1.442695
    %v2304 = vpow.pop %v2303
    %v2305 = vmul.f32 %v1569, 1.442695
    %v2306 = vpow.pop %v2305
    %v2307 = vmul.f32 %v1570, 1.442695
    %v2308 = vpow.pop %v2307
    %v2309 = vmul.f32 %v1571, 1.442695
    %v2310 = vpow.pop %v2309
    %v2311 = vmul.f32 %v1572, 1.442695
    %v2312 = vpow.pop %v2311
    %v2313 = vmul.f32 %v1573, 1.442695
    %v2314 = vpow.pop %v2313
    %v2315 = vmul.f32 %v1574, 1.442695
    %v2316 = vpow.pop %v2315
    %v2317 = vmul.f32 %v1575, 1.442695
    %v2318 = vpow.pop %v2317
    %v2319 = vmul.f32 %v1576, 1.442695
    %v2320 = vpow.pop %v2319
    %v2321 = vmul.f32 %v1577, 1.442695
    %v2322 = vpow.pop %v2321
    %v2323 = vmul.f32 %v1578, 1.442695
    %v2324 = vpow.pop %v2323
    %v2325 = vmul.f32 %v1579, 1.442695
    %v2326 = vpow.pop %v2325
    %v2327 = vmul.f32 %v1580, 1.442695
    %v2328 = vpow.pop %v2327
    %v2329 = vmul.f32 %v1581, 1.442695
    %v2330 = vpow.pop %v2329
    %v2331 = vmul.f32 %v1582, 1.442695
    %v2332 = vpow.pop %v2331
    %v2333 = vmul.f32 %v1583, 1.442695
    %v2334 = vpow.pop %v2333
    %v2335 = vmul.f32 %v1584, 1.442695
    %v2336 = vpow.pop %v2335
    %v2337 = vmul.f32 %v1585, 1.442695
    %v2338 = vpow.pop %v2337
    %v2339 = vmul.f32 %v1586, 1.442695
    %v2340 = vpow.pop %v2339
    %v2341 = vmul.f32 %v1587, 1.442695
    %v2342 = vpow.pop %v2341
    %v2343 = vmul.f32 %v1588, 1.442695
    %v2344 = vpow.pop %v2343
    %v2345 = vmul.f32 %v1589, 1.442695
    %v2346 = vpow.pop %v2345
    %v2347 = vmul.f32 %v1590, 1.442695
    %v2348 = vpow.pop %v2347
    %v2349 = vmul.f32 %v1591, 1.442695
    %v2350 = vpow.pop %v2349
    %v2351 = vmul.f32 %v1592, 1.442695
    %v2352 = vpow.pop %v2351
    %v2353 = vmul.f32 %v1593, 1.442695
    %v2354 = vpow.pop %v2353
    %v2355 = vmul.f32 %v1594, 1.442695
    %v2356 = vpow.pop %v2355
    %v2357 = vmul.f32 %v1595, 1.442695
    %v2358 = vpow.pop %v2357
    %v2359 = vmul.f32 %v1596, 1.442695
    %v2360 = vpow.pop %v2359
    %v2361 = vmul.f32 %v1597, 1.442695
    %v2362 = vpow.pop %v2361
    %v2363 = vmul.f32 %v1598, 1.442695
    %v2364 = vpow.pop %v2363
    %v2365 = vmul.f32 %v1599, 1.442695
    %v2366 = vpow.pop %v2365
    %v2367 = vmul.f32 %v1600, 1.442695
    %v2368 = vpow.pop %v2367
    %v2369 = vmul.f32 %v1601, 1.442695
    %v2370 = vpow.pop %v2369
    %v2371 = vmul.f32 %v1602, 1.442695
    %v2372 = vpow.pop %v2371
    %v2373 = vmul.f32 %v1603, 1.442695
    %v2374 = vpow.pop %v2373
    %v2375 = vmul.f32 %v1604, 1.442695
    %v2376 = vpow.pop %v2375
    %v2377 = vmul.f32 %v1605, 1.442695
    %v2378 = vpow.pop %v2377
    %v2379 = vmul.f32 %v1606, 1.442695
    %v2380 = vpow.pop %v2379
    %v2381 = vmul.f32 %v1607, 1.442695
    %v2382 = vpow.pop %v2381
    %v2383 = vmul.f32 %v1608, 1.442695
    %v2384 = vpow.pop %v2383
    %v2385 = vmul.f32 %v1609, 1.442695
    %v2386 = vpow.pop %v2385
    %v2387 = vmul.f32 %v1610, 1.442695
    %v2388 = vpow.pop %v2387
    %v2389 = vmul.f32 %v1611, 1.442695
    %v2390 = vpow.pop %v2389
    %v2391 = vmul.f32 %v1612, 1.442695
    %v2392 = vpow.pop %v2391
    %v2393 = vadd.f32 %v1614, 1.0
    %v2394 = vadd.f32 %v1616, 1.0
    %v2395 = vadd.f32 %v1618, 1.0
    %v2396 = vadd.f32 %v1620, 1.0
    %v2397 = vadd.f32 %v1622, 1.0
    %v2398 = vadd.f32 %v1624, 1.0
    %v2399 = vadd.f32 %v1626, 1.0
    %v2400 = vadd.f32 %v1628, 1.0
    %v2401 = vadd.f32 %v1630, 1.0
    %v2402 = vadd.f32 %v1632, 1.0
    %v2403 = vadd.f32 %v1634, 1.0
    %v2404 = vadd.f32 %v1636, 1.0
    %v2405 = vadd.f32 %v1638, 1.0
    %v2406 = vadd.f32 %v1640, 1.0
    %v2407 = vadd.f32 %v1642, 1.0
    %v2408 = vadd.f32 %v1644, 1.0
    %v2409 = vadd.f32 %v1646, 1.0
    %v2410 = vadd.f32 %v1648, 1.0
    %v2411 = vadd.f32 %v1650, 1.0
    %v2412 = vadd.f32 %v1652, 1.0
    %v2413 = vadd.f32 %v1654, 1.0
    %v2414 = vadd.f32 %v1656, 1.0
    %v2415 = vadd.f32 %v1658, 1.0
    %v2416 = vadd.f32 %v1660, 1.0
    %v2417 = vadd.f32 %v1662, 1.0
    %v2418 = vadd.f32 %v1664, 1.0
    %v2419 = vadd.f32 %v1666, 1.0
    %v2420 = vadd.f32 %v1668, 1.0
    %v2421 = vadd.f32 %v1670, 1.0
    %v2422 = vadd.f32 %v1672, 1.0
    %v2423 = vadd.f32 %v1674, 1.0
    %v2424 = vadd.f32 %v1676, 1.0
    %v2425 = vadd.f32 %v1678, 1.0
    %v2426 = vadd.f32 %v1680, 1.0
    %v2427 = vadd.f32 %v1682, 1.0
    %v2428 = vadd.f32 %v1684, 1.0
    %v2429 = vadd.f32 %v1686, 1.0
    %v2430 = vadd.f32 %v1688, 1.0
    %v2431 = vadd.f32 %v1690, 1.0
    %v2432 = vadd.f32 %v1692, 1.0
    %v2433 = vadd.f32 %v1694, 1.0
    %v2434 = vadd.f32 %v1696, 1.0
    %v2435 = vadd.f32 %v1698, 1.0
    %v2436 = vadd.f32 %v1700, 1.0
    %v2437 = vadd.f32 %v1702, 1.0
    %v2438 = vadd.f32 %v1704, 1.0
    %v2439 = vadd.f32 %v1706, 1.0
    %v2440 = vadd.f32 %v1708, 1.0
    %v2441 = vadd.f32 %v1710, 1.0
    %v2442 = vadd.f32 %v1712, 1.0
    %v2443 = vadd.f32 %v1714, 1.0
    %v2444 = vadd.f32 %v1716, 1.0
    %v2445 = vadd.f32 %v1718, 1.0
    %v2446 = vadd.f32 %v1720, 1.0
    %v2447 = vadd.f32 %v1722, 1.0
    %v2448 = vadd.f32 %v1724, 1.0
    %v2449 = vadd.f32 %v1726, 1.0
    %v2450 = vadd.f32 %v1728, 1.0
    %v2451 = vadd.f32 %v1730, 1.0
    %v2452 = vadd.f32 %v1732, 1.0
    %v2453 = vadd.f32 %v1734, 1.0
    %v2454 = vadd.f32 %v1736, 1.0
    %v2455 = vadd.f32 %v1738, 1.0
    %v2456 = vadd.f32 %v1740, 1.0
    %v2457 = vadd.f32 %v1742, 1.0
    %v2458 = vadd.f32 %v1744, 1.0
    %v2459 = vadd.f32 %v1746, 1.0
    %v2460 = vadd.f32 %v1748, 1.0
    %v2461 = vadd.f32 %v1750, 1.0
    %v2462 = vadd.f32 %v1752, 1.0
    %v2463 = vadd.f32 %v1754, 1.0
    %v2464 = vadd.f32 %v1756, 1.0
    %v2465 = vadd.f32 %v1758, 1.0
    %v2466 = vadd.f32 %v1760, 1.0
    %v2467 = vadd.f32 %v1762, 1.0
    %v2468 = vadd.f32 %v1764, 1.0
    %v2469 = vadd.f32 %v1766, 1.0
    %v2470 = vadd.f32 %v1768, 1.0
    %v2471 = vadd.f32 %v1770, 1.0
    %v2472 = vadd.f32 %v1772, 1.0
    %v2473 = vadd.f32 %v1774, 1.0
    %v2474 = vadd.f32 %v1776, 1.0
    %v2475 = vadd.f32 %v1778, 1.0
    %v2476 = vadd.f32 %v1780, 1.0
    %v2477 = vadd.f32 %v1782, 1.0
    %v2478 = vadd.f32 %v1784, 1.0
    %v2479 = vadd.f32 %v1786, 1.0
    %v2480 = vadd.f32 %v1788, 1.0
    %v2481 = vadd.f32 %v1790, 1.0
    %v2482 = vadd.f32 %v1792, 1.0
    %v2483 = vadd.f32 %v1794, 1.0
    %v2484 = vadd.f32 %v1796, 1.0
    %v2485 = vadd.f32 %v1798, 1.0
    %v2486 = vadd.f32 %v1800, 1.0
    %v2487 = vadd.f32 %v1802, 1.0
    %v2488 = vadd.f32 %v1804, 1.0
    %v2489 = vadd.f32 %v1806, 1.0
    %v2490 = vadd.f32 %v1808, 1.0
    %v2491 = vadd.f32 %v1810, 1.0
    %v2492 = vadd.f32 %v1812, 1.0
    %v2493 = vadd.f32 %v1814, 1.0
    %v2494 = vadd.f32 %v1816, 1.0
    %v2495 = vadd.f32 %v1818, 1.0
    %v2496 = vadd.f32 %v1820, 1.0
    %v2497 = vadd.f32 %v1822, 1.0
    %v2498 = vadd.f32 %v1824, 1.0
    %v2499 = vadd.f32 %v1826, 1.0
    %v2500 = vadd.f32 %v1828, 1.0
    %v2501 = vadd.f32 %v1830, 1.0
    %v2502 = vadd.f32 %v1832, 1.0
    %v2503 = vadd.f32 %v1834, 1.0
    %v2504 = vadd.f32 %v1836, 1.0
    %v2505 = vadd.f32 %v1838, 1.0
    %v2506 = vadd.f32 %v1840, 1.0
    %v2507 = vadd.f32 %v1842, 1.0
    %v2508 = vadd.f32 %v1844, 1.0
    %v2509 = vadd.f32 %v1846, 1.0
    %v2510 = vadd.f32 %v1848, 1.0
    %v2511 = vadd.f32 %v1850, 1.0
    %v2512 = vadd.f32 %v1852, 1.0
    %v2513 = vadd.f32 %v1854, 1.0
    %v2514 = vadd.f32 %v1856, 1.0
    %v2515 = vadd.f32 %v1858, 1.0
    %v2516 = vadd.f32 %v1860, 1.0
    %v2517 = vadd.f32 %v1862, 1.0
    %v2518 = vadd.f32 %v1864, 1.0
    %v2519 = vadd.f32 %v1866, 1.0
    %v2520 = vadd.f32 %v1868, 1.0
    %v2521 = vadd.f32 %v1870, 1.0
    %v2522 = vadd.f32 %v1872, 1.0
    %v2523 = vadd.f32 %v1874, 1.0
    %v2524 = vadd.f32 %v1876, 1.0
    %v2525 = vadd.f32 %v1878, 1.0
    %v2526 = vadd.f32 %v1880, 1.0
    %v2527 = vadd.f32 %v1882, 1.0
    %v2528 = vadd.f32 %v1884, 1.0
    %v2529 = vadd.f32 %v1886, 1.0
    %v2530 = vadd.f32 %v1888, 1.0
    %v2531 = vadd.f32 %v1890, 1.0
    %v2532 = vadd.f32 %v1892, 1.0
    %v2533 = vadd.f32 %v1894, 1.0
    %v2534 = vadd.f32 %v1896, 1.0
    %v2535 = vadd.f32 %v1898, 1.0
    %v2536 = vadd.f32 %v1900, 1.0
    %v2537 = vadd.f32 %v1902, 1.0
    %v2538 = vadd.f32 %v1904, 1.0
    %v2539 = vadd.f32 %v1906, 1.0
    %v2540 = vadd.f32 %v1908, 1.0
    %v2541 = vadd.f32 %v1910, 1.0
    %v2542 = vadd.f32 %v1912, 1.0
    %v2543 = vadd.f32 %v1914, 1.0
    %v2544 = vadd.f32 %v1916, 1.0
    %v2545 = vadd.f32 %v1918, 1.0
    %v2546 = vadd.f32 %v1920, 1.0
    %v2547 = vadd.f32 %v1922, 1.0
    %v2548 = vadd.f32 %v1924, 1.0
    %v2549 = vadd.f32 %v1926, 1.0
    %v2550 = vadd.f32 %v1928, 1.0
    %v2551 = vadd.f32 %v1930, 1.0
    %v2552 = vadd.f32 %v1932, 1.0
    %v2553 = vadd.f32 %v1934, 1.0
    %v2554 = vadd.f32 %v1936, 1.0
    %v2555 = vadd.f32 %v1938, 1.0
    %v2556 = vadd.f32 %v1940, 1.0
    %v2557 = vadd.f32 %v1942, 1.0
    %v2558 = vadd.f32 %v1944, 1.0
    %v2559 = vadd.f32 %v1946, 1.0
    %v2560 = vadd.f32 %v1948, 1.0
    %v2561 = vadd.f32 %v1950, 1.0
    %v2562 = vadd.f32 %v1952, 1.0
    %v2563 = vadd.f32 %v1954, 1.0
    %v2564 = vadd.f32 %v1956, 1.0
    %v2565 = vadd.f32 %v1958, 1.0
    %v2566 = vadd.f32 %v1960, 1.0
    %v2567 = vadd.f32 %v1962, 1.0
    %v2568 = vadd.f32 %v1964, 1.0
    %v2569 = vadd.f32 %v1966, 1.0
    %v2570 = vadd.f32 %v1968, 1.0
    %v2571 = vadd.f32 %v1970, 1.0
    %v2572 = vadd.f32 %v1972, 1.0
    %v2573 = vadd.f32 %v1974, 1.0
    %v2574 = vadd.f32 %v1976, 1.0
    %v2575 = vadd.f32 %v1978, 1.0
    %v2576 = vadd.f32 %v1980, 1.0
    %v2577 = vadd.f32 %v1982, 1.0
    %v2578 = vadd.f32 %v1984, 1.0
    %v2579 = vadd.f32 %v1986, 1.0
    %v2580 = vadd.f32 %v1988, 1.0
    %v2581 = vadd.f32 %v1990, 1.0
    %v2582 = vadd.f32 %v1992, 1.0
    %v2583 = vadd.f32 %v1994, 1.0
    %v2584 = vadd.f32 %v1996, 1.0
    %v2585 = vadd.f32 %v1998, 1.0
    %v2586 = vadd.f32 %v2000, 1.0
    %v2587 = vadd.f32 %v2002, 1.0
    %v2588 = vadd.f32 %v2004, 1.0
    %v2589 = vadd.f32 %v2006, 1.0
    %v2590 = vadd.f32 %v2008, 1.0
    %v2591 = vadd.f32 %v2010, 1.0
    %v2592 = vadd.f32 %v2012, 1.0
    %v2593 = vadd.f32 %v2014, 1.0
    %v2594 = vadd.f32 %v2016, 1.0
    %v2595 = vadd.f32 %v2018, 1.0
    %v2596 = vadd.f32 %v2020, 1.0
    %v2597 = vadd.f32 %v2022, 1.0
    %v2598 = vadd.f32 %v2024, 1.0
    %v2599 = vadd.f32 %v2026, 1.0
    %v2600 = vadd.f32 %v2028, 1.0
    %v2601 = vadd.f32 %v2030, 1.0
    %v2602 = vadd.f32 %v2032, 1.0
    %v2603 = vadd.f32 %v2034, 1.0
    %v2604 = vadd.f32 %v2036, 1.0
    %v2605 = vadd.f32 %v2038, 1.0
    %v2606 = vadd.f32 %v2040, 1.0
    %v2607 = vadd.f32 %v2042, 1.0
    %v2608 = vadd.f32 %v2044, 1.0
    %v2609 = vadd.f32 %v2046, 1.0
    %v2610 = vadd.f32 %v2048, 1.0
    %v2611 = vadd.f32 %v2050, 1.0
    %v2612 = vadd.f32 %v2052, 1.0
    %v2613 = vadd.f32 %v2054, 1.0
    %v2614 = vadd.f32 %v2056, 1.0
    %v2615 = vadd.f32 %v2058, 1.0
    %v2616 = vadd.f32 %v2060, 1.0
    %v2617 = vadd.f32 %v2062, 1.0
    %v2618 = vadd.f32 %v2064, 1.0
    %v2619 = vadd.f32 %v2066, 1.0
    %v2620 = vadd.f32 %v2068, 1.0
    %v2621 = vadd.f32 %v2070, 1.0
    %v2622 = vadd.f32 %v2072, 1.0
    %v2623 = vadd.f32 %v2074, 1.0
    %v2624 = vadd.f32 %v2076, 1.0
    %v2625 = vadd.f32 %v2078, 1.0
    %v2626 = vadd.f32 %v2080, 1.0
    %v2627 = vadd.f32 %v2082, 1.0
    %v2628 = vadd.f32 %v2084, 1.0
    %v2629 = vadd.f32 %v2086, 1.0
    %v2630 = vadd.f32 %v2088, 1.0
    %v2631 = vadd.f32 %v2090, 1.0
    %v2632 = vadd.f32 %v2092, 1.0
    %v2633 = vadd.f32 %v2094, 1.0
    %v2634 = vadd.f32 %v2096, 1.0
    %v2635 = vadd.f32 %v2098, 1.0
    %v2636 = vadd.f32 %v2100, 1.0
    %v2637 = vadd.f32 %v2102, 1.0
    %v2638 = vadd.f32 %v2104, 1.0
    %v2639 = vadd.f32 %v2106, 1.0
    %v2640 = vadd.f32 %v2108, 1.0
    %v2641 = vadd.f32 %v2110, 1.0
    %v2642 = vadd.f32 %v2112, 1.0
    %v2643 = vadd.f32 %v2114, 1.0
    %v2644 = vadd.f32 %v2116, 1.0
    %v2645 = vadd.f32 %v2118, 1.0
    %v2646 = vadd.f32 %v2120, 1.0
    %v2647 = vadd.f32 %v2122, 1.0
    %v2648 = vadd.f32 %v2124, 1.0
    %v2649 = vadd.f32 %v2126, 1.0
    %v2650 = vadd.f32 %v2128, 1.0
    %v2651 = vadd.f32 %v2130, 1.0
    %v2652 = vadd.f32 %v2132, 1.0
    %v2653 = vadd.f32 %v2134, 1.0
    %v2654 = vadd.f32 %v2136, 1.0
    %v2655 = vadd.f32 %v2138, 1.0
    %v2656 = vadd.f32 %v2140, 1.0
    %v2657 = vadd.f32 %v2142, 1.0
    %v2658 = vadd.f32 %v2144, 1.0
    %v2659 = vadd.f32 %v2146, 1.0
    %v2660 = vadd.f32 %v2148, 1.0
    %v2661 = vadd.f32 %v2150, 1.0
    %v2662 = vadd.f32 %v2152, 1.0
    %v2663 = vadd.f32 %v2154, 1.0
    %v2664 = vadd.f32 %v2156, 1.0
    %v2665 = vadd.f32 %v2158, 1.0
    %v2666 = vadd.f32 %v2160, 1.0
    %v2667 = vadd.f32 %v2162, 1.0
    %v2668 = vadd.f32 %v2164, 1.0
    %v2669 = vadd.f32 %v2166, 1.0
    %v2670 = vadd.f32 %v2168, 1.0
    %v2671 = vadd.f32 %v2170, 1.0
    %v2672 = vadd.f32 %v2172, 1.0
    %v2673 = vadd.f32 %v2174, 1.0
    %v2674 = vadd.f32 %v2176, 1.0
    %v2675 = vadd.f32 %v2178, 1.0
    %v2676 = vadd.f32 %v2180, 1.0
    %v2677 = vadd.f32 %v2182, 1.0
    %v2678 = vadd.f32 %v2184, 1.0
    %v2679 = vadd.f32 %v2186, 1.0
    %v2680 = vadd.f32 %v2188, 1.0
    %v2681 = vadd.f32 %v2190, 1.0
    %v2682 = vadd.f32 %v2192, 1.0
    %v2683 = vadd.f32 %v2194, 1.0
    %v2684 = vadd.f32 %v2196, 1.0
    %v2685 = vadd.f32 %v2198, 1.0
    %v2686 = vadd.f32 %v2200, 1.0
    %v2687 = vadd.f32 %v2202, 1.0
    %v2688 = vadd.f32 %v2204, 1.0
    %v2689 = vadd.f32 %v2206, 1.0
    %v2690 = vadd.f32 %v2208, 1.0
    %v2691 = vadd.f32 %v2210, 1.0
    %v2692 = vadd.f32 %v2212, 1.0
    %v2693 = vadd.f32 %v2214, 1.0
    %v2694 = vadd.f32 %v2216, 1.0
    %v2695 = vadd.f32 %v2218, 1.0
    %v2696 = vadd.f32 %v2220, 1.0
    %v2697 = vadd.f32 %v2222, 1.0
    %v2698 = vadd.f32 %v2224, 1.0
    %v2699 = vadd.f32 %v2226, 1.0
    %v2700 = vadd.f32 %v2228, 1.0
    %v2701 = vadd.f32 %v2230, 1.0
    %v2702 = vadd.f32 %v2232, 1.0
    %v2703 = vadd.f32 %v2234, 1.0
    %v2704 = vadd.f32 %v2236, 1.0
    %v2705 = vadd.f32 %v2238, 1.0
    %v2706 = vadd.f32 %v2240, 1.0
    %v2707 = vadd.f32 %v2242, 1.0
    %v2708 = vadd.f32 %v2244, 1.0
    %v2709 = vadd.f32 %v2246, 1.0
    %v2710 = vadd.f32 %v2248, 1.0
    %v2711 = vadd.f32 %v2250, 1.0
    %v2712 = vadd.f32 %v2252, 1.0
    %v2713 = vadd.f32 %v2254, 1.0
    %v2714 = vadd.f32 %v2256, 1.0
    %v2715 = vadd.f32 %v2258, 1.0
    %v2716 = vadd.f32 %v2260, 1.0
    %v2717 = vadd.f32 %v2262, 1.0
    %v2718 = vadd.f32 %v2264, 1.0
    %v2719 = vadd.f32 %v2266, 1.0
    %v2720 = vadd.f32 %v2268, 1.0
    %v2721 = vadd.f32 %v2270, 1.0
    %v2722 = vadd.f32 %v2272, 1.0
    %v2723 = vadd.f32 %v2274, 1.0
    %v2724 = vadd.f32 %v2276, 1.0
    %v2725 = vadd.f32 %v2278, 1.0
    %v2726 = vadd.f32 %v2280, 1.0
    %v2727 = vadd.f32 %v2282, 1.0
    %v2728 = vadd.f32 %v2284, 1.0
    %v2729 = vadd.f32 %v2286, 1.0
    %v2730 = vadd.f32 %v2288, 1.0
    %v2731 = vadd.f32 %v2290, 1.0
    %v2732 = vadd.f32 %v2292, 1.0
    %v2733 = vadd.f32 %v2294, 1.0
    %v2734 = vadd.f32 %v2296, 1.0
    %v2735 = vadd.f32 %v2298, 1.0
    %v2736 = vadd.f32 %v2300, 1.0
    %v2737 = vadd.f32 %v2302, 1.0
    %v2738 = vadd.f32 %v2304, 1.0
    %v2739 = vadd.f32 %v2306, 1.0
    %v2740 = vadd.f32 %v2308, 1.0
    %v2741 = vadd.f32 %v2310, 1.0
    %v2742 = vadd.f32 %v2312, 1.0
    %v2743 = vadd.f32 %v2314, 1.0
    %v2744 = vadd.f32 %v2316, 1.0
    %v2745 = vadd.f32 %v2318, 1.0
    %v2746 = vadd.f32 %v2320, 1.0
    %v2747 = vadd.f32 %v2322, 1.0
    %v2748 = vadd.f32 %v2324, 1.0
    %v2749 = vadd.f32 %v2326, 1.0
    %v2750 = vadd.f32 %v2328, 1.0
    %v2751 = vadd.f32 %v2330, 1.0
    %v2752 = vadd.f32 %v2332, 1.0
    %v2753 = vadd.f32 %v2334, 1.0
    %v2754 = vadd.f32 %v2336, 1.0
    %v2755 = vadd.f32 %v2338, 1.0
    %v2756 = vadd.f32 %v2340, 1.0
    %v2757 = vadd.f32 %v2342, 1.0
    %v2758 = vadd.f32 %v2344, 1.0
    %v2759 = vadd.f32 %v2346, 1.0
    %v2760 = vadd.f32 %v2348, 1.0
    %v2761 = vadd.f32 %v2350, 1.0
    %v2762 = vadd.f32 %v2352, 1.0
    %v2763 = vadd.f32 %v2354, 1.0
    %v2764 = vadd.f32 %v2356, 1.0
    %v2765 = vadd.f32 %v2358, 1.0
    %v2766 = vadd.f32 %v2360, 1.0
    %v2767 = vadd.f32 %v2362, 1.0
    %v2768 = vadd.f32 %v2364, 1.0
    %v2769 = vadd.f32 %v2366, 1.0
    %v2770 = vadd.f32 %v2368, 1.0
    %v2771 = vadd.f32 %v2370, 1.0
    %v2772 = vadd.f32 %v2372, 1.0
    %v2773 = vadd.f32 %v2374, 1.0
    %v2774 = vadd.f32 %v2376, 1.0
    %v2775 = vadd.f32 %v2378, 1.0
    %v2776 = vadd.f32 %v2380, 1.0
    %v2777 = vadd.f32 %v2382, 1.0
    %v2778 = vadd.f32 %v2384, 1.0
    %v2779 = vadd.f32 %v2386, 1.0
    %v2780 = vadd.f32 %v2388, 1.0
    %v2781 = vadd.f32 %v2390, 1.0
    %v2782 = vadd.f32 %v2392, 1.0
    %v2783 = vlog2.pop %v2393
    %v2784 = vmul.f32 %v2783, 0.6931472
    %v2785 = vlog2.pop %v2394
    %v2786 = vmul.f32 %v2785, 0.6931472
    %v2787 = vlog2.pop %v2395
    %v2788 = vmul.f32 %v2787, 0.6931472
    %v2789 = vlog2.pop %v2396
    %v2790 = vmul.f32 %v2789, 0.6931472
    %v2791 = vlog2.pop %v2397
    %v2792 = vmul.f32 %v2791, 0.6931472
    %v2793 = vlog2.pop %v2398
    %v2794 = vmul.f32 %v2793, 0.6931472
    %v2795 = vlog2.pop %v2399
    %v2796 = vmul.f32 %v2795, 0.6931472
    %v2797 = vlog2.pop %v2400
    %v2798 = vmul.f32 %v2797, 0.6931472
    %v2799 = vlog2.pop %v2401
    %v2800 = vmul.f32 %v2799, 0.6931472
    %v2801 = vlog2.pop %v2402
    %v2802 = vmul.f32 %v2801, 0.6931472
    %v2803 = vlog2.pop %v2403
    %v2804 = vmul.f32 %v2803, 0.6931472
    %v2805 = vlog2.pop %v2404
    %v2806 = vmul.f32 %v2805, 0.6931472
    %v2807 = vlog2.pop %v2405
    %v2808 = vmul.f32 %v2807, 0.6931472
    %v2809 = vlog2.pop %v2406
    %v2810 = vmul.f32 %v2809, 0.6931472
    %v2811 = vlog2.pop %v2407
    %v2812 = vmul.f32 %v2811, 0.6931472
    %v2813 = vlog2.pop %v2408
    %v2814 = vmul.f32 %v2813, 0.6931472
    %v2815 = vlog2.pop %v2409
    %v2816 = vmul.f32 %v2815, 0.6931472
    %v2817 = vlog2.pop %v2410
    %v2818 = vmul.f32 %v2817, 0.6931472
    %v2819 = vlog2.pop %v2411
    %v2820 = vmul.f32 %v2819, 0.6931472
    %v2821 = vlog2.pop %v2412
    %v2822 = vmul.f32 %v2821, 0.6931472
    %v2823 = vlog2.pop %v2413
    %v2824 = vmul.f32 %v2823, 0.6931472
    %v2825 = vlog2.pop %v2414
    %v2826 = vmul.f32 %v2825, 0.6931472
    %v2827 = vlog2.pop %v2415
    %v2828 = vmul.f32 %v2827, 0.6931472
    %v2829 = vlog2.pop %v2416
    %v2830 = vmul.f32 %v2829, 0.6931472
    %v2831 = vlog2.pop %v2417
    %v2832 = vmul.f32 %v2831, 0.6931472
    %v2833 = vlog2.pop %v2418
    %v2834 = vmul.f32 %v2833, 0.6931472
    %v2835 = vlog2.pop %v2419
    %v2836 = vmul.f32 %v2835, 0.6931472
    %v2837 = vlog2.pop %v2420
    %v2838 = vmul.f32 %v2837, 0.6931472
    %v2839 = vlog2.pop %v2421
    %v2840 = vmul.f32 %v2839, 0.6931472
    %v2841 = vlog2.pop %v2422
    %v2842 = vmul.f32 %v2841, 0.6931472
    %v2843 = vlog2.pop %v2423
    %v2844 = vmul.f32 %v2843, 0.6931472
    %v2845 = vlog2.pop %v2424
    %v2846 = vmul.f32 %v2845, 0.6931472
    %v2847 = vlog2.pop %v2425
    %v2848 = vmul.f32 %v2847, 0.6931472
    %v2849 = vlog2.pop %v2426
    %v2850 = vmul.f32 %v2849, 0.6931472
    %v2851 = vlog2.pop %v2427
    %v2852 = vmul.f32 %v2851, 0.6931472
    %v2853 = vlog2.pop %v2428
    %v2854 = vmul.f32 %v2853, 0.6931472
    %v2855 = vlog2.pop %v2429
    %v2856 = vmul.f32 %v2855, 0.6931472
    %v2857 = vlog2.pop %v2430
    %v2858 = vmul.f32 %v2857, 0.6931472
    %v2859 = vlog2.pop %v2431
    %v2860 = vmul.f32 %v2859, 0.6931472
    %v2861 = vlog2.pop %v2432
    %v2862 = vmul.f32 %v2861, 0.6931472
    %v2863 = vlog2.pop %v2433
    %v2864 = vmul.f32 %v2863, 0.6931472
    %v2865 = vlog2.pop %v2434
    %v2866 = vmul.f32 %v2865, 0.6931472
    %v2867 = vlog2.pop %v2435
    %v2868 = vmul.f32 %v2867, 0.6931472
    %v2869 = vlog2.pop %v2436
    %v2870 = vmul.f32 %v2869, 0.6931472
    %v2871 = vlog2.pop %v2437
    %v2872 = vmul.f32 %v2871, 0.6931472
    %v2873 = vlog2.pop %v2438
    %v2874 = vmul.f32 %v2873, 0.6931472
    %v2875 = vlog2.pop %v2439
    %v2876 = vmul.f32 %v2875, 0.6931472
    %v2877 = vlog2.pop %v2440
    %v2878 = vmul.f32 %v2877, 0.6931472
    %v2879 = vlog2.pop %v2441
    %v2880 = vmul.f32 %v2879, 0.6931472
    %v2881 = vlog2.pop %v2442
    %v2882 = vmul.f32 %v2881, 0.6931472
    %v2883 = vlog2.pop %v2443
    %v2884 = vmul.f32 %v2883, 0.6931472
    %v2885 = vlog2.pop %v2444
    %v2886 = vmul.f32 %v2885, 0.6931472
    %v2887 = vlog2.pop %v2445
    %v2888 = vmul.f32 %v2887, 0.6931472
    %v2889 = vlog2.pop %v2446
    %v2890 = vmul.f32 %v2889, 0.6931472
    %v2891 = vlog2.pop %v2447
    %v2892 = vmul.f32 %v2891, 0.6931472
    %v2893 = vlog2.pop %v2448
    %v2894 = vmul.f32 %v2893, 0.6931472
    %v2895 = vlog2.pop %v2449
    %v2896 = vmul.f32 %v2895, 0.6931472
    %v2897 = vlog2.pop %v2450
    %v2898 = vmul.f32 %v2897, 0.6931472
    %v2899 = vlog2.pop %v2451
    %v2900 = vmul.f32 %v2899, 0.6931472
    %v2901 = vlog2.pop %v2452
    %v2902 = vmul.f32 %v2901, 0.6931472
    %v2903 = vlog2.pop %v2453
    %v2904 = vmul.f32 %v2903, 0.6931472
    %v2905 = vlog2.pop %v2454
    %v2906 = vmul.f32 %v2905, 0.6931472
    %v2907 = vlog2.pop %v2455
    %v2908 = vmul.f32 %v2907, 0.6931472
    %v2909 = vlog2.pop %v2456
    %v2910 = vmul.f32 %v2909, 0.6931472
    %v2911 = vlog2.pop %v2457
    %v2912 = vmul.f32 %v2911, 0.6931472
    %v2913 = vlog2.pop %v2458
    %v2914 = vmul.f32 %v2913, 0.6931472
    %v2915 = vlog2.pop %v2459
    %v2916 = vmul.f32 %v2915, 0.6931472
    %v2917 = vlog2.pop %v2460
    %v2918 = vmul.f32 %v2917, 0.6931472
    %v2919 = vlog2.pop %v2461
    %v2920 = vmul.f32 %v2919, 0.6931472
    %v2921 = vlog2.pop %v2462
    %v2922 = vmul.f32 %v2921, 0.6931472
    %v2923 = vlog2.pop %v2463
    %v2924 = vmul.f32 %v2923, 0.6931472
    %v2925 = vlog2.pop %v2464
    %v2926 = vmul.f32 %v2925, 0.6931472
    %v2927 = vlog2.pop %v2465
    %v2928 = vmul.f32 %v2927, 0.6931472
    %v2929 = vlog2.pop %v2466
    %v2930 = vmul.f32 %v2929, 0.6931472
    %v2931 = vlog2.pop %v2467
    %v2932 = vmul.f32 %v2931, 0.6931472
    %v2933 = vlog2.pop %v2468
    %v2934 = vmul.f32 %v2933, 0.6931472
    %v2935 = vlog2.pop %v2469
    %v2936 = vmul.f32 %v2935, 0.6931472
    %v2937 = vlog2.pop %v2470
    %v2938 = vmul.f32 %v2937, 0.6931472
    %v2939 = vlog2.pop %v2471
    %v2940 = vmul.f32 %v2939, 0.6931472
    %v2941 = vlog2.pop %v2472
    %v2942 = vmul.f32 %v2941, 0.6931472
    %v2943 = vlog2.pop %v2473
    %v2944 = vmul.f32 %v2943, 0.6931472
    %v2945 = vlog2.pop %v2474
    %v2946 = vmul.f32 %v2945, 0.6931472
    %v2947 = vlog2.pop %v2475
    %v2948 = vmul.f32 %v2947, 0.6931472
    %v2949 = vlog2.pop %v2476
    %v2950 = vmul.f32 %v2949, 0.6931472
    %v2951 = vlog2.pop %v2477
    %v2952 = vmul.f32 %v2951, 0.6931472
    %v2953 = vlog2.pop %v2478
    %v2954 = vmul.f32 %v2953, 0.6931472
    %v2955 = vlog2.pop %v2479
    %v2956 = vmul.f32 %v2955, 0.6931472
    %v2957 = vlog2.pop %v2480
    %v2958 = vmul.f32 %v2957, 0.6931472
    %v2959 = vlog2.pop %v2481
    %v2960 = vmul.f32 %v2959, 0.6931472
    %v2961 = vlog2.pop %v2482
    %v2962 = vmul.f32 %v2961, 0.6931472
    %v2963 = vlog2.pop %v2483
    %v2964 = vmul.f32 %v2963, 0.6931472
    %v2965 = vlog2.pop %v2484
    %v2966 = vmul.f32 %v2965, 0.6931472
    %v2967 = vlog2.pop %v2485
    %v2968 = vmul.f32 %v2967, 0.6931472
    %v2969 = vlog2.pop %v2486
    %v2970 = vmul.f32 %v2969, 0.6931472
    %v2971 = vlog2.pop %v2487
    %v2972 = vmul.f32 %v2971, 0.6931472
    %v2973 = vlog2.pop %v2488
    %v2974 = vmul.f32 %v2973, 0.6931472
    %v2975 = vlog2.pop %v2489
    %v2976 = vmul.f32 %v2975, 0.6931472
    %v2977 = vlog2.pop %v2490
    %v2978 = vmul.f32 %v2977, 0.6931472
    %v2979 = vlog2.pop %v2491
    %v2980 = vmul.f32 %v2979, 0.6931472
    %v2981 = vlog2.pop %v2492
    %v2982 = vmul.f32 %v2981, 0.6931472
    %v2983 = vlog2.pop %v2493
    %v2984 = vmul.f32 %v2983, 0.6931472
    %v2985 = vlog2.pop %v2494
    %v2986 = vmul.f32 %v2985, 0.6931472
    %v2987 = vlog2.pop %v2495
    %v2988 = vmul.f32 %v2987, 0.6931472
    %v2989 = vlog2.pop %v2496
    %v2990 = vmul.f32 %v2989, 0.6931472
    %v2991 = vlog2.pop %v2497
    %v2992 = vmul.f32 %v2991, 0.6931472
    %v2993 = vlog2.pop %v2498
    %v2994 = vmul.f32 %v2993, 0.6931472
    %v2995 = vlog2.pop %v2499
    %v2996 = vmul.f32 %v2995, 0.6931472
    %v2997 = vlog2.pop %v2500
    %v2998 = vmul.f32 %v2997, 0.6931472
    %v2999 = vlog2.pop %v2501
    %v3000 = vmul.f32 %v2999, 0.6931472
    %v3001 = vlog2.pop %v2502
    %v3002 = vmul.f32 %v3001, 0.6931472
    %v3003 = vlog2.pop %v2503
    %v3004 = vmul.f32 %v3003, 0.6931472
    %v3005 = vlog2.pop %v2504
    %v3006 = vmul.f32 %v3005, 0.6931472
    %v3007 = vlog2.pop %v2505
    %v3008 = vmul.f32 %v3007, 0.6931472
    %v3009 = vlog2.pop %v2506
    %v3010 = vmul.f32 %v3009, 0.6931472
    %v3011 = vlog2.pop %v2507
    %v3012 = vmul.f32 %v3011, 0.6931472
    %v3013 = vlog2.pop %v2508
    %v3014 = vmul.f32 %v3013, 0.6931472
    %v3015 = vlog2.pop %v2509
    %v3016 = vmul.f32 %v3015, 0.6931472
    %v3017 = vlog2.pop %v2510
    %v3018 = vmul.f32 %v3017, 0.6931472
    %v3019 = vlog2.pop %v2511
    %v3020 = vmul.f32 %v3019, 0.6931472
    %v3021 = vlog2.pop %v2512
    %v3022 = vmul.f32 %v3021, 0.6931472
    %v3023 = vlog2.pop %v2513
    %v3024 = vmul.f32 %v3023, 0.6931472
    %v3025 = vlog2.pop %v2514
    %v3026 = vmul.f32 %v3025, 0.6931472
    %v3027 = vlog2.pop %v2515
    %v3028 = vmul.f32 %v3027, 0.6931472
    %v3029 = vlog2.pop %v2516
    %v3030 = vmul.f32 %v3029, 0.6931472
    %v3031 = vlog2.pop %v2517
    %v3032 = vmul.f32 %v3031, 0.6931472
    %v3033 = vlog2.pop %v2518
    %v3034 = vmul.f32 %v3033, 0.6931472
    %v3035 = vlog2.pop %v2519
    %v3036 = vmul.f32 %v3035, 0.6931472
    %v3037 = vlog2.pop %v2520
    %v3038 = vmul.f32 %v3037, 0.6931472
    %v3039 = vlog2.pop %v2521
    %v3040 = vmul.f32 %v3039, 0.6931472
    %v3041 = vlog2.pop %v2522
    %v3042 = vmul.f32 %v3041, 0.6931472
    %v3043 = vlog2.pop %v2523
    %v3044 = vmul.f32 %v3043, 0.6931472
    %v3045 = vlog2.pop %v2524
    %v3046 = vmul.f32 %v3045, 0.6931472
    %v3047 = vlog2.pop %v2525
    %v3048 = vmul.f32 %v3047, 0.6931472
    %v3049 = vlog2.pop %v2526
    %v3050 = vmul.f32 %v3049, 0.6931472
    %v3051 = vlog2.pop %v2527
    %v3052 = vmul.f32 %v3051, 0.6931472
    %v3053 = vlog2.pop %v2528
    %v3054 = vmul.f32 %v3053, 0.6931472
    %v3055 = vlog2.pop %v2529
    %v3056 = vmul.f32 %v3055, 0.6931472
    %v3057 = vlog2.pop %v2530
    %v3058 = vmul.f32 %v3057, 0.6931472
    %v3059 = vlog2.pop %v2531
    %v3060 = vmul.f32 %v3059, 0.6931472
    %v3061 = vlog2.pop %v2532
    %v3062 = vmul.f32 %v3061, 0.6931472
    %v3063 = vlog2.pop %v2533
    %v3064 = vmul.f32 %v3063, 0.6931472
    %v3065 = vlog2.pop %v2534
    %v3066 = vmul.f32 %v3065, 0.6931472
    %v3067 = vlog2.pop %v2535
    %v3068 = vmul.f32 %v3067, 0.6931472
    %v3069 = vlog2.pop %v2536
    %v3070 = vmul.f32 %v3069, 0.6931472
    %v3071 = vlog2.pop %v2537
    %v3072 = vmul.f32 %v3071, 0.6931472
    %v3073 = vlog2.pop %v2538
    %v3074 = vmul.f32 %v3073, 0.6931472
    %v3075 = vlog2.pop %v2539
    %v3076 = vmul.f32 %v3075, 0.6931472
    %v3077 = vlog2.pop %v2540
    %v3078 = vmul.f32 %v3077, 0.6931472
    %v3079 = vlog2.pop %v2541
    %v3080 = vmul.f32 %v3079, 0.6931472
    %v3081 = vlog2.pop %v2542
    %v3082 = vmul.f32 %v3081, 0.6931472
    %v3083 = vlog2.pop %v2543
    %v3084 = vmul.f32 %v3083, 0.6931472
    %v3085 = vlog2.pop %v2544
    %v3086 = vmul.f32 %v3085, 0.6931472
    %v3087 = vlog2.pop %v2545
    %v3088 = vmul.f32 %v3087, 0.6931472
    %v3089 = vlog2.pop %v2546
    %v3090 = vmul.f32 %v3089, 0.6931472
    %v3091 = vlog2.pop %v2547
    %v3092 = vmul.f32 %v3091, 0.6931472
    %v3093 = vlog2.pop %v2548
    %v3094 = vmul.f32 %v3093, 0.6931472
    %v3095 = vlog2.pop %v2549
    %v3096 = vmul.f32 %v3095, 0.6931472
    %v3097 = vlog2.pop %v2550
    %v3098 = vmul.f32 %v3097, 0.6931472
    %v3099 = vlog2.pop %v2551
    %v3100 = vmul.f32 %v3099, 0.6931472
    %v3101 = vlog2.pop %v2552
    %v3102 = vmul.f32 %v3101, 0.6931472
    %v3103 = vlog2.pop %v2553
    %v3104 = vmul.f32 %v3103, 0.6931472
    %v3105 = vlog2.pop %v2554
    %v3106 = vmul.f32 %v3105, 0.6931472
    %v3107 = vlog2.pop %v2555
    %v3108 = vmul.f32 %v3107, 0.6931472
    %v3109 = vlog2.pop %v2556
    %v3110 = vmul.f32 %v3109, 0.6931472
    %v3111 = vlog2.pop %v2557
    %v3112 = vmul.f32 %v3111, 0.6931472
    %v3113 = vlog2.pop %v2558
    %v3114 = vmul.f32 %v3113, 0.6931472
    %v3115 = vlog2.pop %v2559
    %v3116 = vmul.f32 %v3115, 0.6931472
    %v3117 = vlog2.pop %v2560
    %v3118 = vmul.f32 %v3117, 0.6931472
    %v3119 = vlog2.pop %v2561
    %v3120 = vmul.f32 %v3119, 0.6931472
    %v3121 = vlog2.pop %v2562
    %v3122 = vmul.f32 %v3121, 0.6931472
    %v3123 = vlog2.pop %v2563
    %v3124 = vmul.f32 %v3123, 0.6931472
    %v3125 = vlog2.pop %v2564
    %v3126 = vmul.f32 %v3125, 0.6931472
    %v3127 = vlog2.pop %v2565
    %v3128 = vmul.f32 %v3127, 0.6931472
    %v3129 = vlog2.pop %v2566
    %v3130 = vmul.f32 %v3129, 0.6931472
    %v3131 = vlog2.pop %v2567
    %v3132 = vmul.f32 %v3131, 0.6931472
    %v3133 = vlog2.pop %v2568
    %v3134 = vmul.f32 %v3133, 0.6931472
    %v3135 = vlog2.pop %v2569
    %v3136 = vmul.f32 %v3135, 0.6931472
    %v3137 = vlog2.pop %v2570
    %v3138 = vmul.f32 %v3137, 0.6931472
    %v3139 = vlog2.pop %v2571
    %v3140 = vmul.f32 %v3139, 0.6931472
    %v3141 = vlog2.pop %v2572
    %v3142 = vmul.f32 %v3141, 0.6931472
    %v3143 = vlog2.pop %v2573
    %v3144 = vmul.f32 %v3143, 0.6931472
    %v3145 = vlog2.pop %v2574
    %v3146 = vmul.f32 %v3145, 0.6931472
    %v3147 = vlog2.pop %v2575
    %v3148 = vmul.f32 %v3147, 0.6931472
    %v3149 = vlog2.pop %v2576
    %v3150 = vmul.f32 %v3149, 0.6931472
    %v3151 = vlog2.pop %v2577
    %v3152 = vmul.f32 %v3151, 0.6931472
    %v3153 = vlog2.pop %v2578
    %v3154 = vmul.f32 %v3153, 0.6931472
    %v3155 = vlog2.pop %v2579
    %v3156 = vmul.f32 %v3155, 0.6931472
    %v3157 = vlog2.pop %v2580
    %v3158 = vmul.f32 %v3157, 0.6931472
    %v3159 = vlog2.pop %v2581
    %v3160 = vmul.f32 %v3159, 0.6931472
    %v3161 = vlog2.pop %v2582
    %v3162 = vmul.f32 %v3161, 0.6931472
    %v3163 = vlog2.pop %v2583
    %v3164 = vmul.f32 %v3163, 0.6931472
    %v3165 = vlog2.pop %v2584
    %v3166 = vmul.f32 %v3165, 0.6931472
    %v3167 = vlog2.pop %v2585
    %v3168 = vmul.f32 %v3167, 0.6931472
    %v3169 = vlog2.pop %v2586
    %v3170 = vmul.f32 %v3169, 0.6931472
    %v3171 = vlog2.pop %v2587
    %v3172 = vmul.f32 %v3171, 0.6931472
    %v3173 = vlog2.pop %v2588
    %v3174 = vmul.f32 %v3173, 0.6931472
    %v3175 = vlog2.pop %v2589
    %v3176 = vmul.f32 %v3175, 0.6931472
    %v3177 = vlog2.pop %v2590
    %v3178 = vmul.f32 %v3177, 0.6931472
    %v3179 = vlog2.pop %v2591
    %v3180 = vmul.f32 %v3179, 0.6931472
    %v3181 = vlog2.pop %v2592
    %v3182 = vmul.f32 %v3181, 0.6931472
    %v3183 = vlog2.pop %v2593
    %v3184 = vmul.f32 %v3183, 0.6931472
    %v3185 = vlog2.pop %v2594
    %v3186 = vmul.f32 %v3185, 0.6931472
    %v3187 = vlog2.pop %v2595
    %v3188 = vmul.f32 %v3187, 0.6931472
    %v3189 = vlog2.pop %v2596
    %v3190 = vmul.f32 %v3189, 0.6931472
    %v3191 = vlog2.pop %v2597
    %v3192 = vmul.f32 %v3191, 0.6931472
    %v3193 = vlog2.pop %v2598
    %v3194 = vmul.f32 %v3193, 0.6931472
    %v3195 = vlog2.pop %v2599
    %v3196 = vmul.f32 %v3195, 0.6931472
    %v3197 = vlog2.pop %v2600
    %v3198 = vmul.f32 %v3197, 0.6931472
    %v3199 = vlog2.pop %v2601
    %v3200 = vmul.f32 %v3199, 0.6931472
    %v3201 = vlog2.pop %v2602
    %v3202 = vmul.f32 %v3201, 0.6931472
    %v3203 = vlog2.pop %v2603
    %v3204 = vmul.f32 %v3203, 0.6931472
    %v3205 = vlog2.pop %v2604
    %v3206 = vmul.f32 %v3205, 0.6931472
    %v3207 = vlog2.pop %v2605
    %v3208 = vmul.f32 %v3207, 0.6931472
    %v3209 = vlog2.pop %v2606
    %v3210 = vmul.f32 %v3209, 0.6931472
    %v3211 = vlog2.pop %v2607
    %v3212 = vmul.f32 %v3211, 0.6931472
    %v3213 = vlog2.pop %v2608
    %v3214 = vmul.f32 %v3213, 0.6931472
    %v3215 = vlog2.pop %v2609
    %v3216 = vmul.f32 %v3215, 0.6931472
    %v3217 = vlog2.pop %v2610
    %v3218 = vmul.f32 %v3217, 0.6931472
    %v3219 = vlog2.pop %v2611
    %v3220 = vmul.f32 %v3219, 0.6931472
    %v3221 = vlog2.pop %v2612
    %v3222 = vmul.f32 %v3221, 0.6931472
    %v3223 = vlog2.pop %v2613
    %v3224 = vmul.f32 %v3223, 0.6931472
    %v3225 = vlog2.pop %v2614
    %v3226 = vmul.f32 %v3225, 0.6931472
    %v3227 = vlog2.pop %v2615
    %v3228 = vmul.f32 %v3227, 0.6931472
    %v3229 = vlog2.pop %v2616
    %v3230 = vmul.f32 %v3229, 0.6931472
    %v3231 = vlog2.pop %v2617
    %v3232 = vmul.f32 %v3231, 0.6931472
    %v3233 = vlog2.pop %v2618
    %v3234 = vmul.f32 %v3233, 0.6931472
    %v3235 = vlog2.pop %v2619
    %v3236 = vmul.f32 %v3235, 0.6931472
    %v3237 = vlog2.pop %v2620
    %v3238 = vmul.f32 %v3237, 0.6931472
    %v3239 = vlog2.pop %v2621
    %v3240 = vmul.f32 %v3239, 0.6931472
    %v3241 = vlog2.pop %v2622
    %v3242 = vmul.f32 %v3241, 0.6931472
    %v3243 = vlog2.pop %v2623
    %v3244 = vmul.f32 %v3243, 0.6931472
    %v3245 = vlog2.pop %v2624
    %v3246 = vmul.f32 %v3245, 0.6931472
    %v3247 = vlog2.pop %v2625
    %v3248 = vmul.f32 %v3247, 0.6931472
    %v3249 = vlog2.pop %v2626
    %v3250 = vmul.f32 %v3249, 0.6931472
    %v3251 = vlog2.pop %v2627
    %v3252 = vmul.f32 %v3251, 0.6931472
    %v3253 = vlog2.pop %v2628
    %v3254 = vmul.f32 %v3253, 0.6931472
    %v3255 = vlog2.pop %v2629
    %v3256 = vmul.f32 %v3255, 0.6931472
    %v3257 = vlog2.pop %v2630
    %v3258 = vmul.f32 %v3257, 0.6931472
    %v3259 = vlog2.pop %v2631
    %v3260 = vmul.f32 %v3259, 0.6931472
    %v3261 = vlog2.pop %v2632
    %v3262 = vmul.f32 %v3261, 0.6931472
    %v3263 = vlog2.pop %v2633
    %v3264 = vmul.f32 %v3263, 0.6931472
    %v3265 = vlog2.pop %v2634
    %v3266 = vmul.f32 %v3265, 0.6931472
    %v3267 = vlog2.pop %v2635
    %v3268 = vmul.f32 %v3267, 0.6931472
    %v3269 = vlog2.pop %v2636
    %v3270 = vmul.f32 %v3269, 0.6931472
    %v3271 = vlog2.pop %v2637
    %v3272 = vmul.f32 %v3271, 0.6931472
    %v3273 = vlog2.pop %v2638
    %v3274 = vmul.f32 %v3273, 0.6931472
    %v3275 = vlog2.pop %v2639
    %v3276 = vmul.f32 %v3275, 0.6931472
    %v3277 = vlog2.pop %v2640
    %v3278 = vmul.f32 %v3277, 0.6931472
    %v3279 = vlog2.pop %v2641
    %v3280 = vmul.f32 %v3279, 0.6931472
    %v3281 = vlog2.pop %v2642
    %v3282 = vmul.f32 %v3281, 0.6931472
    %v3283 = vlog2.pop %v2643
    %v3284 = vmul.f32 %v3283, 0.6931472
    %v3285 = vlog2.pop %v2644
    %v3286 = vmul.f32 %v3285, 0.6931472
    %v3287 = vlog2.pop %v2645
    %v3288 = vmul.f32 %v3287, 0.6931472
    %v3289 = vlog2.pop %v2646
    %v3290 = vmul.f32 %v3289, 0.6931472
    %v3291 = vlog2.pop %v2647
    %v3292 = vmul.f32 %v3291, 0.6931472
    %v3293 = vlog2.pop %v2648
    %v3294 = vmul.f32 %v3293, 0.6931472
    %v3295 = vlog2.pop %v2649
    %v3296 = vmul.f32 %v3295, 0.6931472
    %v3297 = vlog2.pop %v2650
    %v3298 = vmul.f32 %v3297, 0.6931472
    %v3299 = vlog2.pop %v2651
    %v3300 = vmul.f32 %v3299, 0.6931472
    %v3301 = vlog2.pop %v2652
    %v3302 = vmul.f32 %v3301, 0.6931472
    %v3303 = vlog2.pop %v2653
    %v3304 = vmul.f32 %v3303, 0.6931472
    %v3305 = vlog2.pop %v2654
    %v3306 = vmul.f32 %v3305, 0.6931472
    %v3307 = vlog2.pop %v2655
    %v3308 = vmul.f32 %v3307, 0.6931472
    %v3309 = vlog2.pop %v2656
    %v3310 = vmul.f32 %v3309, 0.6931472
    %v3311 = vlog2.pop %v2657
    %v3312 = vmul.f32 %v3311, 0.6931472
    %v3313 = vlog2.pop %v2658
    %v3314 = vmul.f32 %v3313, 0.6931472
    %v3315 = vlog2.pop %v2659
    %v3316 = vmul.f32 %v3315, 0.6931472
    %v3317 = vlog2.pop %v2660
    %v3318 = vmul.f32 %v3317, 0.6931472
    %v3319 = vlog2.pop %v2661
    %v3320 = vmul.f32 %v3319, 0.6931472
    %v3321 = vlog2.pop %v2662
    %v3322 = vmul.f32 %v3321, 0.6931472
    %v3323 = vlog2.pop %v2663
    %v3324 = vmul.f32 %v3323, 0.6931472
    %v3325 = vlog2.pop %v2664
    %v3326 = vmul.f32 %v3325, 0.6931472
    %v3327 = vlog2.pop %v2665
    %v3328 = vmul.f32 %v3327, 0.6931472
    %v3329 = vlog2.pop %v2666
    %v3330 = vmul.f32 %v3329, 0.6931472
    %v3331 = vlog2.pop %v2667
    %v3332 = vmul.f32 %v3331, 0.6931472
    %v3333 = vlog2.pop %v2668
    %v3334 = vmul.f32 %v3333, 0.6931472
    %v3335 = vlog2.pop %v2669
    %v3336 = vmul.f32 %v3335, 0.6931472
    %v3337 = vlog2.pop %v2670
    %v3338 = vmul.f32 %v3337, 0.6931472
    %v3339 = vlog2.pop %v2671
    %v3340 = vmul.f32 %v3339, 0.6931472
    %v3341 = vlog2.pop %v2672
    %v3342 = vmul.f32 %v3341, 0.6931472
    %v3343 = vlog2.pop %v2673
    %v3344 = vmul.f32 %v3343, 0.6931472
    %v3345 = vlog2.pop %v2674
    %v3346 = vmul.f32 %v3345, 0.6931472
    %v3347 = vlog2.pop %v2675
    %v3348 = vmul.f32 %v3347, 0.6931472
    %v3349 = vlog2.pop %v2676
    %v3350 = vmul.f32 %v3349, 0.6931472
    %v3351 = vlog2.pop %v2677
    %v3352 = vmul.f32 %v3351, 0.6931472
    %v3353 = vlog2.pop %v2678
    %v3354 = vmul.f32 %v3353, 0.6931472
    %v3355 = vlog2.pop %v2679
    %v3356 = vmul.f32 %v3355, 0.6931472
    %v3357 = vlog2.pop %v2680
    %v3358 = vmul.f32 %v3357, 0.6931472
    %v3359 = vlog2.pop %v2681
    %v3360 = vmul.f32 %v3359, 0.6931472
    %v3361 = vlog2.pop %v2682
    %v3362 = vmul.f32 %v3361, 0.6931472
    %v3363 = vlog2.pop %v2683
    %v3364 = vmul.f32 %v3363, 0.6931472
    %v3365 = vlog2.pop %v2684
    %v3366 = vmul.f32 %v3365, 0.6931472
    %v3367 = vlog2.pop %v2685
    %v3368 = vmul.f32 %v3367, 0.6931472
    %v3369 = vlog2.pop %v2686
    %v3370 = vmul.f32 %v3369, 0.6931472
    %v3371 = vlog2.pop %v2687
    %v3372 = vmul.f32 %v3371, 0.6931472
    %v3373 = vlog2.pop %v2688
    %v3374 = vmul.f32 %v3373, 0.6931472
    %v3375 = vlog2.pop %v2689
    %v3376 = vmul.f32 %v3375, 0.6931472
    %v3377 = vlog2.pop %v2690
    %v3378 = vmul.f32 %v3377, 0.6931472
    %v3379 = vlog2.pop %v2691
    %v3380 = vmul.f32 %v3379, 0.6931472
    %v3381 = vlog2.pop %v2692
    %v3382 = vmul.f32 %v3381, 0.6931472
    %v3383 = vlog2.pop %v2693
    %v3384 = vmul.f32 %v3383, 0.6931472
    %v3385 = vlog2.pop %v2694
    %v3386 = vmul.f32 %v3385, 0.6931472
    %v3387 = vlog2.pop %v2695
    %v3388 = vmul.f32 %v3387, 0.6931472
    %v3389 = vlog2.pop %v2696
    %v3390 = vmul.f32 %v3389, 0.6931472
    %v3391 = vlog2.pop %v2697
    %v3392 = vmul.f32 %v3391, 0.6931472
    %v3393 = vlog2.pop %v2698
    %v3394 = vmul.f32 %v3393, 0.6931472
    %v3395 = vlog2.pop %v2699
    %v3396 = vmul.f32 %v3395, 0.6931472
    %v3397 = vlog2.pop %v2700
    %v3398 = vmul.f32 %v3397, 0.6931472
    %v3399 = vlog2.pop %v2701
    %v3400 = vmul.f32 %v3399, 0.6931472
    %v3401 = vlog2.pop %v2702
    %v3402 = vmul.f32 %v3401, 0.6931472
    %v3403 = vlog2.pop %v2703
    %v3404 = vmul.f32 %v3403, 0.6931472
    %v3405 = vlog2.pop %v2704
    %v3406 = vmul.f32 %v3405, 0.6931472
    %v3407 = vlog2.pop %v2705
    %v3408 = vmul.f32 %v3407, 0.6931472
    %v3409 = vlog2.pop %v2706
    %v3410 = vmul.f32 %v3409, 0.6931472
    %v3411 = vlog2.pop %v2707
    %v3412 = vmul.f32 %v3411, 0.6931472
    %v3413 = vlog2.pop %v2708
    %v3414 = vmul.f32 %v3413, 0.6931472
    %v3415 = vlog2.pop %v2709
    %v3416 = vmul.f32 %v3415, 0.6931472
    %v3417 = vlog2.pop %v2710
    %v3418 = vmul.f32 %v3417, 0.6931472
    %v3419 = vlog2.pop %v2711
    %v3420 = vmul.f32 %v3419, 0.6931472
    %v3421 = vlog2.pop %v2712
    %v3422 = vmul.f32 %v3421, 0.6931472
    %v3423 = vlog2.pop %v2713
    %v3424 = vmul.f32 %v3423, 0.6931472
    %v3425 = vlog2.pop %v2714
    %v3426 = vmul.f32 %v3425, 0.6931472
    %v3427 = vlog2.pop %v2715
    %v3428 = vmul.f32 %v3427, 0.6931472
    %v3429 = vlog2.pop %v2716
    %v3430 = vmul.f32 %v3429, 0.6931472
    %v3431 = vlog2.pop %v2717
    %v3432 = vmul.f32 %v3431, 0.6931472
    %v3433 = vlog2.pop %v2718
    %v3434 = vmul.f32 %v3433, 0.6931472
    %v3435 = vlog2.pop %v2719
    %v3436 = vmul.f32 %v3435, 0.6931472
    %v3437 = vlog2.pop %v2720
    %v3438 = vmul.f32 %v3437, 0.6931472
    %v3439 = vlog2.pop %v2721
    %v3440 = vmul.f32 %v3439, 0.6931472
    %v3441 = vlog2.pop %v2722
    %v3442 = vmul.f32 %v3441, 0.6931472
    %v3443 = vlog2.pop %v2723
    %v3444 = vmul.f32 %v3443, 0.6931472
    %v3445 = vlog2.pop %v2724
    %v3446 = vmul.f32 %v3445, 0.6931472
    %v3447 = vlog2.pop %v2725
    %v3448 = vmul.f32 %v3447, 0.6931472
    %v3449 = vlog2.pop %v2726
    %v3450 = vmul.f32 %v3449, 0.6931472
    %v3451 = vlog2.pop %v2727
    %v3452 = vmul.f32 %v3451, 0.6931472
    %v3453 = vlog2.pop %v2728
    %v3454 = vmul.f32 %v3453, 0.6931472
    %v3455 = vlog2.pop %v2729
    %v3456 = vmul.f32 %v3455, 0.6931472
    %v3457 = vlog2.pop %v2730
    %v3458 = vmul.f32 %v3457, 0.6931472
    %v3459 = vlog2.pop %v2731
    %v3460 = vmul.f32 %v3459, 0.6931472
    %v3461 = vlog2.pop %v2732
    %v3462 = vmul.f32 %v3461, 0.6931472
    %v3463 = vlog2.pop %v2733
    %v3464 = vmul.f32 %v3463, 0.6931472
    %v3465 = vlog2.pop %v2734
    %v3466 = vmul.f32 %v3465, 0.6931472
    %v3467 = vlog2.pop %v2735
    %v3468 = vmul.f32 %v3467, 0.6931472
    %v3469 = vlog2.pop %v2736
    %v3470 = vmul.f32 %v3469, 0.6931472
    %v3471 = vlog2.pop %v2737
    %v3472 = vmul.f32 %v3471, 0.6931472
    %v3473 = vlog2.pop %v2738
    %v3474 = vmul.f32 %v3473, 0.6931472
    %v3475 = vlog2.pop %v2739
    %v3476 = vmul.f32 %v3475, 0.6931472
    %v3477 = vlog2.pop %v2740
    %v3478 = vmul.f32 %v3477, 0.6931472
    %v3479 = vlog2.pop %v2741
    %v3480 = vmul.f32 %v3479, 0.6931472
    %v3481 = vlog2.pop %v2742
    %v3482 = vmul.f32 %v3481, 0.6931472
    %v3483 = vlog2.pop %v2743
    %v3484 = vmul.f32 %v3483, 0.6931472
    %v3485 = vlog2.pop %v2744
    %v3486 = vmul.f32 %v3485, 0.6931472
    %v3487 = vlog2.pop %v2745
    %v3488 = vmul.f32 %v3487, 0.6931472
    %v3489 = vlog2.pop %v2746
    %v3490 = vmul.f32 %v3489, 0.6931472
    %v3491 = vlog2.pop %v2747
    %v3492 = vmul.f32 %v3491, 0.6931472
    %v3493 = vlog2.pop %v2748
    %v3494 = vmul.f32 %v3493, 0.6931472
    %v3495 = vlog2.pop %v2749
    %v3496 = vmul.f32 %v3495, 0.6931472
    %v3497 = vlog2.pop %v2750
    %v3498 = vmul.f32 %v3497, 0.6931472
    %v3499 = vlog2.pop %v2751
    %v3500 = vmul.f32 %v3499, 0.6931472
    %v3501 = vlog2.pop %v2752
    %v3502 = vmul.f32 %v3501, 0.6931472
    %v3503 = vlog2.pop %v2753
    %v3504 = vmul.f32 %v3503, 0.6931472
    %v3505 = vlog2.pop %v2754
    %v3506 = vmul.f32 %v3505, 0.6931472
    %v3507 = vlog2.pop %v2755
    %v3508 = vmul.f32 %v3507, 0.6931472
    %v3509 = vlog2.pop %v2756
    %v3510 = vmul.f32 %v3509, 0.6931472
    %v3511 = vlog2.pop %v2757
    %v3512 = vmul.f32 %v3511, 0.6931472
    %v3513 = vlog2.pop %v2758
    %v3514 = vmul.f32 %v3513, 0.6931472
    %v3515 = vlog2.pop %v2759
    %v3516 = vmul.f32 %v3515, 0.6931472
    %v3517 = vlog2.pop %v2760
    %v3518 = vmul.f32 %v3517, 0.6931472
    %v3519 = vlog2.pop %v2761
    %v3520 = vmul.f32 %v3519, 0.6931472
    %v3521 = vlog2.pop %v2762
    %v3522 = vmul.f32 %v3521, 0.6931472
    %v3523 = vlog2.pop %v2763
    %v3524 = vmul.f32 %v3523, 0.6931472
    %v3525 = vlog2.pop %v2764
    %v3526 = vmul.f32 %v3525, 0.6931472
    %v3527 = vlog2.pop %v2765
    %v3528 = vmul.f32 %v3527, 0.6931472
    %v3529 = vlog2.pop %v2766
    %v3530 = vmul.f32 %v3529, 0.6931472
    %v3531 = vlog2.pop %v2767
    %v3532 = vmul.f32 %v3531, 0.6931472
    %v3533 = vlog2.pop %v2768
    %v3534 = vmul.f32 %v3533, 0.6931472
    %v3535 = vlog2.pop %v2769
    %v3536 = vmul.f32 %v3535, 0.6931472
    %v3537 = vlog2.pop %v2770
    %v3538 = vmul.f32 %v3537, 0.6931472
    %v3539 = vlog2.pop %v2771
    %v3540 = vmul.f32 %v3539, 0.6931472
    %v3541 = vlog2.pop %v2772
    %v3542 = vmul.f32 %v3541, 0.6931472
    %v3543 = vlog2.pop %v2773
    %v3544 = vmul.f32 %v3543, 0.6931472
    %v3545 = vlog2.pop %v2774
    %v3546 = vmul.f32 %v3545, 0.6931472
    %v3547 = vlog2.pop %v2775
    %v3548 = vmul.f32 %v3547, 0.6931472
    %v3549 = vlog2.pop %v2776
    %v3550 = vmul.f32 %v3549, 0.6931472
    %v3551 = vlog2.pop %v2777
    %v3552 = vmul.f32 %v3551, 0.6931472
    %v3553 = vlog2.pop %v2778
    %v3554 = vmul.f32 %v3553, 0.6931472
    %v3555 = vlog2.pop %v2779
    %v3556 = vmul.f32 %v3555, 0.6931472
    %v3557 = vlog2.pop %v2780
    %v3558 = vmul.f32 %v3557, 0.6931472
    %v3559 = vlog2.pop %v2781
    %v3560 = vmul.f32 %v3559, 0.6931472
    %v3561 = vlog2.pop %v2782
    %v3562 = vmul.f32 %v3561, 0.6931472
    %v3563 = vadd.f32 %v443, %v2784
    %v3564 = vadd.f32 %v444, %v2786
    %v3565 = vadd.f32 %v445, %v2788
    %v3566 = vadd.f32 %v446, %v2790
    %v3567 = vadd.f32 %v447, %v2792
    %v3568 = vadd.f32 %v448, %v2794
    %v3569 = vadd.f32 %v449, %v2796
    %v3570 = vadd.f32 %v450, %v2798
    %v3571 = vadd.f32 %v451, %v2800
    %v3572 = vadd.f32 %v452, %v2802
    %v3573 = vadd.f32 %v453, %v2804
    %v3574 = vadd.f32 %v454, %v2806
    %v3575 = vadd.f32 %v455, %v2808
    %v3576 = vadd.f32 %v456, %v2810
    %v3577 = vadd.f32 %v457, %v2812
    %v3578 = vadd.f32 %v458, %v2814
    %v3579 = vadd.f32 %v459, %v2816
    %v3580 = vadd.f32 %v460, %v2818
    %v3581 = vadd.f32 %v461, %v2820
    %v3582 = vadd.f32 %v462, %v2822
    %v3583 = vadd.f32 %v463, %v2824
    %v3584 = vadd.f32 %v464, %v2826
    %v3585 = vadd.f32 %v465, %v2828
    %v3586 = vadd.f32 %v466, %v2830
    %v3587 = vadd.f32 %v467, %v2832
    %v3588 = vadd.f32 %v468, %v2834
    %v3589 = vadd.f32 %v469, %v2836
    %v3590 = vadd.f32 %v470, %v2838
    %v3591 = vadd.f32 %v471, %v2840
    %v3592 = vadd.f32 %v472, %v2842
    %v3593 = vadd.f32 %v473, %v2844
    %v3594 = vadd.f32 %v474, %v2846
    %v3595 = vadd.f32 %v475, %v2848
    %v3596 = vadd.f32 %v476, %v2850
    %v3597 = vadd.f32 %v477, %v2852
    %v3598 = vadd.f32 %v478, %v2854
    %v3599 = vadd.f32 %v479, %v2856
    %v3600 = vadd.f32 %v480, %v2858
    %v3601 = vadd.f32 %v481, %v2860
    %v3602 = vadd.f32 %v482, %v2862
    %v3603 = vadd.f32 %v483, %v2864
    %v3604 = vadd.f32 %v484, %v2866
    %v3605 = vadd.f32 %v485, %v2868
    %v3606 = vadd.f32 %v486, %v2870
    %v3607 = vadd.f32 %v487, %v2872
    %v3608 = vadd.f32 %v488, %v2874
    %v3609 = vadd.f32 %v489, %v2876
    %v3610 = vadd.f32 %v490, %v2878
    %v3611 = vadd.f32 %v491, %v2880
    %v3612 = vadd.f32 %v492, %v2882
    %v3613 = vadd.f32 %v493, %v2884
    %v3614 = vadd.f32 %v494, %v2886
    %v3615 = vadd.f32 %v495, %v2888
    %v3616 = vadd.f32 %v496, %v2890
    %v3617 = vadd.f32 %v497, %v2892
    %v3618 = vadd.f32 %v498, %v2894
    %v3619 = vadd.f32 %v499, %v2896
    %v3620 = vadd.f32 %v500, %v2898
    %v3621 = vadd.f32 %v501, %v2900
    %v3622 = vadd.f32 %v502, %v2902
    %v3623 = vadd.f32 %v503, %v2904
    %v3624 = vadd.f32 %v504, %v2906
    %v3625 = vadd.f32 %v505, %v2908
    %v3626 = vadd.f32 %v506, %v2910
    %v3627 = vadd.f32 %v507, %v2912
    %v3628 = vadd.f32 %v508, %v2914
    %v3629 = vadd.f32 %v509, %v2916
    %v3630 = vadd.f32 %v510, %v2918
    %v3631 = vadd.f32 %v511, %v2920
    %v3632 = vadd.f32 %v512, %v2922
    %v3633 = vadd.f32 %v513, %v2924
    %v3634 = vadd.f32 %v514, %v2926
    %v3635 = vadd.f32 %v515, %v2928
    %v3636 = vadd.f32 %v516, %v2930
    %v3637 = vadd.f32 %v517, %v2932
    %v3638 = vadd.f32 %v518, %v2934
    %v3639 = vadd.f32 %v519, %v2936
    %v3640 = vadd.f32 %v520, %v2938
    %v3641 = vadd.f32 %v521, %v2940
    %v3642 = vadd.f32 %v522, %v2942
    %v3643 = vadd.f32 %v523, %v2944
    %v3644 = vadd.f32 %v524, %v2946
    %v3645 = vadd.f32 %v525, %v2948
    %v3646 = vadd.f32 %v526, %v2950
    %v3647 = vadd.f32 %v527, %v2952
    %v3648 = vadd.f32 %v528, %v2954
    %v3649 = vadd.f32 %v529, %v2956
    %v3650 = vadd.f32 %v530, %v2958
    %v3651 = vadd.f32 %v531, %v2960
    %v3652 = vadd.f32 %v532, %v2962
    %v3653 = vadd.f32 %v533, %v2964
    %v3654 = vadd.f32 %v534, %v2966
    %v3655 = vadd.f32 %v535, %v2968
    %v3656 = vadd.f32 %v536, %v2970
    %v3657 = vadd.f32 %v537, %v2972
    %v3658 = vadd.f32 %v538, %v2974
    %v3659 = vadd.f32 %v539, %v2976
    %v3660 = vadd.f32 %v540, %v2978
    %v3661 = vadd.f32 %v541, %v2980
    %v3662 = vadd.f32 %v542, %v2982
    %v3663 = vadd.f32 %v543, %v2984
    %v3664 = vadd.f32 %v544, %v2986
    %v3665 = vadd.f32 %v545, %v2988
    %v3666 = vadd.f32 %v546, %v2990
    %v3667 = vadd.f32 %v547, %v2992
    %v3668 = vadd.f32 %v548, %v2994
    %v3669 = vadd.f32 %v549, %v2996
    %v3670 = vadd.f32 %v550, %v2998
    %v3671 = vadd.f32 %v551, %v3000
    %v3672 = vadd.f32 %v552, %v3002
    %v3673 = vadd.f32 %v553, %v3004
    %v3674 = vadd.f32 %v554, %v3006
    %v3675 = vadd.f32 %v555, %v3008
    %v3676 = vadd.f32 %v556, %v3010
    %v3677 = vadd.f32 %v557, %v3012
    %v3678 = vadd.f32 %v558, %v3014
    %v3679 = vadd.f32 %v559, %v3016
    %v3680 = vadd.f32 %v560, %v3018
    %v3681 = vadd.f32 %v561, %v3020
    %v3682 = vadd.f32 %v562, %v3022
    %v3683 = vadd.f32 %v563, %v3024
    %v3684 = vadd.f32 %v564, %v3026
    %v3685 = vadd.f32 %v565, %v3028
    %v3686 = vadd.f32 %v566, %v3030
    %v3687 = vadd.f32 %v567, %v3032
    %v3688 = vadd.f32 %v568, %v3034
    %v3689 = vadd.f32 %v569, %v3036
    %v3690 = vadd.f32 %v570, %v3038
    %v3691 = vadd.f32 %v571, %v3040
    %v3692 = vadd.f32 %v572, %v3042
    %v3693 = vadd.f32 %v573, %v3044
    %v3694 = vadd.f32 %v574, %v3046
    %v3695 = vadd.f32 %v575, %v3048
    %v3696 = vadd.f32 %v576, %v3050
    %v3697 = vadd.f32 %v577, %v3052
    %v3698 = vadd.f32 %v578, %v3054
    %v3699 = vadd.f32 %v579, %v3056
    %v3700 = vadd.f32 %v580, %v3058
    %v3701 = vadd.f32 %v581, %v3060
    %v3702 = vadd.f32 %v582, %v3062
    %v3703 = vadd.f32 %v583, %v3064
    %v3704 = vadd.f32 %v584, %v3066
    %v3705 = vadd.f32 %v585, %v3068
    %v3706 = vadd.f32 %v586, %v3070
    %v3707 = vadd.f32 %v587, %v3072
    %v3708 = vadd.f32 %v588, %v3074
    %v3709 = vadd.f32 %v589, %v3076
    %v3710 = vadd.f32 %v590, %v3078
    %v3711 = vadd.f32 %v591, %v3080
    %v3712 = vadd.f32 %v592, %v3082
    %v3713 = vadd.f32 %v593, %v3084
    %v3714 = vadd.f32 %v594, %v3086
    %v3715 = vadd.f32 %v595, %v3088
    %v3716 = vadd.f32 %v596, %v3090
    %v3717 = vadd.f32 %v597, %v3092
    %v3718 = vadd.f32 %v598, %v3094
    %v3719 = vadd.f32 %v599, %v3096
    %v3720 = vadd.f32 %v600, %v3098
    %v3721 = vadd.f32 %v601, %v3100
    %v3722 = vadd.f32 %v602, %v3102
    %v3723 = vadd.f32 %v603, %v3104
    %v3724 = vadd.f32 %v604, %v3106
    %v3725 = vadd.f32 %v605, %v3108
    %v3726 = vadd.f32 %v606, %v3110
    %v3727 = vadd.f32 %v607, %v3112
    %v3728 = vadd.f32 %v608, %v3114
    %v3729 = vadd.f32 %v609, %v3116
    %v3730 = vadd.f32 %v610, %v3118
    %v3731 = vadd.f32 %v611, %v3120
    %v3732 = vadd.f32 %v612, %v3122
    %v3733 = vadd.f32 %v613, %v3124
    %v3734 = vadd.f32 %v614, %v3126
    %v3735 = vadd.f32 %v615, %v3128
    %v3736 = vadd.f32 %v616, %v3130
    %v3737 = vadd.f32 %v617, %v3132
    %v3738 = vadd.f32 %v618, %v3134
    %v3739 = vadd.f32 %v619, %v3136
    %v3740 = vadd.f32 %v620, %v3138
    %v3741 = vadd.f32 %v621, %v3140
    %v3742 = vadd.f32 %v622, %v3142
    %v3743 = vadd.f32 %v623, %v3144
    %v3744 = vadd.f32 %v624, %v3146
    %v3745 = vadd.f32 %v625, %v3148
    %v3746 = vadd.f32 %v626, %v3150
    %v3747 = vadd.f32 %v627, %v3152
    %v3748 = vadd.f32 %v628, %v3154
    %v3749 = vadd.f32 %v629, %v3156
    %v3750 = vadd.f32 %v630, %v3158
    %v3751 = vadd.f32 %v631, %v3160
    %v3752 = vadd.f32 %v632, %v3162
    %v3753 = vadd.f32 %v633, %v3164
    %v3754 = vadd.f32 %v634, %v3166
    %v3755 = vadd.f32 %v635, %v3168
    %v3756 = vadd.f32 %v636, %v3170
    %v3757 = vadd.f32 %v637, %v3172
    %v3758 = vadd.f32 %v638, %v3174
    %v3759 = vadd.f32 %v639, %v3176
    %v3760 = vadd.f32 %v640, %v3178
    %v3761 = vadd.f32 %v641, %v3180
    %v3762 = vadd.f32 %v642, %v3182
    %v3763 = vadd.f32 %v643, %v3184
    %v3764 = vadd.f32 %v644, %v3186
    %v3765 = vadd.f32 %v645, %v3188
    %v3766 = vadd.f32 %v646, %v3190
    %v3767 = vadd.f32 %v647, %v3192
    %v3768 = vadd.f32 %v648, %v3194
    %v3769 = vadd.f32 %v649, %v3196
    %v3770 = vadd.f32 %v650, %v3198
    %v3771 = vadd.f32 %v651, %v3200
    %v3772 = vadd.f32 %v652, %v3202
    %v3773 = vadd.f32 %v653, %v3204
    %v3774 = vadd.f32 %v654, %v3206
    %v3775 = vadd.f32 %v655, %v3208
    %v3776 = vadd.f32 %v656, %v3210
    %v3777 = vadd.f32 %v657, %v3212
    %v3778 = vadd.f32 %v658, %v3214
    %v3779 = vadd.f32 %v659, %v3216
    %v3780 = vadd.f32 %v660, %v3218
    %v3781 = vadd.f32 %v661, %v3220
    %v3782 = vadd.f32 %v662, %v3222
    %v3783 = vadd.f32 %v663, %v3224
    %v3784 = vadd.f32 %v664, %v3226
    %v3785 = vadd.f32 %v665, %v3228
    %v3786 = vadd.f32 %v666, %v3230
    %v3787 = vadd.f32 %v667, %v3232
    %v3788 = vadd.f32 %v668, %v3234
    %v3789 = vadd.f32 %v669, %v3236
    %v3790 = vadd.f32 %v670, %v3238
    %v3791 = vadd.f32 %v671, %v3240
    %v3792 = vadd.f32 %v672, %v3242
    %v3793 = vadd.f32 %v673, %v3244
    %v3794 = vadd.f32 %v674, %v3246
    %v3795 = vadd.f32 %v675, %v3248
    %v3796 = vadd.f32 %v676, %v3250
    %v3797 = vadd.f32 %v677, %v3252
    %v3798 = vadd.f32 %v678, %v3254
    %v3799 = vadd.f32 %v679, %v3256
    %v3800 = vadd.f32 %v680, %v3258
    %v3801 = vadd.f32 %v681, %v3260
    %v3802 = vadd.f32 %v682, %v3262
    %v3803 = vadd.f32 %v683, %v3264
    %v3804 = vadd.f32 %v684, %v3266
    %v3805 = vadd.f32 %v685, %v3268
    %v3806 = vadd.f32 %v686, %v3270
    %v3807 = vadd.f32 %v687, %v3272
    %v3808 = vadd.f32 %v688, %v3274
    %v3809 = vadd.f32 %v689, %v3276
    %v3810 = vadd.f32 %v690, %v3278
    %v3811 = vadd.f32 %v691, %v3280
    %v3812 = vadd.f32 %v692, %v3282
    %v3813 = vadd.f32 %v693, %v3284
    %v3814 = vadd.f32 %v694, %v3286
    %v3815 = vadd.f32 %v695, %v3288
    %v3816 = vadd.f32 %v696, %v3290
    %v3817 = vadd.f32 %v697, %v3292
    %v3818 = vadd.f32 %v698, %v3294
    %v3819 = vadd.f32 %v699, %v3296
    %v3820 = vadd.f32 %v700, %v3298
    %v3821 = vadd.f32 %v701, %v3300
    %v3822 = vadd.f32 %v702, %v3302
    %v3823 = vadd.f32 %v703, %v3304
    %v3824 = vadd.f32 %v704, %v3306
    %v3825 = vadd.f32 %v705, %v3308
    %v3826 = vadd.f32 %v706, %v3310
    %v3827 = vadd.f32 %v707, %v3312
    %v3828 = vadd.f32 %v708, %v3314
    %v3829 = vadd.f32 %v709, %v3316
    %v3830 = vadd.f32 %v710, %v3318
    %v3831 = vadd.f32 %v711, %v3320
    %v3832 = vadd.f32 %v712, %v3322
    %v3833 = vadd.f32 %v713, %v3324
    %v3834 = vadd.f32 %v714, %v3326
    %v3835 = vadd.f32 %v715, %v3328
    %v3836 = vadd.f32 %v716, %v3330
    %v3837 = vadd.f32 %v717, %v3332
    %v3838 = vadd.f32 %v718, %v3334
    %v3839 = vadd.f32 %v719, %v3336
    %v3840 = vadd.f32 %v720, %v3338
    %v3841 = vadd.f32 %v721, %v3340
    %v3842 = vadd.f32 %v722, %v3342
    %v3843 = vadd.f32 %v723, %v3344
    %v3844 = vadd.f32 %v724, %v3346
    %v3845 = vadd.f32 %v725, %v3348
    %v3846 = vadd.f32 %v726, %v3350
    %v3847 = vadd.f32 %v727, %v3352
    %v3848 = vadd.f32 %v728, %v3354
    %v3849 = vadd.f32 %v729, %v3356
    %v3850 = vadd.f32 %v730, %v3358
    %v3851 = vadd.f32 %v731, %v3360
    %v3852 = vadd.f32 %v732, %v3362
    %v3853 = vadd.f32 %v733, %v3364
    %v3854 = vadd.f32 %v734, %v3366
    %v3855 = vadd.f32 %v735, %v3368
    %v3856 = vadd.f32 %v736, %v3370
    %v3857 = vadd.f32 %v737, %v3372
    %v3858 = vadd.f32 %v738, %v3374
    %v3859 = vadd.f32 %v739, %v3376
    %v3860 = vadd.f32 %v740, %v3378
    %v3861 = vadd.f32 %v741, %v3380
    %v3862 = vadd.f32 %v742, %v3382
    %v3863 = vadd.f32 %v743, %v3384
    %v3864 = vadd.f32 %v744, %v3386
    %v3865 = vadd.f32 %v745, %v3388
    %v3866 = vadd.f32 %v746, %v3390
    %v3867 = vadd.f32 %v747, %v3392
    %v3868 = vadd.f32 %v748, %v3394
    %v3869 = vadd.f32 %v749, %v3396
    %v3870 = vadd.f32 %v750, %v3398
    %v3871 = vadd.f32 %v751, %v3400
    %v3872 = vadd.f32 %v752, %v3402
    %v3873 = vadd.f32 %v753, %v3404
    %v3874 = vadd.f32 %v754, %v3406
    %v3875 = vadd.f32 %v755, %v3408
    %v3876 = vadd.f32 %v756, %v3410
    %v3877 = vadd.f32 %v757, %v3412
    %v3878 = vadd.f32 %v758, %v3414
    %v3879 = vadd.f32 %v759, %v3416
    %v3880 = vadd.f32 %v760, %v3418
    %v3881 = vadd.f32 %v761, %v3420
    %v3882 = vadd.f32 %v762, %v3422
    %v3883 = vadd.f32 %v763, %v3424
    %v3884 = vadd.f32 %v764, %v3426
    %v3885 = vadd.f32 %v765, %v3428
    %v3886 = vadd.f32 %v766, %v3430
    %v3887 = vadd.f32 %v767, %v3432
    %v3888 = vadd.f32 %v768, %v3434
    %v3889 = vadd.f32 %v769, %v3436
    %v3890 = vadd.f32 %v770, %v3438
    %v3891 = vadd.f32 %v771, %v3440
    %v3892 = vadd.f32 %v772, %v3442
    %v3893 = vadd.f32 %v773, %v3444
    %v3894 = vadd.f32 %v774, %v3446
    %v3895 = vadd.f32 %v775, %v3448
    %v3896 = vadd.f32 %v776, %v3450
    %v3897 = vadd.f32 %v777, %v3452
    %v3898 = vadd.f32 %v778, %v3454
    %v3899 = vadd.f32 %v779, %v3456
    %v3900 = vadd.f32 %v780, %v3458
    %v3901 = vadd.f32 %v781, %v3460
    %v3902 = vadd.f32 %v782, %v3462
    %v3903 = vadd.f32 %v783, %v3464
    %v3904 = vadd.f32 %v784, %v3466
    %v3905 = vadd.f32 %v785, %v3468
    %v3906 = vadd.f32 %v786, %v3470
    %v3907 = vadd.f32 %v787, %v3472
    %v3908 = vadd.f32 %v788, %v3474
    %v3909 = vadd.f32 %v789, %v3476
    %v3910 = vadd.f32 %v790, %v3478
    %v3911 = vadd.f32 %v791, %v3480
    %v3912 = vadd.f32 %v792, %v3482
    %v3913 = vadd.f32 %v793, %v3484
    %v3914 = vadd.f32 %v794, %v3486
    %v3915 = vadd.f32 %v795, %v3488
    %v3916 = vadd.f32 %v796, %v3490
    %v3917 = vadd.f32 %v797, %v3492
    %v3918 = vadd.f32 %v798, %v3494
    %v3919 = vadd.f32 %v799, %v3496
    %v3920 = vadd.f32 %v800, %v3498
    %v3921 = vadd.f32 %v801, %v3500
    %v3922 = vadd.f32 %v802, %v3502
    %v3923 = vadd.f32 %v803, %v3504
    %v3924 = vadd.f32 %v804, %v3506
    %v3925 = vadd.f32 %v805, %v3508
    %v3926 = vadd.f32 %v806, %v3510
    %v3927 = vadd.f32 %v807, %v3512
    %v3928 = vadd.f32 %v808, %v3514
    %v3929 = vadd.f32 %v809, %v3516
    %v3930 = vadd.f32 %v810, %v3518
    %v3931 = vadd.f32 %v811, %v3520
    %v3932 = vadd.f32 %v812, %v3522
    %v3933 = vadd.f32 %v813, %v3524
    %v3934 = vadd.f32 %v814, %v3526
    %v3935 = vadd.f32 %v815, %v3528
    %v3936 = vadd.f32 %v816, %v3530
    %v3937 = vadd.f32 %v817, %v3532
    %v3938 = vadd.f32 %v818, %v3534
    %v3939 = vadd.f32 %v819, %v3536
    %v3940 = vadd.f32 %v820, %v3538
    %v3941 = vadd.f32 %v821, %v3540
    %v3942 = vadd.f32 %v822, %v3542
    %v3943 = vadd.f32 %v823, %v3544
    %v3944 = vadd.f32 %v824, %v3546
    %v3945 = vadd.f32 %v825, %v3548
    %v3946 = vadd.f32 %v826, %v3550
    %v3947 = vadd.f32 %v827, %v3552
    %v3948 = vadd.f32 %v828, %v3554
    %v3949 = vadd.f32 %v829, %v3556
    %v3950 = vadd.f32 %v830, %v3558
    %v3951 = vadd.f32 %v831, %v3560
    %v3952 = vadd.f32 %v832, %v3562
    %s3953 = sadd.s32 0, 0
    %s3954 = smul.u32 %s3953, 1040
    %v3955 = vlaneseq
    %v3956 = vshrl.u32 %v3955, 7
    %v3957 = vadd.s32 %v3956, 8
    %v3958 = vadd.s32 %v3956, 16
    %v3959 = vadd.s32 %v3956, 24
    %v3960 = vadd.s32 %v3956, 32
    %v3961 = vadd.s32 %v3956, 40
    %v3962 = vadd.s32 %v3956, 48
    %v3963 = vadd.s32 %v3956, 56
    %v3964 = vadd.s32 %v3956, 64
    %v3965 = vadd.s32 %v3956, 72
    %v3966 = vadd.s32 %v3956, 80
    %v3967 = vadd.s32 %v3956, 88
    %v3968 = vadd.s32 %v3956, 96
    %v3969 = vadd.s32 %v3956, 104
    %v3970 = vadd.s32 %v3956, 112
    %v3971 = vadd.s32 %v3956, 120
    %v3972 = vadd.s32 %v3956, 128
    %v3973 = vadd.s32 %v3956, 136
    %v3974 = vadd.s32 %v3956, 144
    %v3975 = vadd.s32 %v3956, 152
    %v3976 = vadd.s32 %v3956, 160
    %v3977 = vadd.s32 %v3956, 168
    %v3978 = vadd.s32 %v3956, 176
    %v3979 = vadd.s32 %v3956, 184
    %v3980 = vadd.s32 %v3956, 192
    %v3981 = vadd.s32 %v3956, 200
    %v3982 = vadd.s32 %v3956, 208
    %v3983 = vadd.s32 %v3956, 216
    %v3984 = vadd.s32 %v3956, 224
    %v3985 = vadd.s32 %v3956, 232
    %v3986 = vadd.s32 %v3956, 240
    %v3987 = vadd.s32 %v3956, 248
    %v3988 = vadd.s32 %v3956, 256
    %v3989 = vadd.s32 %v3956, 264
    %v3990 = vadd.s32 %v3956, 272
    %v3991 = vadd.s32 %v3956, 280
    %v3992 = vadd.s32 %v3956, 288
    %v3993 = vadd.s32 %v3956, 296
    %v3994 = vadd.s32 %v3956, 304
    %v3995 = vadd.s32 %v3956, 312
    %v3996 = vadd.s32 %v3956, 320
    %v3997 = vadd.s32 %v3956, 328
    %v3998 = vadd.s32 %v3956, 336
    %v3999 = vadd.s32 %v3956, 344
    %v4000 = vadd.s32 %v3956, 352
    %v4001 = vadd.s32 %v3956, 360
    %v4002 = vadd.s32 %v3956, 368
    %v4003 = vadd.s32 %v3956, 376
    %v4004 = vadd.s32 %v3956, 384
    %v4005 = vadd.s32 %v3956, 392
    %v4006 = vadd.s32 %v3956, 400
    %v4007 = vadd.s32 %v3956, 408
    %v4008 = vadd.s32 %v3956, 416
    %v4009 = vadd.s32 %v3956, 424
    %v4010 = vadd.s32 %v3956, 432
    %v4011 = vadd.s32 %v3956, 440
    %v4012 = vadd.s32 %v3956, 448
    %v4013 = vadd.s32 %v3956, 456
    %v4014 = vadd.s32 %v3956, 464
    %v4015 = vadd.s32 %v3956, 472
    %v4016 = vadd.s32 %v3956, 480
    %v4017 = vadd.s32 %v3956, 488
    %v4018 = vadd.s32 %v3956, 496
    %v4019 = vadd.s32 %v3956, 504
    %v4020 = vadd.s32 %v3956, 512
    %v4021 = vadd.s32 %v3956, 520
    %v4022 = vadd.s32 %v3956, 528
    %v4023 = vadd.s32 %v3956, 536
    %v4024 = vadd.s32 %v3956, 544
    %v4025 = vadd.s32 %v3956, 552
    %v4026 = vadd.s32 %v3956, 560
    %v4027 = vadd.s32 %v3956, 568
    %v4028 = vadd.s32 %v3956, 576
    %v4029 = vadd.s32 %v3956, 584
    %v4030 = vadd.s32 %v3956, 592
    %v4031 = vadd.s32 %v3956, 600
    %v4032 = vadd.s32 %v3956, 608
    %v4033 = vadd.s32 %v3956, 616
    %v4034 = vadd.s32 %v3956, 624
    %v4035 = vadd.s32 %v3956, 632
    %v4036 = vadd.s32 %v3956, 640
    %v4037 = vadd.s32 %v3956, 648
    %v4038 = vadd.s32 %v3956, 656
    %v4039 = vadd.s32 %v3956, 664
    %v4040 = vadd.s32 %v3956, 672
    %v4041 = vadd.s32 %v3956, 680
    %v4042 = vadd.s32 %v3956, 688
    %v4043 = vadd.s32 %v3956, 696
    %v4044 = vadd.s32 %v3956, 704
    %v4045 = vadd.s32 %v3956, 712
    %v4046 = vadd.s32 %v3956, 720
    %v4047 = vadd.s32 %v3956, 728
    %v4048 = vadd.s32 %v3956, 736
    %v4049 = vadd.s32 %v3956, 744
    %v4050 = vadd.s32 %v3956, 752
    %v4051 = vadd.s32 %v3956, 760
    %v4052 = vadd.s32 %v3956, 768
    %v4053 = vadd.s32 %v3956, 776
    %v4054 = vadd.s32 %v3956, 784
    %v4055 = vadd.s32 %v3956, 792
    %v4056 = vadd.s32 %v3956, 800
    %v4057 = vadd.s32 %v3956, 808
    %v4058 = vadd.s32 %v3956, 816
    %v4059 = vadd.s32 %v3956, 824
    %v4060 = vadd.s32 %v3956, 832
    %v4061 = vadd.s32 %v3956, 840
    %v4062 = vadd.s32 %v3956, 848
    %v4063 = vadd.s32 %v3956, 856
    %v4064 = vadd.s32 %v3956, 864
    %v4065 = vadd.s32 %v3956, 872
    %v4066 = vadd.s32 %v3956, 880
    %v4067 = vadd.s32 %v3956, 888
    %v4068 = vadd.s32 %v3956, 896
    %v4069 = vadd.s32 %v3956, 904
    %v4070 = vadd.s32 %v3956, 912
    %v4071 = vadd.s32 %v3956, 920
    %v4072 = vadd.s32 %v3956, 928
    %v4073 = vadd.s32 %v3956, 936
    %v4074 = vadd.s32 %v3956, 944
    %v4075 = vadd.s32 %v3956, 952
    %v4076 = vadd.s32 %v3956, 960
    %v4077 = vadd.s32 %v3956, 968
    %v4078 = vadd.s32 %v3956, 976
    %v4079 = vadd.s32 %v3956, 984
    %v4080 = vadd.s32 %v3956, 992
    %v4081 = vadd.s32 %v3956, 1000
    %v4082 = vadd.s32 %v3956, 1008
    %v4083 = vadd.s32 %v3956, 1016
    %v4084 = vadd.s32 %v3956, 1024
    %v4085 = vadd.s32 %v3956, 1032
    %v4086 = vstv %s3954
    %v4087 = vadd.s32 %v4086, %v3956
    %v4088 = vadd.s32 %v4086, %v3957
    %v4089 = vadd.s32 %v4086, %v3958
    %v4090 = vadd.s32 %v4086, %v3959
    %v4091 = vadd.s32 %v4086, %v3960
    %v4092 = vadd.s32 %v4086, %v3961
    %v4093 = vadd.s32 %v4086, %v3962
    %v4094 = vadd.s32 %v4086, %v3963
    %v4095 = vadd.s32 %v4086, %v3964
    %v4096 = vadd.s32 %v4086, %v3965
    %v4097 = vadd.s32 %v4086, %v3966
    %v4098 = vadd.s32 %v4086, %v3967
    %v4099 = vadd.s32 %v4086, %v3968
    %v4100 = vadd.s32 %v4086, %v3969
    %v4101 = vadd.s32 %v4086, %v3970
    %v4102 = vadd.s32 %v4086, %v3971
    %v4103 = vadd.s32 %v4086, %v3972
    %v4104 = vadd.s32 %v4086, %v3973
    %v4105 = vadd.s32 %v4086, %v3974
    %v4106 = vadd.s32 %v4086, %v3975
    %v4107 = vadd.s32 %v4086, %v3976
    %v4108 = vadd.s32 %v4086, %v3977
    %v4109 = vadd.s32 %v4086, %v3978
    %v4110 = vadd.s32 %v4086, %v3979
    %v4111 = vadd.s32 %v4086, %v3980
    %v4112 = vadd.s32 %v4086, %v3981
    %v4113 = vadd.s32 %v4086, %v3982
    %v4114 = vadd.s32 %v4086, %v3983
    %v4115 = vadd.s32 %v4086, %v3984
    %v4116 = vadd.s32 %v4086, %v3985
    %v4117 = vadd.s32 %v4086, %v3986
    %v4118 = vadd.s32 %v4086, %v3987
    %v4119 = vadd.s32 %v4086, %v3988
    %v4120 = vadd.s32 %v4086, %v3989
    %v4121 = vadd.s32 %v4086, %v3990
    %v4122 = vadd.s32 %v4086, %v3991
    %v4123 = vadd.s32 %v4086, %v3992
    %v4124 = vadd.s32 %v4086, %v3993
    %v4125 = vadd.s32 %v4086, %v3994
    %v4126 = vadd.s32 %v4086, %v3995
    %v4127 = vadd.s32 %v4086, %v3996
    %v4128 = vadd.s32 %v4086, %v3997
    %v4129 = vadd.s32 %v4086, %v3998
    %v4130 = vadd.s32 %v4086, %v3999
    %v4131 = vadd.s32 %v4086, %v4000
    %v4132 = vadd.s32 %v4086, %v4001
    %v4133 = vadd.s32 %v4086, %v4002
    %v4134 = vadd.s32 %v4086, %v4003
    %v4135 = vadd.s32 %v4086, %v4004
    %v4136 = vadd.s32 %v4086, %v4005
    %v4137 = vadd.s32 %v4086, %v4006
    %v4138 = vadd.s32 %v4086, %v4007
    %v4139 = vadd.s32 %v4086, %v4008
    %v4140 = vadd.s32 %v4086, %v4009
    %v4141 = vadd.s32 %v4086, %v4010
    %v4142 = vadd.s32 %v4086, %v4011
    %v4143 = vadd.s32 %v4086, %v4012
    %v4144 = vadd.s32 %v4086, %v4013
    %v4145 = vadd.s32 %v4086, %v4014
    %v4146 = vadd.s32 %v4086, %v4015
    %v4147 = vadd.s32 %v4086, %v4016
    %v4148 = vadd.s32 %v4086, %v4017
    %v4149 = vadd.s32 %v4086, %v4018
    %v4150 = vadd.s32 %v4086, %v4019
    %v4151 = vadd.s32 %v4086, %v4020
    %v4152 = vadd.s32 %v4086, %v4021
    %v4153 = vadd.s32 %v4086, %v4022
    %v4154 = vadd.s32 %v4086, %v4023
    %v4155 = vadd.s32 %v4086, %v4024
    %v4156 = vadd.s32 %v4086, %v4025
    %v4157 = vadd.s32 %v4086, %v4026
    %v4158 = vadd.s32 %v4086, %v4027
    %v4159 = vadd.s32 %v4086, %v4028
    %v4160 = vadd.s32 %v4086, %v4029
    %v4161 = vadd.s32 %v4086, %v4030
    %v4162 = vadd.s32 %v4086, %v4031
    %v4163 = vadd.s32 %v4086, %v4032
    %v4164 = vadd.s32 %v4086, %v4033
    %v4165 = vadd.s32 %v4086, %v4034
    %v4166 = vadd.s32 %v4086, %v4035
    %v4167 = vadd.s32 %v4086, %v4036
    %v4168 = vadd.s32 %v4086, %v4037
    %v4169 = vadd.s32 %v4086, %v4038
    %v4170 = vadd.s32 %v4086, %v4039
    %v4171 = vadd.s32 %v4086, %v4040
    %v4172 = vadd.s32 %v4086, %v4041
    %v4173 = vadd.s32 %v4086, %v4042
    %v4174 = vadd.s32 %v4086, %v4043
    %v4175 = vadd.s32 %v4086, %v4044
    %v4176 = vadd.s32 %v4086, %v4045
    %v4177 = vadd.s32 %v4086, %v4046
    %v4178 = vadd.s32 %v4086, %v4047
    %v4179 = vadd.s32 %v4086, %v4048
    %v4180 = vadd.s32 %v4086, %v4049
    %v4181 = vadd.s32 %v4086, %v4050
    %v4182 = vadd.s32 %v4086, %v4051
    %v4183 = vadd.s32 %v4086, %v4052
    %v4184 = vadd.s32 %v4086, %v4053
    %v4185 = vadd.s32 %v4086, %v4054
    %v4186 = vadd.s32 %v4086, %v4055
    %v4187 = vadd.s32 %v4086, %v4056
    %v4188 = vadd.s32 %v4086, %v4057
    %v4189 = vadd.s32 %v4086, %v4058
    %v4190 = vadd.s32 %v4086, %v4059
    %v4191 = vadd.s32 %v4086, %v4060
    %v4192 = vadd.s32 %v4086, %v4061
    %v4193 = vadd.s32 %v4086, %v4062
    %v4194 = vadd.s32 %v4086, %v4063
    %v4195 = vadd.s32 %v4086, %v4064
    %v4196 = vadd.s32 %v4086, %v4065
    %v4197 = vadd.s32 %v4086, %v4066
    %v4198 = vadd.s32 %v4086, %v4067
    %v4199 = vadd.s32 %v4086, %v4068
    %v4200 = vadd.s32 %v4086, %v4069
    %v4201 = vadd.s32 %v4086, %v4070
    %v4202 = vadd.s32 %v4086, %v4071
    %v4203 = vadd.s32 %v4086, %v4072
    %v4204 = vadd.s32 %v4086, %v4073
    %v4205 = vadd.s32 %v4086, %v4074
    %v4206 = vadd.s32 %v4086, %v4075
    %v4207 = vadd.s32 %v4086, %v4076
    %v4208 = vadd.s32 %v4086, %v4077
    %v4209 = vadd.s32 %v4086, %v4078
    %v4210 = vadd.s32 %v4086, %v4079
    %v4211 = vadd.s32 %v4086, %v4080
    %v4212 = vadd.s32 %v4086, %v4081
    %v4213 = vadd.s32 %v4086, %v4082
    %v4214 = vadd.s32 %v4086, %v4083
    %v4215 = vadd.s32 %v4086, %v4084
    %v4216 = vadd.s32 %v4086, %v4085
    %vm4217 = vcmp.lt.s32.totalorder %v4087, 1037
    %vm4218 = vcmp.lt.s32.totalorder %v4088, 1037
    %vm4219 = vcmp.lt.s32.totalorder %v4089, 1037
    %vm4220 = vcmp.lt.s32.totalorder %v4090, 1037
    %vm4221 = vcmp.lt.s32.totalorder %v4091, 1037
    %vm4222 = vcmp.lt.s32.totalorder %v4092, 1037
    %vm4223 = vcmp.lt.s32.totalorder %v4093, 1037
    %vm4224 = vcmp.lt.s32.totalorder %v4094, 1037
    %vm4225 = vcmp.lt.s32.totalorder %v4095, 1037
    %vm4226 = vcmp.lt.s32.totalorder %v4096, 1037
    %vm4227 = vcmp.lt.s32.totalorder %v4097, 1037
    %vm4228 = vcmp.lt.s32.totalorder %v4098, 1037
    %vm4229 = vcmp.lt.s32.totalorder %v4099, 1037
    %vm4230 = vcmp.lt.s32.totalorder %v4100, 1037
    %vm4231 = vcmp.lt.s32.totalorder %v4101, 1037
    %vm4232 = vcmp.lt.s32.totalorder %v4102, 1037
    %vm4233 = vcmp.lt.s32.totalorder %v4103, 1037
    %vm4234 = vcmp.lt.s32.totalorder %v4104, 1037
    %vm4235 = vcmp.lt.s32.totalorder %v4105, 1037
    %vm4236 = vcmp.lt.s32.totalorder %v4106, 1037
    %vm4237 = vcmp.lt.s32.totalorder %v4107, 1037
    %vm4238 = vcmp.lt.s32.totalorder %v4108, 1037
    %vm4239 = vcmp.lt.s32.totalorder %v4109, 1037
    %vm4240 = vcmp.lt.s32.totalorder %v4110, 1037
    %vm4241 = vcmp.lt.s32.totalorder %v4111, 1037
    %vm4242 = vcmp.lt.s32.totalorder %v4112, 1037
    %vm4243 = vcmp.lt.s32.totalorder %v4113, 1037
    %vm4244 = vcmp.lt.s32.totalorder %v4114, 1037
    %vm4245 = vcmp.lt.s32.totalorder %v4115, 1037
    %vm4246 = vcmp.lt.s32.totalorder %v4116, 1037
    %vm4247 = vcmp.lt.s32.totalorder %v4117, 1037
    %vm4248 = vcmp.lt.s32.totalorder %v4118, 1037
    %vm4249 = vcmp.lt.s32.totalorder %v4119, 1037
    %vm4250 = vcmp.lt.s32.totalorder %v4120, 1037
    %vm4251 = vcmp.lt.s32.totalorder %v4121, 1037
    %vm4252 = vcmp.lt.s32.totalorder %v4122, 1037
    %vm4253 = vcmp.lt.s32.totalorder %v4123, 1037
    %vm4254 = vcmp.lt.s32.totalorder %v4124, 1037
    %vm4255 = vcmp.lt.s32.totalorder %v4125, 1037
    %vm4256 = vcmp.lt.s32.totalorder %v4126, 1037
    %vm4257 = vcmp.lt.s32.totalorder %v4127, 1037
    %vm4258 = vcmp.lt.s32.totalorder %v4128, 1037
    %vm4259 = vcmp.lt.s32.totalorder %v4129, 1037
    %vm4260 = vcmp.lt.s32.totalorder %v4130, 1037
    %vm4261 = vcmp.lt.s32.totalorder %v4131, 1037
    %vm4262 = vcmp.lt.s32.totalorder %v4132, 1037
    %vm4263 = vcmp.lt.s32.totalorder %v4133, 1037
    %vm4264 = vcmp.lt.s32.totalorder %v4134, 1037
    %vm4265 = vcmp.lt.s32.totalorder %v4135, 1037
    %vm4266 = vcmp.lt.s32.totalorder %v4136, 1037
    %vm4267 = vcmp.lt.s32.totalorder %v4137, 1037
    %vm4268 = vcmp.lt.s32.totalorder %v4138, 1037
    %vm4269 = vcmp.lt.s32.totalorder %v4139, 1037
    %vm4270 = vcmp.lt.s32.totalorder %v4140, 1037
    %vm4271 = vcmp.lt.s32.totalorder %v4141, 1037
    %vm4272 = vcmp.lt.s32.totalorder %v4142, 1037
    %vm4273 = vcmp.lt.s32.totalorder %v4143, 1037
    %vm4274 = vcmp.lt.s32.totalorder %v4144, 1037
    %vm4275 = vcmp.lt.s32.totalorder %v4145, 1037
    %vm4276 = vcmp.lt.s32.totalorder %v4146, 1037
    %vm4277 = vcmp.lt.s32.totalorder %v4147, 1037
    %vm4278 = vcmp.lt.s32.totalorder %v4148, 1037
    %vm4279 = vcmp.lt.s32.totalorder %v4149, 1037
    %vm4280 = vcmp.lt.s32.totalorder %v4150, 1037
    %vm4281 = vcmp.lt.s32.totalorder %v4151, 1037
    %vm4282 = vcmp.lt.s32.totalorder %v4152, 1037
    %vm4283 = vcmp.lt.s32.totalorder %v4153, 1037
    %vm4284 = vcmp.lt.s32.totalorder %v4154, 1037
    %vm4285 = vcmp.lt.s32.totalorder %v4155, 1037
    %vm4286 = vcmp.lt.s32.totalorder %v4156, 1037
    %vm4287 = vcmp.lt.s32.totalorder %v4157, 1037
    %vm4288 = vcmp.lt.s32.totalorder %v4158, 1037
    %vm4289 = vcmp.lt.s32.totalorder %v4159, 1037
    %vm4290 = vcmp.lt.s32.totalorder %v4160, 1037
    %vm4291 = vcmp.lt.s32.totalorder %v4161, 1037
    %vm4292 = vcmp.lt.s32.totalorder %v4162, 1037
    %vm4293 = vcmp.lt.s32.totalorder %v4163, 1037
    %vm4294 = vcmp.lt.s32.totalorder %v4164, 1037
    %vm4295 = vcmp.lt.s32.totalorder %v4165, 1037
    %vm4296 = vcmp.lt.s32.totalorder %v4166, 1037
    %vm4297 = vcmp.lt.s32.totalorder %v4167, 1037
    %vm4298 = vcmp.lt.s32.totalorder %v4168, 1037
    %vm4299 = vcmp.lt.s32.totalorder %v4169, 1037
    %vm4300 = vcmp.lt.s32.totalorder %v4170, 1037
    %vm4301 = vcmp.lt.s32.totalorder %v4171, 1037
    %vm4302 = vcmp.lt.s32.totalorder %v4172, 1037
    %vm4303 = vcmp.lt.s32.totalorder %v4173, 1037
    %vm4304 = vcmp.lt.s32.totalorder %v4174, 1037
    %vm4305 = vcmp.lt.s32.totalorder %v4175, 1037
    %vm4306 = vcmp.lt.s32.totalorder %v4176, 1037
    %vm4307 = vcmp.lt.s32.totalorder %v4177, 1037
    %vm4308 = vcmp.lt.s32.totalorder %v4178, 1037
    %vm4309 = vcmp.lt.s32.totalorder %v4179, 1037
    %vm4310 = vcmp.lt.s32.totalorder %v4180, 1037
    %vm4311 = vcmp.lt.s32.totalorder %v4181, 1037
    %vm4312 = vcmp.lt.s32.totalorder %v4182, 1037
    %vm4313 = vcmp.lt.s32.totalorder %v4183, 1037
    %vm4314 = vcmp.lt.s32.totalorder %v4184, 1037
    %vm4315 = vcmp.lt.s32.totalorder %v4185, 1037
    %vm4316 = vcmp.lt.s32.totalorder %v4186, 1037
    %vm4317 = vcmp.lt.s32.totalorder %v4187, 1037
    %vm4318 = vcmp.lt.s32.totalorder %v4188, 1037
    %vm4319 = vcmp.lt.s32.totalorder %v4189, 1037
    %vm4320 = vcmp.lt.s32.totalorder %v4190, 1037
    %vm4321 = vcmp.lt.s32.totalorder %v4191, 1037
    %vm4322 = vcmp.lt.s32.totalorder %v4192, 1037
    %vm4323 = vcmp.lt.s32.totalorder %v4193, 1037
    %vm4324 = vcmp.lt.s32.totalorder %v4194, 1037
    %vm4325 = vcmp.lt.s32.totalorder %v4195, 1037
    %vm4326 = vcmp.lt.s32.totalorder %v4196, 1037
    %vm4327 = vcmp.lt.s32.totalorder %v4197, 1037
    %vm4328 = vcmp.lt.s32.totalorder %v4198, 1037
    %vm4329 = vcmp.lt.s32.totalorder %v4199, 1037
    %vm4330 = vcmp.lt.s32.totalorder %v4200, 1037
    %vm4331 = vcmp.lt.s32.totalorder %v4201, 1037
    %vm4332 = vcmp.lt.s32.totalorder %v4202, 1037
    %vm4333 = vcmp.lt.s32.totalorder %v4203, 1037
    %vm4334 = vcmp.lt.s32.totalorder %v4204, 1037
    %vm4335 = vcmp.lt.s32.totalorder %v4205, 1037
    %vm4336 = vcmp.lt.s32.totalorder %v4206, 1037
    %vm4337 = vcmp.lt.s32.totalorder %v4207, 1037
    %vm4338 = vcmp.lt.s32.totalorder %v4208, 1037
    %vm4339 = vcmp.lt.s32.totalorder %v4209, 1037
    %vm4340 = vcmp.lt.s32.totalorder %v4210, 1037
    %vm4341 = vcmp.lt.s32.totalorder %v4211, 1037
    %vm4342 = vcmp.lt.s32.totalorder %v4212, 1037
    %vm4343 = vcmp.lt.s32.totalorder %v4213, 1037
    %vm4344 = vcmp.lt.s32.totalorder %v4214, 1037
    %vm4345 = vcmp.lt.s32.totalorder %v4215, 1037
    %vm4346 = vcmp.lt.s32.totalorder %v4216, 1037
    %v4347 = vsel %vm4217, %v3563, 0.0
    %v4348 = vsel %vm4217, %v3564, 0.0
    %v4349 = vsel %vm4217, %v3565, 0.0
    %v4350 = vsel %vm4218, %v3566, 0.0
    %v4351 = vsel %vm4218, %v3567, 0.0
    %v4352 = vsel %vm4218, %v3568, 0.0
    %v4353 = vsel %vm4219, %v3569, 0.0
    %v4354 = vsel %vm4219, %v3570, 0.0
    %v4355 = vsel %vm4219, %v3571, 0.0
    %v4356 = vsel %vm4220, %v3572, 0.0
    %v4357 = vsel %vm4220, %v3573, 0.0
    %v4358 = vsel %vm4220, %v3574, 0.0
    %v4359 = vsel %vm4221, %v3575, 0.0
    %v4360 = vsel %vm4221, %v3576, 0.0
    %v4361 = vsel %vm4221, %v3577, 0.0
    %v4362 = vsel %vm4222, %v3578, 0.0
    %v4363 = vsel %vm4222, %v3579, 0.0
    %v4364 = vsel %vm4222, %v3580, 0.0
    %v4365 = vsel %vm4223, %v3581, 0.0
    %v4366 = vsel %vm4223, %v3582, 0.0
    %v4367 = vsel %vm4223, %v3583, 0.0
    %v4368 = vsel %vm4224, %v3584, 0.0
    %v4369 = vsel %vm4224, %v3585, 0.0
    %v4370 = vsel %vm4224, %v3586, 0.0
    %v4371 = vsel %vm4225, %v3587, 0.0
    %v4372 = vsel %vm4225, %v3588, 0.0
    %v4373 = vsel %vm4225, %v3589, 0.0
    %v4374 = vsel %vm4226, %v3590, 0.0
    %v4375 = vsel %vm4226, %v3591, 0.0
    %v4376 = vsel %vm4226, %v3592, 0.0
    %v4377 = vsel %vm4227, %v3593, 0.0
    %v4378 = vsel %vm4227, %v3594, 0.0
    %v4379 = vsel %vm4227, %v3595, 0.0
    %v4380 = vsel %vm4228, %v3596, 0.0
    %v4381 = vsel %vm4228, %v3597, 0.0
    %v4382 = vsel %vm4228, %v3598, 0.0
    %v4383 = vsel %vm4229, %v3599, 0.0
    %v4384 = vsel %vm4229, %v3600, 0.0
    %v4385 = vsel %vm4229, %v3601, 0.0
    %v4386 = vsel %vm4230, %v3602, 0.0
    %v4387 = vsel %vm4230, %v3603, 0.0
    %v4388 = vsel %vm4230, %v3604, 0.0
    %v4389 = vsel %vm4231, %v3605, 0.0
    %v4390 = vsel %vm4231, %v3606, 0.0
    %v4391 = vsel %vm4231, %v3607, 0.0
    %v4392 = vsel %vm4232, %v3608, 0.0
    %v4393 = vsel %vm4232, %v3609, 0.0
    %v4394 = vsel %vm4232, %v3610, 0.0
    %v4395 = vsel %vm4233, %v3611, 0.0
    %v4396 = vsel %vm4233, %v3612, 0.0
    %v4397 = vsel %vm4233, %v3613, 0.0
    %v4398 = vsel %vm4234, %v3614, 0.0
    %v4399 = vsel %vm4234, %v3615, 0.0
    %v4400 = vsel %vm4234, %v3616, 0.0
    %v4401 = vsel %vm4235, %v3617, 0.0
    %v4402 = vsel %vm4235, %v3618, 0.0
    %v4403 = vsel %vm4235, %v3619, 0.0
    %v4404 = vsel %vm4236, %v3620, 0.0
    %v4405 = vsel %vm4236, %v3621, 0.0
    %v4406 = vsel %vm4236, %v3622, 0.0
    %v4407 = vsel %vm4237, %v3623, 0.0
    %v4408 = vsel %vm4237, %v3624, 0.0
    %v4409 = vsel %vm4237, %v3625, 0.0
    %v4410 = vsel %vm4238, %v3626, 0.0
    %v4411 = vsel %vm4238, %v3627, 0.0
    %v4412 = vsel %vm4238, %v3628, 0.0
    %v4413 = vsel %vm4239, %v3629, 0.0
    %v4414 = vsel %vm4239, %v3630, 0.0
    %v4415 = vsel %vm4239, %v3631, 0.0
    %v4416 = vsel %vm4240, %v3632, 0.0
    %v4417 = vsel %vm4240, %v3633, 0.0
    %v4418 = vsel %vm4240, %v3634, 0.0
    %v4419 = vsel %vm4241, %v3635, 0.0
    %v4420 = vsel %vm4241, %v3636, 0.0
    %v4421 = vsel %vm4241, %v3637, 0.0
    %v4422 = vsel %vm4242, %v3638, 0.0
    %v4423 = vsel %vm4242, %v3639, 0.0
    %v4424 = vsel %vm4242, %v3640, 0.0
    %v4425 = vsel %vm4243, %v3641, 0.0
    %v4426 = vsel %vm4243, %v3642, 0.0
    %v4427 = vsel %vm4243, %v3643, 0.0
    %v4428 = vsel %vm4244, %v3644, 0.0
    %v4429 = vsel %vm4244, %v3645, 0.0
    %v4430 = vsel %vm4244, %v3646, 0.0
    %v4431 = vsel %vm4245, %v3647, 0.0
    %v4432 = vsel %vm4245, %v3648, 0.0
    %v4433 = vsel %vm4245, %v3649, 0.0
    %v4434 = vsel %vm4246, %v3650, 0.0
    %v4435 = vsel %vm4246, %v3651, 0.0
    %v4436 = vsel %vm4246, %v3652, 0.0
    %v4437 = vsel %vm4247, %v3653, 0.0
    %v4438 = vsel %vm4247, %v3654, 0.0
    %v4439 = vsel %vm4247, %v3655, 0.0
    %v4440 = vsel %vm4248, %v3656, 0.0
    %v4441 = vsel %vm4248, %v3657, 0.0
    %v4442 = vsel %vm4248, %v3658, 0.0
    %v4443 = vsel %vm4249, %v3659, 0.0
    %v4444 = vsel %vm4249, %v3660, 0.0
    %v4445 = vsel %vm4249, %v3661, 0.0
    %v4446 = vsel %vm4250, %v3662, 0.0
    %v4447 = vsel %vm4250, %v3663, 0.0
    %v4448 = vsel %vm4250, %v3664, 0.0
    %v4449 = vsel %vm4251, %v3665, 0.0
    %v4450 = vsel %vm4251, %v3666, 0.0
    %v4451 = vsel %vm4251, %v3667, 0.0
    %v4452 = vsel %vm4252, %v3668, 0.0
    %v4453 = vsel %vm4252, %v3669, 0.0
    %v4454 = vsel %vm4252, %v3670, 0.0
    %v4455 = vsel %vm4253, %v3671, 0.0
    %v4456 = vsel %vm4253, %v3672, 0.0
    %v4457 = vsel %vm4253, %v3673, 0.0
    %v4458 = vsel %vm4254, %v3674, 0.0
    %v4459 = vsel %vm4254, %v3675, 0.0
    %v4460 = vsel %vm4254, %v3676, 0.0
    %v4461 = vsel %vm4255, %v3677, 0.0
    %v4462 = vsel %vm4255, %v3678, 0.0
    %v4463 = vsel %vm4255, %v3679, 0.0
    %v4464 = vsel %vm4256, %v3680, 0.0
    %v4465 = vsel %vm4256, %v3681, 0.0
    %v4466 = vsel %vm4256, %v3682, 0.0
    %v4467 = vsel %vm4257, %v3683, 0.0
    %v4468 = vsel %vm4257, %v3684, 0.0
    %v4469 = vsel %vm4257, %v3685, 0.0
    %v4470 = vsel %vm4258, %v3686, 0.0
    %v4471 = vsel %vm4258, %v3687, 0.0
    %v4472 = vsel %vm4258, %v3688, 0.0
    %v4473 = vsel %vm4259, %v3689, 0.0
    %v4474 = vsel %vm4259, %v3690, 0.0
    %v4475 = vsel %vm4259, %v3691, 0.0
    %v4476 = vsel %vm4260, %v3692, 0.0
    %v4477 = vsel %vm4260, %v3693, 0.0
    %v4478 = vsel %vm4260, %v3694, 0.0
    %v4479 = vsel %vm4261, %v3695, 0.0
    %v4480 = vsel %vm4261, %v3696, 0.0
    %v4481 = vsel %vm4261, %v3697, 0.0
    %v4482 = vsel %vm4262, %v3698, 0.0
    %v4483 = vsel %vm4262, %v3699, 0.0
    %v4484 = vsel %vm4262, %v3700, 0.0
    %v4485 = vsel %vm4263, %v3701, 0.0
    %v4486 = vsel %vm4263, %v3702, 0.0
    %v4487 = vsel %vm4263, %v3703, 0.0
    %v4488 = vsel %vm4264, %v3704, 0.0
    %v4489 = vsel %vm4264, %v3705, 0.0
    %v4490 = vsel %vm4264, %v3706, 0.0
    %v4491 = vsel %vm4265, %v3707, 0.0
    %v4492 = vsel %vm4265, %v3708, 0.0
    %v4493 = vsel %vm4265, %v3709, 0.0
    %v4494 = vsel %vm4266, %v3710, 0.0
    %v4495 = vsel %vm4266, %v3711, 0.0
    %v4496 = vsel %vm4266, %v3712, 0.0
    %v4497 = vsel %vm4267, %v3713, 0.0
    %v4498 = vsel %vm4267, %v3714, 0.0
    %v4499 = vsel %vm4267, %v3715, 0.0
    %v4500 = vsel %vm4268, %v3716, 0.0
    %v4501 = vsel %vm4268, %v3717, 0.0
    %v4502 = vsel %vm4268, %v3718, 0.0
    %v4503 = vsel %vm4269, %v3719, 0.0
    %v4504 = vsel %vm4269, %v3720, 0.0
    %v4505 = vsel %vm4269, %v3721, 0.0
    %v4506 = vsel %vm4270, %v3722, 0.0
    %v4507 = vsel %vm4270, %v3723, 0.0
    %v4508 = vsel %vm4270, %v3724, 0.0
    %v4509 = vsel %vm4271, %v3725, 0.0
    %v4510 = vsel %vm4271, %v3726, 0.0
    %v4511 = vsel %vm4271, %v3727, 0.0
    %v4512 = vsel %vm4272, %v3728, 0.0
    %v4513 = vsel %vm4272, %v3729, 0.0
    %v4514 = vsel %vm4272, %v3730, 0.0
    %v4515 = vsel %vm4273, %v3731, 0.0
    %v4516 = vsel %vm4273, %v3732, 0.0
    %v4517 = vsel %vm4273, %v3733, 0.0
    %v4518 = vsel %vm4274, %v3734, 0.0
    %v4519 = vsel %vm4274, %v3735, 0.0
    %v4520 = vsel %vm4274, %v3736, 0.0
    %v4521 = vsel %vm4275, %v3737, 0.0
    %v4522 = vsel %vm4275, %v3738, 0.0
    %v4523 = vsel %vm4275, %v3739, 0.0
    %v4524 = vsel %vm4276, %v3740, 0.0
    %v4525 = vsel %vm4276, %v3741, 0.0
    %v4526 = vsel %vm4276, %v3742, 0.0
    %v4527 = vsel %vm4277, %v3743, 0.0
    %v4528 = vsel %vm4277, %v3744, 0.0
    %v4529 = vsel %vm4277, %v3745, 0.0
    %v4530 = vsel %vm4278, %v3746, 0.0
    %v4531 = vsel %vm4278, %v3747, 0.0
    %v4532 = vsel %vm4278, %v3748, 0.0
    %v4533 = vsel %vm4279, %v3749, 0.0
    %v4534 = vsel %vm4279, %v3750, 0.0
    %v4535 = vsel %vm4279, %v3751, 0.0
    %v4536 = vsel %vm4280, %v3752, 0.0
    %v4537 = vsel %vm4280, %v3753, 0.0
    %v4538 = vsel %vm4280, %v3754, 0.0
    %v4539 = vsel %vm4281, %v3755, 0.0
    %v4540 = vsel %vm4281, %v3756, 0.0
    %v4541 = vsel %vm4281, %v3757, 0.0
    %v4542 = vsel %vm4282, %v3758, 0.0
    %v4543 = vsel %vm4282, %v3759, 0.0
    %v4544 = vsel %vm4282, %v3760, 0.0
    %v4545 = vsel %vm4283, %v3761, 0.0
    %v4546 = vsel %vm4283, %v3762, 0.0
    %v4547 = vsel %vm4283, %v3763, 0.0
    %v4548 = vsel %vm4284, %v3764, 0.0
    %v4549 = vsel %vm4284, %v3765, 0.0
    %v4550 = vsel %vm4284, %v3766, 0.0
    %v4551 = vsel %vm4285, %v3767, 0.0
    %v4552 = vsel %vm4285, %v3768, 0.0
    %v4553 = vsel %vm4285, %v3769, 0.0
    %v4554 = vsel %vm4286, %v3770, 0.0
    %v4555 = vsel %vm4286, %v3771, 0.0
    %v4556 = vsel %vm4286, %v3772, 0.0
    %v4557 = vsel %vm4287, %v3773, 0.0
    %v4558 = vsel %vm4287, %v3774, 0.0
    %v4559 = vsel %vm4287, %v3775, 0.0
    %v4560 = vsel %vm4288, %v3776, 0.0
    %v4561 = vsel %vm4288, %v3777, 0.0
    %v4562 = vsel %vm4288, %v3778, 0.0
    %v4563 = vsel %vm4289, %v3779, 0.0
    %v4564 = vsel %vm4289, %v3780, 0.0
    %v4565 = vsel %vm4289, %v3781, 0.0
    %v4566 = vsel %vm4290, %v3782, 0.0
    %v4567 = vsel %vm4290, %v3783, 0.0
    %v4568 = vsel %vm4290, %v3784, 0.0
    %v4569 = vsel %vm4291, %v3785, 0.0
    %v4570 = vsel %vm4291, %v3786, 0.0
    %v4571 = vsel %vm4291, %v3787, 0.0
    %v4572 = vsel %vm4292, %v3788, 0.0
    %v4573 = vsel %vm4292, %v3789, 0.0
    %v4574 = vsel %vm4292, %v3790, 0.0
    %v4575 = vsel %vm4293, %v3791, 0.0
    %v4576 = vsel %vm4293, %v3792, 0.0
    %v4577 = vsel %vm4293, %v3793, 0.0
    %v4578 = vsel %vm4294, %v3794, 0.0
    %v4579 = vsel %vm4294, %v3795, 0.0
    %v4580 = vsel %vm4294, %v3796, 0.0
    %v4581 = vsel %vm4295, %v3797, 0.0
    %v4582 = vsel %vm4295, %v3798, 0.0
    %v4583 = vsel %vm4295, %v3799, 0.0
    %v4584 = vsel %vm4296, %v3800, 0.0
    %v4585 = vsel %vm4296, %v3801, 0.0
    %v4586 = vsel %vm4296, %v3802, 0.0
    %v4587 = vsel %vm4297, %v3803, 0.0
    %v4588 = vsel %vm4297, %v3804, 0.0
    %v4589 = vsel %vm4297, %v3805, 0.0
    %v4590 = vsel %vm4298, %v3806, 0.0
    %v4591 = vsel %vm4298, %v3807, 0.0
    %v4592 = vsel %vm4298, %v3808, 0.0
    %v4593 = vsel %vm4299, %v3809, 0.0
    %v4594 = vsel %vm4299, %v3810, 0.0
    %v4595 = vsel %vm4299, %v3811, 0.0
    %v4596 = vsel %vm4300, %v3812, 0.0
    %v4597 = vsel %vm4300, %v3813, 0.0
    %v4598 = vsel %vm4300, %v3814, 0.0
    %v4599 = vsel %vm4301, %v3815, 0.0
    %v4600 = vsel %vm4301, %v3816, 0.0
    %v4601 = vsel %vm4301, %v3817, 0.0
    %v4602 = vsel %vm4302, %v3818, 0.0
    %v4603 = vsel %vm4302, %v3819, 0.0
    %v4604 = vsel %vm4302, %v3820, 0.0
    %v4605 = vsel %vm4303, %v3821, 0.0
    %v4606 = vsel %vm4303, %v3822, 0.0
    %v4607 = vsel %vm4303, %v3823, 0.0
    %v4608 = vsel %vm4304, %v3824, 0.0
    %v4609 = vsel %vm4304, %v3825, 0.0
    %v4610 = vsel %vm4304, %v3826, 0.0
    %v4611 = vsel %vm4305, %v3827, 0.0
    %v4612 = vsel %vm4305, %v3828, 0.0
    %v4613 = vsel %vm4305, %v3829, 0.0
    %v4614 = vsel %vm4306, %v3830, 0.0
    %v4615 = vsel %vm4306, %v3831, 0.0
    %v4616 = vsel %vm4306, %v3832, 0.0
    %v4617 = vsel %vm4307, %v3833, 0.0
    %v4618 = vsel %vm4307, %v3834, 0.0
    %v4619 = vsel %vm4307, %v3835, 0.0
    %v4620 = vsel %vm4308, %v3836, 0.0
    %v4621 = vsel %vm4308, %v3837, 0.0
    %v4622 = vsel %vm4308, %v3838, 0.0
    %v4623 = vsel %vm4309, %v3839, 0.0
    %v4624 = vsel %vm4309, %v3840, 0.0
    %v4625 = vsel %vm4309, %v3841, 0.0
    %v4626 = vsel %vm4310, %v3842, 0.0
    %v4627 = vsel %vm4310, %v3843, 0.0
    %v4628 = vsel %vm4310, %v3844, 0.0
    %v4629 = vsel %vm4311, %v3845, 0.0
    %v4630 = vsel %vm4311, %v3846, 0.0
    %v4631 = vsel %vm4311, %v3847, 0.0
    %v4632 = vsel %vm4312, %v3848, 0.0
    %v4633 = vsel %vm4312, %v3849, 0.0
    %v4634 = vsel %vm4312, %v3850, 0.0
    %v4635 = vsel %vm4313, %v3851, 0.0
    %v4636 = vsel %vm4313, %v3852, 0.0
    %v4637 = vsel %vm4313, %v3853, 0.0
    %v4638 = vsel %vm4314, %v3854, 0.0
    %v4639 = vsel %vm4314, %v3855, 0.0
    %v4640 = vsel %vm4314, %v3856, 0.0
    %v4641 = vsel %vm4315, %v3857, 0.0
    %v4642 = vsel %vm4315, %v3858, 0.0
    %v4643 = vsel %vm4315, %v3859, 0.0
    %v4644 = vsel %vm4316, %v3860, 0.0
    %v4645 = vsel %vm4316, %v3861, 0.0
    %v4646 = vsel %vm4316, %v3862, 0.0
    %v4647 = vsel %vm4317, %v3863, 0.0
    %v4648 = vsel %vm4317, %v3864, 0.0
    %v4649 = vsel %vm4317, %v3865, 0.0
    %v4650 = vsel %vm4318, %v3866, 0.0
    %v4651 = vsel %vm4318, %v3867, 0.0
    %v4652 = vsel %vm4318, %v3868, 0.0
    %v4653 = vsel %vm4319, %v3869, 0.0
    %v4654 = vsel %vm4319, %v3870, 0.0
    %v4655 = vsel %vm4319, %v3871, 0.0
    %v4656 = vsel %vm4320, %v3872, 0.0
    %v4657 = vsel %vm4320, %v3873, 0.0
    %v4658 = vsel %vm4320, %v3874, 0.0
    %v4659 = vsel %vm4321, %v3875, 0.0
    %v4660 = vsel %vm4321, %v3876, 0.0
    %v4661 = vsel %vm4321, %v3877, 0.0
    %v4662 = vsel %vm4322, %v3878, 0.0
    %v4663 = vsel %vm4322, %v3879, 0.0
    %v4664 = vsel %vm4322, %v3880, 0.0
    %v4665 = vsel %vm4323, %v3881, 0.0
    %v4666 = vsel %vm4323, %v3882, 0.0
    %v4667 = vsel %vm4323, %v3883, 0.0
    %v4668 = vsel %vm4324, %v3884, 0.0
    %v4669 = vsel %vm4324, %v3885, 0.0
    %v4670 = vsel %vm4324, %v3886, 0.0
    %v4671 = vsel %vm4325, %v3887, 0.0
    %v4672 = vsel %vm4325, %v3888, 0.0
    %v4673 = vsel %vm4325, %v3889, 0.0
    %v4674 = vsel %vm4326, %v3890, 0.0
    %v4675 = vsel %vm4326, %v3891, 0.0
    %v4676 = vsel %vm4326, %v3892, 0.0
    %v4677 = vsel %vm4327, %v3893, 0.0
    %v4678 = vsel %vm4327, %v3894, 0.0
    %v4679 = vsel %vm4327, %v3895, 0.0
    %v4680 = vsel %vm4328, %v3896, 0.0
    %v4681 = vsel %vm4328, %v3897, 0.0
    %v4682 = vsel %vm4328, %v3898, 0.0
    %v4683 = vsel %vm4329, %v3899, 0.0
    %v4684 = vsel %vm4329, %v3900, 0.0
    %v4685 = vsel %vm4329, %v3901, 0.0
    %v4686 = vsel %vm4330, %v3902, 0.0
    %v4687 = vsel %vm4330, %v3903, 0.0
    %v4688 = vsel %vm4330, %v3904, 0.0
    %v4689 = vsel %vm4331, %v3905, 0.0
    %v4690 = vsel %vm4331, %v3906, 0.0
    %v4691 = vsel %vm4331, %v3907, 0.0
    %v4692 = vsel %vm4332, %v3908, 0.0
    %v4693 = vsel %vm4332, %v3909, 0.0
    %v4694 = vsel %vm4332, %v3910, 0.0
    %v4695 = vsel %vm4333, %v3911, 0.0
    %v4696 = vsel %vm4333, %v3912, 0.0
    %v4697 = vsel %vm4333, %v3913, 0.0
    %v4698 = vsel %vm4334, %v3914, 0.0
    %v4699 = vsel %vm4334, %v3915, 0.0
    %v4700 = vsel %vm4334, %v3916, 0.0
    %v4701 = vsel %vm4335, %v3917, 0.0
    %v4702 = vsel %vm4335, %v3918, 0.0
    %v4703 = vsel %vm4335, %v3919, 0.0
    %v4704 = vsel %vm4336, %v3920, 0.0
    %v4705 = vsel %vm4336, %v3921, 0.0
    %v4706 = vsel %vm4336, %v3922, 0.0
    %v4707 = vsel %vm4337, %v3923, 0.0
    %v4708 = vsel %vm4337, %v3924, 0.0
    %v4709 = vsel %vm4337, %v3925, 0.0
    %v4710 = vsel %vm4338, %v3926, 0.0
    %v4711 = vsel %vm4338, %v3927, 0.0
    %v4712 = vsel %vm4338, %v3928, 0.0
    %v4713 = vsel %vm4339, %v3929, 0.0
    %v4714 = vsel %vm4339, %v3930, 0.0
    %v4715 = vsel %vm4339, %v3931, 0.0
    %v4716 = vsel %vm4340, %v3932, 0.0
    %v4717 = vsel %vm4340, %v3933, 0.0
    %v4718 = vsel %vm4340, %v3934, 0.0
    %v4719 = vsel %vm4341, %v3935, 0.0
    %v4720 = vsel %vm4341, %v3936, 0.0
    %v4721 = vsel %vm4341, %v3937, 0.0
    %v4722 = vsel %vm4342, %v3938, 0.0
    %v4723 = vsel %vm4342, %v3939, 0.0
    %v4724 = vsel %vm4342, %v3940, 0.0
    %v4725 = vsel %vm4343, %v3941, 0.0
    %v4726 = vsel %vm4343, %v3942, 0.0
    %v4727 = vsel %vm4343, %v3943, 0.0
    %v4728 = vsel %vm4344, %v3944, 0.0
    %v4729 = vsel %vm4344, %v3945, 0.0
    %v4730 = vsel %vm4344, %v3946, 0.0
    %v4731 = vsel %vm4345, %v3947, 0.0
    %v4732 = vsel %vm4345, %v3948, 0.0
    %v4733 = vsel %vm4345, %v3949, 0.0
    %v4734 = vsel %vm4346, %v3950, 0.0
    %v4735 = vsel %vm4346, %v3951, 0.0
    %v4736 = vsel %vm4346, %v3952, 0.0
    %v4737 = vld [vmem:[#allocation2] sm:$0x7]
    %v4738 = vadd.f32 %v4347, %v4350
    %v4739 = vadd.f32 %v4738, %v4353
    %v4740 = vadd.f32 %v4739, %v4356
    %v4741 = vadd.f32 %v4740, %v4359
    %v4742 = vadd.f32 %v4741, %v4362
    %v4743 = vadd.f32 %v4742, %v4365
    %v4744 = vadd.f32 %v4743, %v4368
    %v4745 = vadd.f32 %v4744, %v4371
    %v4746 = vadd.f32 %v4745, %v4374
    %v4747 = vadd.f32 %v4746, %v4377
    %v4748 = vadd.f32 %v4747, %v4380
    %v4749 = vadd.f32 %v4748, %v4383
    %v4750 = vadd.f32 %v4749, %v4386
    %v4751 = vadd.f32 %v4750, %v4389
    %v4752 = vadd.f32 %v4751, %v4392
    %v4753 = vadd.f32 %v4752, %v4395
    %v4754 = vadd.f32 %v4753, %v4398
    %v4755 = vadd.f32 %v4754, %v4401
    %v4756 = vadd.f32 %v4755, %v4404
    %v4757 = vadd.f32 %v4756, %v4407
    %v4758 = vadd.f32 %v4757, %v4410
    %v4759 = vadd.f32 %v4758, %v4413
    %v4760 = vadd.f32 %v4759, %v4416
    %v4761 = vadd.f32 %v4760, %v4419
    %v4762 = vadd.f32 %v4761, %v4422
    %v4763 = vadd.f32 %v4762, %v4425
    %v4764 = vadd.f32 %v4763, %v4428
    %v4765 = vadd.f32 %v4764, %v4431
    %v4766 = vadd.f32 %v4765, %v4434
    %v4767 = vadd.f32 %v4766, %v4437
    %v4768 = vadd.f32 %v4767, %v4440
    %v4769 = vadd.f32 %v4768, %v4443
    %v4770 = vadd.f32 %v4769, %v4446
    %v4771 = vadd.f32 %v4770, %v4449
    %v4772 = vadd.f32 %v4771, %v4452
    %v4773 = vadd.f32 %v4772, %v4455
    %v4774 = vadd.f32 %v4773, %v4458
    %v4775 = vadd.f32 %v4774, %v4461
    %v4776 = vadd.f32 %v4775, %v4464
    %v4777 = vadd.f32 %v4776, %v4467
    %v4778 = vadd.f32 %v4777, %v4470
    %v4779 = vadd.f32 %v4778, %v4473
    %v4780 = vadd.f32 %v4779, %v4476
    %v4781 = vadd.f32 %v4780, %v4479
    %v4782 = vadd.f32 %v4781, %v4482
    %v4783 = vadd.f32 %v4782, %v4485
    %v4784 = vadd.f32 %v4783, %v4488
    %v4785 = vadd.f32 %v4784, %v4491
    %v4786 = vadd.f32 %v4785, %v4494
    %v4787 = vadd.f32 %v4786, %v4497
    %v4788 = vadd.f32 %v4787, %v4500
    %v4789 = vadd.f32 %v4788, %v4503
    %v4790 = vadd.f32 %v4789, %v4506
    %v4791 = vadd.f32 %v4790, %v4509
    %v4792 = vadd.f32 %v4791, %v4512
    %v4793 = vadd.f32 %v4792, %v4515
    %v4794 = vadd.f32 %v4793, %v4518
    %v4795 = vadd.f32 %v4794, %v4521
    %v4796 = vadd.f32 %v4795, %v4524
    %v4797 = vadd.f32 %v4796, %v4527
    %v4798 = vadd.f32 %v4797, %v4530
    %v4799 = vadd.f32 %v4798, %v4533
    %v4800 = vadd.f32 %v4799, %v4536
    %v4801 = vadd.f32 %v4800, %v4539
    %v4802 = vadd.f32 %v4801, %v4542
    %v4803 = vadd.f32 %v4802, %v4545
    %v4804 = vadd.f32 %v4803, %v4548
    %v4805 = vadd.f32 %v4804, %v4551
    %v4806 = vadd.f32 %v4805, %v4554
    %v4807 = vadd.f32 %v4806, %v4557
    %v4808 = vadd.f32 %v4807, %v4560
    %v4809 = vadd.f32 %v4808, %v4563
    %v4810 = vadd.f32 %v4809, %v4566
    %v4811 = vadd.f32 %v4810, %v4569
    %v4812 = vadd.f32 %v4811, %v4572
    %v4813 = vadd.f32 %v4812, %v4575
    %v4814 = vadd.f32 %v4813, %v4578
    %v4815 = vadd.f32 %v4814, %v4581
    %v4816 = vadd.f32 %v4815, %v4584
    %v4817 = vadd.f32 %v4816, %v4587
    %v4818 = vadd.f32 %v4817, %v4590
    %v4819 = vadd.f32 %v4818, %v4593
    %v4820 = vadd.f32 %v4819, %v4596
    %v4821 = vadd.f32 %v4820, %v4599
    %v4822 = vadd.f32 %v4821, %v4602
    %v4823 = vadd.f32 %v4822, %v4605
    %v4824 = vadd.f32 %v4823, %v4608
    %v4825 = vadd.f32 %v4824, %v4611
    %v4826 = vadd.f32 %v4825, %v4614
    %v4827 = vadd.f32 %v4826, %v4617
    %v4828 = vadd.f32 %v4827, %v4620
    %v4829 = vadd.f32 %v4828, %v4623
    %v4830 = vadd.f32 %v4829, %v4626
    %v4831 = vadd.f32 %v4830, %v4629
    %v4832 = vadd.f32 %v4831, %v4632
    %v4833 = vadd.f32 %v4832, %v4635
    %v4834 = vadd.f32 %v4833, %v4638
    %v4835 = vadd.f32 %v4834, %v4641
    %v4836 = vadd.f32 %v4835, %v4644
    %v4837 = vadd.f32 %v4836, %v4647
    %v4838 = vadd.f32 %v4837, %v4650
    %v4839 = vadd.f32 %v4838, %v4653
    %v4840 = vadd.f32 %v4839, %v4656
    %v4841 = vadd.f32 %v4840, %v4659
    %v4842 = vadd.f32 %v4841, %v4662
    %v4843 = vadd.f32 %v4842, %v4665
    %v4844 = vadd.f32 %v4843, %v4668
    %v4845 = vadd.f32 %v4844, %v4671
    %v4846 = vadd.f32 %v4845, %v4674
    %v4847 = vadd.f32 %v4846, %v4677
    %v4848 = vadd.f32 %v4847, %v4680
    %v4849 = vadd.f32 %v4848, %v4683
    %v4850 = vadd.f32 %v4849, %v4686
    %v4851 = vadd.f32 %v4850, %v4689
    %v4852 = vadd.f32 %v4851, %v4692
    %v4853 = vadd.f32 %v4852, %v4695
    %v4854 = vadd.f32 %v4853, %v4698
    %v4855 = vadd.f32 %v4854, %v4701
    %v4856 = vadd.f32 %v4855, %v4704
    %v4857 = vadd.f32 %v4856, %v4707
    %v4858 = vadd.f32 %v4857, %v4710
    %v4859 = vadd.f32 %v4858, %v4713
    %v4860 = vadd.f32 %v4859, %v4716
    %v4861 = vadd.f32 %v4860, %v4719
    %v4862 = vadd.f32 %v4861, %v4722
    %v4863 = vadd.f32 %v4862, %v4725
    %v4864 = vadd.f32 %v4863, %v4728
    %v4865 = vadd.f32 %v4864, %v4731
    %v4866 = vadd.f32 %v4865, %v4734
    %v4867 = vrot.slane %v4866, 4
    %v4868 = vadd.f32 %v4866, %v4867
    %v4869 = vrot.slane %v4868, 2
    %v4870 = vadd.f32 %v4868, %v4869
    %v4871 = vrot.slane %v4870, 1
    %v4872 = vadd.f32 %v4870, %v4871
    %v4873 = vadd.f32 %v4348, %v4351
    %v4874 = vadd.f32 %v4873, %v4354
    %v4875 = vadd.f32 %v4874, %v4357
    %v4876 = vadd.f32 %v4875, %v4360
    %v4877 = vadd.f32 %v4876, %v4363
    %v4878 = vadd.f32 %v4877, %v4366
    %v4879 = vadd.f32 %v4878, %v4369
    %v4880 = vadd.f32 %v4879, %v4372
    %v4881 = vadd.f32 %v4880, %v4375
    %v4882 = vadd.f32 %v4881, %v4378
    %v4883 = vadd.f32 %v4882, %v4381
    %v4884 = vadd.f32 %v4883, %v4384
    %v4885 = vadd.f32 %v4884, %v4387
    %v4886 = vadd.f32 %v4885, %v4390
    %v4887 = vadd.f32 %v4886, %v4393
    %v4888 = vadd.f32 %v4887, %v4396
    %v4889 = vadd.f32 %v4888, %v4399
    %v4890 = vadd.f32 %v4889, %v4402
    %v4891 = vadd.f32 %v4890, %v4405
    %v4892 = vadd.f32 %v4891, %v4408
    %v4893 = vadd.f32 %v4892, %v4411
    %v4894 = vadd.f32 %v4893, %v4414
    %v4895 = vadd.f32 %v4894, %v4417
    %v4896 = vadd.f32 %v4895, %v4420
    %v4897 = vadd.f32 %v4896, %v4423
    %v4898 = vadd.f32 %v4897, %v4426
    %v4899 = vadd.f32 %v4898, %v4429
    %v4900 = vadd.f32 %v4899, %v4432
    %v4901 = vadd.f32 %v4900, %v4435
    %v4902 = vadd.f32 %v4901, %v4438
    %v4903 = vadd.f32 %v4902, %v4441
    %v4904 = vadd.f32 %v4903, %v4444
    %v4905 = vadd.f32 %v4904, %v4447
    %v4906 = vadd.f32 %v4905, %v4450
    %v4907 = vadd.f32 %v4906, %v4453
    %v4908 = vadd.f32 %v4907, %v4456
    %v4909 = vadd.f32 %v4908, %v4459
    %v4910 = vadd.f32 %v4909, %v4462
    %v4911 = vadd.f32 %v4910, %v4465
    %v4912 = vadd.f32 %v4911, %v4468
    %v4913 = vadd.f32 %v4912, %v4471
    %v4914 = vadd.f32 %v4913, %v4474
    %v4915 = vadd.f32 %v4914, %v4477
    %v4916 = vadd.f32 %v4915, %v4480
    %v4917 = vadd.f32 %v4916, %v4483
    %v4918 = vadd.f32 %v4917, %v4486
    %v4919 = vadd.f32 %v4918, %v4489
    %v4920 = vadd.f32 %v4919, %v4492
    %v4921 = vadd.f32 %v4920, %v4495
    %v4922 = vadd.f32 %v4921, %v4498
    %v4923 = vadd.f32 %v4922, %v4501
    %v4924 = vadd.f32 %v4923, %v4504
    %v4925 = vadd.f32 %v4924, %v4507
    %v4926 = vadd.f32 %v4925, %v4510
    %v4927 = vadd.f32 %v4926, %v4513
    %v4928 = vadd.f32 %v4927, %v4516
    %v4929 = vadd.f32 %v4928, %v4519
    %v4930 = vadd.f32 %v4929, %v4522
    %v4931 = vadd.f32 %v4930, %v4525
    %v4932 = vadd.f32 %v4931, %v4528
    %v4933 = vadd.f32 %v4932, %v4531
    %v4934 = vadd.f32 %v4933, %v4534
    %v4935 = vadd.f32 %v4934, %v4537
    %v4936 = vadd.f32 %v4935, %v4540
    %v4937 = vadd.f32 %v4936, %v4543
    %v4938 = vadd.f32 %v4937, %v4546
    %v4939 = vadd.f32 %v4938, %v4549
    %v4940 = vadd.f32 %v4939, %v4552
    %v4941 = vadd.f32 %v4940, %v4555
    %v4942 = vadd.f32 %v4941, %v4558
    %v4943 = vadd.f32 %v4942, %v4561
    %v4944 = vadd.f32 %v4943, %v4564
    %v4945 = vadd.f32 %v4944, %v4567
    %v4946 = vadd.f32 %v4945, %v4570
    %v4947 = vadd.f32 %v4946, %v4573
    %v4948 = vadd.f32 %v4947, %v4576
    %v4949 = vadd.f32 %v4948, %v4579
    %v4950 = vadd.f32 %v4949, %v4582
    %v4951 = vadd.f32 %v4950, %v4585
    %v4952 = vadd.f32 %v4951, %v4588
    %v4953 = vadd.f32 %v4952, %v4591
    %v4954 = vadd.f32 %v4953, %v4594
    %v4955 = vadd.f32 %v4954, %v4597
    %v4956 = vadd.f32 %v4955, %v4600
    %v4957 = vadd.f32 %v4956, %v4603
    %v4958 = vadd.f32 %v4957, %v4606
    %v4959 = vadd.f32 %v4958, %v4609
    %v4960 = vadd.f32 %v4959, %v4612
    %v4961 = vadd.f32 %v4960, %v4615
    %v4962 = vadd.f32 %v4961, %v4618
    %v4963 = vadd.f32 %v4962, %v4621
    %v4964 = vadd.f32 %v4963, %v4624
    %v4965 = vadd.f32 %v4964, %v4627
    %v4966 = vadd.f32 %v4965, %v4630
    %v4967 = vadd.f32 %v4966, %v4633
    %v4968 = vadd.f32 %v4967, %v4636
    %v4969 = vadd.f32 %v4968, %v4639
    %v4970 = vadd.f32 %v4969, %v4642
    %v4971 = vadd.f32 %v4970, %v4645
    %v4972 = vadd.f32 %v4971, %v4648
    %v4973 = vadd.f32 %v4972, %v4651
    %v4974 = vadd.f32 %v4973, %v4654
    %v4975 = vadd.f32 %v4974, %v4657
    %v4976 = vadd.f32 %v4975, %v4660
    %v4977 = vadd.f32 %v4976, %v4663
    %v4978 = vadd.f32 %v4977, %v4666
    %v4979 = vadd.f32 %v4978, %v4669
    %v4980 = vadd.f32 %v4979, %v4672
    %v4981 = vadd.f32 %v4980, %v4675
    %v4982 = vadd.f32 %v4981, %v4678
    %v4983 = vadd.f32 %v4982, %v4681
    %v4984 = vadd.f32 %v4983, %v4684
    %v4985 = vadd.f32 %v4984, %v4687
    %v4986 = vadd.f32 %v4985, %v4690
    %v4987 = vadd.f32 %v4986, %v4693
    %v4988 = vadd.f32 %v4987, %v4696
    %v4989 = vadd.f32 %v4988, %v4699
    %v4990 = vadd.f32 %v4989, %v4702
    %v4991 = vadd.f32 %v4990, %v4705
    %v4992 = vadd.f32 %v4991, %v4708
    %v4993 = vadd.f32 %v4992, %v4711
    %v4994 = vadd.f32 %v4993, %v4714
    %v4995 = vadd.f32 %v4994, %v4717
    %v4996 = vadd.f32 %v4995, %v4720
    %v4997 = vadd.f32 %v4996, %v4723
    %v4998 = vadd.f32 %v4997, %v4726
    %v4999 = vadd.f32 %v4998, %v4729
    %v5000 = vadd.f32 %v4999, %v4732
    %v5001 = vadd.f32 %v5000, %v4735
    %v5002 = vrot.slane %v5001, 4
    %v5003 = vadd.f32 %v5001, %v5002
    %v5004 = vrot.slane %v5003, 2
    %v5005 = vadd.f32 %v5003, %v5004
    %v5006 = vrot.slane %v5005, 1
    %v5007 = vadd.f32 %v5005, %v5006
    %vm5008 = vcmask 359424
    %v5009 = vsel %vm5008, %v4349, 0.0
    %v5010 = vsel %vm5008, %v4352, 0.0
    %v5011 = vadd.f32 %v5009, %v5010
    %v5012 = vsel %vm5008, %v4355, 0.0
    %v5013 = vadd.f32 %v5011, %v5012
    %v5014 = vsel %vm5008, %v4358, 0.0
    %v5015 = vadd.f32 %v5013, %v5014
    %v5016 = vsel %vm5008, %v4361, 0.0
    %v5017 = vadd.f32 %v5015, %v5016
    %v5018 = vsel %vm5008, %v4364, 0.0
    %v5019 = vadd.f32 %v5017, %v5018
    %v5020 = vsel %vm5008, %v4367, 0.0
    %v5021 = vadd.f32 %v5019, %v5020
    %v5022 = vsel %vm5008, %v4370, 0.0
    %v5023 = vadd.f32 %v5021, %v5022
    %v5024 = vsel %vm5008, %v4373, 0.0
    %v5025 = vadd.f32 %v5023, %v5024
    %v5026 = vsel %vm5008, %v4376, 0.0
    %v5027 = vadd.f32 %v5025, %v5026
    %v5028 = vsel %vm5008, %v4379, 0.0
    %v5029 = vadd.f32 %v5027, %v5028
    %v5030 = vsel %vm5008, %v4382, 0.0
    %v5031 = vadd.f32 %v5029, %v5030
    %v5032 = vsel %vm5008, %v4385, 0.0
    %v5033 = vadd.f32 %v5031, %v5032
    %v5034 = vsel %vm5008, %v4388, 0.0
    %v5035 = vadd.f32 %v5033, %v5034
    %v5036 = vsel %vm5008, %v4391, 0.0
    %v5037 = vadd.f32 %v5035, %v5036
    %v5038 = vsel %vm5008, %v4394, 0.0
    %v5039 = vadd.f32 %v5037, %v5038
    %v5040 = vsel %vm5008, %v4397, 0.0
    %v5041 = vadd.f32 %v5039, %v5040
    %v5042 = vsel %vm5008, %v4400, 0.0
    %v5043 = vadd.f32 %v5041, %v5042
    %v5044 = vsel %vm5008, %v4403, 0.0
    %v5045 = vadd.f32 %v5043, %v5044
    %v5046 = vsel %vm5008, %v4406, 0.0
    %v5047 = vadd.f32 %v5045, %v5046
    %v5048 = vsel %vm5008, %v4409, 0.0
    %v5049 = vadd.f32 %v5047, %v5048
    %v5050 = vsel %vm5008, %v4412, 0.0
    %v5051 = vadd.f32 %v5049, %v5050
    %v5052 = vsel %vm5008, %v4415, 0.0
    %v5053 = vadd.f32 %v5051, %v5052
    %v5054 = vsel %vm5008, %v4418, 0.0
    %v5055 = vadd.f32 %v5053, %v5054
    %v5056 = vsel %vm5008, %v4421, 0.0
    %v5057 = vadd.f32 %v5055, %v5056
    %v5058 = vsel %vm5008, %v4424, 0.0
    %v5059 = vadd.f32 %v5057, %v5058
    %v5060 = vsel %vm5008, %v4427, 0.0
    %v5061 = vadd.f32 %v5059, %v5060
    %v5062 = vsel %vm5008, %v4430, 0.0
    %v5063 = vadd.f32 %v5061, %v5062
    %v5064 = vsel %vm5008, %v4433, 0.0
    %v5065 = vadd.f32 %v5063, %v5064
    %v5066 = vsel %vm5008, %v4436, 0.0
    %v5067 = vadd.f32 %v5065, %v5066
    %v5068 = vsel %vm5008, %v4439, 0.0
    %v5069 = vadd.f32 %v5067, %v5068
    %v5070 = vsel %vm5008, %v4442, 0.0
    %v5071 = vadd.f32 %v5069, %v5070
    %v5072 = vsel %vm5008, %v4445, 0.0
    %v5073 = vadd.f32 %v5071, %v5072
    %v5074 = vsel %vm5008, %v4448, 0.0
    %v5075 = vadd.f32 %v5073, %v5074
    %v5076 = vsel %vm5008, %v4451, 0.0
    %v5077 = vadd.f32 %v5075, %v5076
    %v5078 = vsel %vm5008, %v4454, 0.0
    %v5079 = vadd.f32 %v5077, %v5078
    %v5080 = vsel %vm5008, %v4457, 0.0
    %v5081 = vadd.f32 %v5079, %v5080
    %v5082 = vsel %vm5008, %v4460, 0.0
    %v5083 = vadd.f32 %v5081, %v5082
    %v5084 = vsel %vm5008, %v4463, 0.0
    %v5085 = vadd.f32 %v5083, %v5084
    %v5086 = vsel %vm5008, %v4466, 0.0
    %v5087 = vadd.f32 %v5085, %v5086
    %v5088 = vsel %vm5008, %v4469, 0.0
    %v5089 = vadd.f32 %v5087, %v5088
    %v5090 = vsel %vm5008, %v4472, 0.0
    %v5091 = vadd.f32 %v5089, %v5090
    %v5092 = vsel %vm5008, %v4475, 0.0
    %v5093 = vadd.f32 %v5091, %v5092
    %v5094 = vsel %vm5008, %v4478, 0.0
    %v5095 = vadd.f32 %v5093, %v5094
    %v5096 = vsel %vm5008, %v4481, 0.0
    %v5097 = vadd.f32 %v5095, %v5096
    %v5098 = vsel %vm5008, %v4484, 0.0
    %v5099 = vadd.f32 %v5097, %v5098
    %v5100 = vsel %vm5008, %v4487, 0.0
    %v5101 = vadd.f32 %v5099, %v5100
    %v5102 = vsel %vm5008, %v4490, 0.0
    %v5103 = vadd.f32 %v5101, %v5102
    %v5104 = vsel %vm5008, %v4493, 0.0
    %v5105 = vadd.f32 %v5103, %v5104
    %v5106 = vsel %vm5008, %v4496, 0.0
    %v5107 = vadd.f32 %v5105, %v5106
    %v5108 = vsel %vm5008, %v4499, 0.0
    %v5109 = vadd.f32 %v5107, %v5108
    %v5110 = vsel %vm5008, %v4502, 0.0
    %v5111 = vadd.f32 %v5109, %v5110
    %v5112 = vsel %vm5008, %v4505, 0.0
    %v5113 = vadd.f32 %v5111, %v5112
    %v5114 = vsel %vm5008, %v4508, 0.0
    %v5115 = vadd.f32 %v5113, %v5114
    %v5116 = vsel %vm5008, %v4511, 0.0
    %v5117 = vadd.f32 %v5115, %v5116
    %v5118 = vsel %vm5008, %v4514, 0.0
    %v5119 = vadd.f32 %v5117, %v5118
    %v5120 = vsel %vm5008, %v4517, 0.0
    %v5121 = vadd.f32 %v5119, %v5120
    %v5122 = vsel %vm5008, %v4520, 0.0
    %v5123 = vadd.f32 %v5121, %v5122
    %v5124 = vsel %vm5008, %v4523, 0.0
    %v5125 = vadd.f32 %v5123, %v5124
    %v5126 = vsel %vm5008, %v4526, 0.0
    %v5127 = vadd.f32 %v5125, %v5126
    %v5128 = vsel %vm5008, %v4529, 0.0
    %v5129 = vadd.f32 %v5127, %v5128
    %v5130 = vsel %vm5008, %v4532, 0.0
    %v5131 = vadd.f32 %v5129, %v5130
    %v5132 = vsel %vm5008, %v4535, 0.0
    %v5133 = vadd.f32 %v5131, %v5132
    %v5134 = vsel %vm5008, %v4538, 0.0
    %v5135 = vadd.f32 %v5133, %v5134
    %v5136 = vsel %vm5008, %v4541, 0.0
    %v5137 = vadd.f32 %v5135, %v5136
    %v5138 = vsel %vm5008, %v4544, 0.0
    %v5139 = vadd.f32 %v5137, %v5138
    %v5140 = vsel %vm5008, %v4547, 0.0
    %v5141 = vadd.f32 %v5139, %v5140
    %v5142 = vsel %vm5008, %v4550, 0.0
    %v5143 = vadd.f32 %v5141, %v5142
    %v5144 = vsel %vm5008, %v4553, 0.0
    %v5145 = vadd.f32 %v5143, %v5144
    %v5146 = vsel %vm5008, %v4556, 0.0
    %v5147 = vadd.f32 %v5145, %v5146
    %v5148 = vsel %vm5008, %v4559, 0.0
    %v5149 = vadd.f32 %v5147, %v5148
    %v5150 = vsel %vm5008, %v4562, 0.0
    %v5151 = vadd.f32 %v5149, %v5150
    %v5152 = vsel %vm5008, %v4565, 0.0
    %v5153 = vadd.f32 %v5151, %v5152
    %v5154 = vsel %vm5008, %v4568, 0.0
    %v5155 = vadd.f32 %v5153, %v5154
    %v5156 = vsel %vm5008, %v4571, 0.0
    %v5157 = vadd.f32 %v5155, %v5156
    %v5158 = vsel %vm5008, %v4574, 0.0
    %v5159 = vadd.f32 %v5157, %v5158
    %v5160 = vsel %vm5008, %v4577, 0.0
    %v5161 = vadd.f32 %v5159, %v5160
    %v5162 = vsel %vm5008, %v4580, 0.0
    %v5163 = vadd.f32 %v5161, %v5162
    %v5164 = vsel %vm5008, %v4583, 0.0
    %v5165 = vadd.f32 %v5163, %v5164
    %v5166 = vsel %vm5008, %v4586, 0.0
    %v5167 = vadd.f32 %v5165, %v5166
    %v5168 = vsel %vm5008, %v4589, 0.0
    %v5169 = vadd.f32 %v5167, %v5168
    %v5170 = vsel %vm5008, %v4592, 0.0
    %v5171 = vadd.f32 %v5169, %v5170
    %v5172 = vsel %vm5008, %v4595, 0.0
    %v5173 = vadd.f32 %v5171, %v5172
    %v5174 = vsel %vm5008, %v4598, 0.0
    %v5175 = vadd.f32 %v5173, %v5174
    %v5176 = vsel %vm5008, %v4601, 0.0
    %v5177 = vadd.f32 %v5175, %v5176
    %v5178 = vsel %vm5008, %v4604, 0.0
    %v5179 = vadd.f32 %v5177, %v5178
    %v5180 = vsel %vm5008, %v4607, 0.0
    %v5181 = vadd.f32 %v5179, %v5180
    %v5182 = vsel %vm5008, %v4610, 0.0
    %v5183 = vadd.f32 %v5181, %v5182
    %v5184 = vsel %vm5008, %v4613, 0.0
    %v5185 = vadd.f32 %v5183, %v5184
    %v5186 = vsel %vm5008, %v4616, 0.0
    %v5187 = vadd.f32 %v5185, %v5186
    %v5188 = vsel %vm5008, %v4619, 0.0
    %v5189 = vadd.f32 %v5187, %v5188
    %v5190 = vsel %vm5008, %v4622, 0.0
    %v5191 = vadd.f32 %v5189, %v5190
    %v5192 = vsel %vm5008, %v4625, 0.0
    %v5193 = vadd.f32 %v5191, %v5192
    %v5194 = vsel %vm5008, %v4628, 0.0
    %v5195 = vadd.f32 %v5193, %v5194
    %v5196 = vsel %vm5008, %v4631, 0.0
    %v5197 = vadd.f32 %v5195, %v5196
    %v5198 = vsel %vm5008, %v4634, 0.0
    %v5199 = vadd.f32 %v5197, %v5198
    %v5200 = vsel %vm5008, %v4637, 0.0
    %v5201 = vadd.f32 %v5199, %v5200
    %v5202 = vsel %vm5008, %v4640, 0.0
    %v5203 = vadd.f32 %v5201, %v5202
    %v5204 = vsel %vm5008, %v4643, 0.0
    %v5205 = vadd.f32 %v5203, %v5204
    %v5206 = vsel %vm5008, %v4646, 0.0
    %v5207 = vadd.f32 %v5205, %v5206
    %v5208 = vsel %vm5008, %v4649, 0.0
    %v5209 = vadd.f32 %v5207, %v5208
    %v5210 = vsel %vm5008, %v4652, 0.0
    %v5211 = vadd.f32 %v5209, %v5210
    %v5212 = vsel %vm5008, %v4655, 0.0
    %v5213 = vadd.f32 %v5211, %v5212
    %v5214 = vsel %vm5008, %v4658, 0.0
    %v5215 = vadd.f32 %v5213, %v5214
    %v5216 = vsel %vm5008, %v4661, 0.0
    %v5217 = vadd.f32 %v5215, %v5216
    %v5218 = vsel %vm5008, %v4664, 0.0
    %v5219 = vadd.f32 %v5217, %v5218
    %v5220 = vsel %vm5008, %v4667, 0.0
    %v5221 = vadd.f32 %v5219, %v5220
    %v5222 = vsel %vm5008, %v4670, 0.0
    %v5223 = vadd.f32 %v5221, %v5222
    %v5224 = vsel %vm5008, %v4673, 0.0
    %v5225 = vadd.f32 %v5223, %v5224
    %v5226 = vsel %vm5008, %v4676, 0.0
    %v5227 = vadd.f32 %v5225, %v5226
    %v5228 = vsel %vm5008, %v4679, 0.0
    %v5229 = vadd.f32 %v5227, %v5228
    %v5230 = vsel %vm5008, %v4682, 0.0
    %v5231 = vadd.f32 %v5229, %v5230
    %v5232 = vsel %vm5008, %v4685, 0.0
    %v5233 = vadd.f32 %v5231, %v5232
    %v5234 = vsel %vm5008, %v4688, 0.0
    %v5235 = vadd.f32 %v5233, %v5234
    %v5236 = vsel %vm5008, %v4691, 0.0
    %v5237 = vadd.f32 %v5235, %v5236
    %v5238 = vsel %vm5008, %v4694, 0.0
    %v5239 = vadd.f32 %v5237, %v5238
    %v5240 = vsel %vm5008, %v4697, 0.0
    %v5241 = vadd.f32 %v5239, %v5240
    %v5242 = vsel %vm5008, %v4700, 0.0
    %v5243 = vadd.f32 %v5241, %v5242
    %v5244 = vsel %vm5008, %v4703, 0.0
    %v5245 = vadd.f32 %v5243, %v5244
    %v5246 = vsel %vm5008, %v4706, 0.0
    %v5247 = vadd.f32 %v5245, %v5246
    %v5248 = vsel %vm5008, %v4709, 0.0
    %v5249 = vadd.f32 %v5247, %v5248
    %v5250 = vsel %vm5008, %v4712, 0.0
    %v5251 = vadd.f32 %v5249, %v5250
    %v5252 = vsel %vm5008, %v4715, 0.0
    %v5253 = vadd.f32 %v5251, %v5252
    %v5254 = vsel %vm5008, %v4718, 0.0
    %v5255 = vadd.f32 %v5253, %v5254
    %v5256 = vsel %vm5008, %v4721, 0.0
    %v5257 = vadd.f32 %v5255, %v5256
    %v5258 = vsel %vm5008, %v4724, 0.0
    %v5259 = vadd.f32 %v5257, %v5258
    %v5260 = vsel %vm5008, %v4727, 0.0
    %v5261 = vadd.f32 %v5259, %v5260
    %v5262 = vsel %vm5008, %v4730, 0.0
    %v5263 = vadd.f32 %v5261, %v5262
    %v5264 = vsel %vm5008, %v4733, 0.0
    %v5265 = vadd.f32 %v5263, %v5264
    %v5266 = vsel %vm5008, %v4736, 0.0
    %v5267 = vadd.f32 %v5265, %v5266
    %v5268 = vrot.slane %v5267, 4
    %v5269 = vadd.f32 %v5267, %v5268
    %v5270 = vrot.slane %v5269, 2
    %v5271 = vadd.f32 %v5269, %v5270
    %v5272 = vrot.slane %v5271, 1
    %v5273 = vadd.f32 %v5271, %v5272
    %v5277 = vcombine.low %v4872, %v5007
    %v5279 = vunpack.c.l.s4 1966171168
    %v5280 = vunpack.c.0.s8 %v5279
    %v5281 = vlaneseq
    %v5282 = vshrl.u32 %v5281, 7
    %v5283 = vsub.s32 %v5280, %v5282
    %v5284 = vrot.slane %v5277, %v5283
    %v5286 = vunpack.c.l.s4 1966171168
    %v5287 = vunpack.c.0.s8 %v5286
    %v5288 = vlaneseq
    %v5289 = vshrl.u32 %v5288, 7
    %v5290 = vsub.s32 %v5287, %v5289
    %v5291 = vrot.slane %v5273, %v5290
    %v5292 = vcombine.low %v5284, %v5291
    %v5294 = vunpack.c.l.s4 1966171168
    %v5295 = vunpack.c.0.s8 %v5294
    %v5296 = vlaneseq
    %v5297 = vshrl.u32 %v5296, 7
    %v5298 = vsub.s32 %v5295, %v5297
    %v5299 = vrot.slane %v5292, %v5298
    %v5301 = vadd.f32 %v4737, %v5299
    %v5302 = vlaneseq
    %vm5303 = vcmp.ge.s32.totalorder %v5302, 0
    %vm5304 = vcmp.lt.s32.totalorder %v5302, 300
    %vm5305 = vmand %vm5303, %vm5304
    %5306 = vst.msk [vmem:[#allocation2] sm:$0x7] %vm5305, %v5301
    // Predicated region
    $region10: #{tpu_custom_call.1} parent=1 // pred_check
      _
    $region11: #{tpu_custom_call.1} parent=1 // pred_check_branch
      %5308 = sbr.rel (0) target = $region13
    $region12: #{tpu_custom_call.1} parent=1 // pred_region
      %s5310 = ssub.s32 48, 48
      %5311 = vsyncadd [#allocation3], %s5310
      %s5313 = sshll.u32 [#allocation2], 4
      %s5314 = int_to_ptr.vmem [resolvable:$true] %s5313
      %5316 = dma.vmem_to_hbm [thread:$0]  %s5314, 48, %s1, [#allocation3]
    $region13: #{tpu_custom_call.1} parent=1 // pred_fallthru
      _
    // Predicated region
    $region14: #{tpu_custom_call.1} parent=1 // pred_check
      _
    $region15: #{tpu_custom_call.1} parent=1 // pred_check_branch
      %5318 = sbr.rel (0) target = $region17
    $region16: #{tpu_custom_call.1} parent=1 // pred_region
      %5319 = dma.done [#allocation3], 48
    $region17: #{tpu_custom_call.1} parent=1 // pred_fallthru
      _
    %5320 = vsyncpa [#allocation3], 1

</llo_original>
